<compile_context>
chip_gen: v5e
topology: v5e:2x2
jax: 0.10.0
libtpu: 0.0.40
codegen_flags: <defaults>
</compile_context>

<pallas_src>
import functools

import jax
import jax.numpy as jnp
from jax.experimental import pallas as pl
from jax.experimental.pallas import tpu as pltpu

C_IN = 63          # EEG channels
C_PAD = 64         # channel dim zero-padded to a lane-friendly width
D_MODEL = 64
D_FFN = 128
C_OUT = 128
OUT_PAD = 128      # num_classes padded to a full 128-lane store
EPS = 1e-5         # nn.LayerNorm default


def _layernorm(x, gamma, beta):
    mu = jnp.mean(x, axis=-1, keepdims=True)
    var = jnp.mean((x - mu) ** 2, axis=-1, keepdims=True)
    return (x - mu) * jax.lax.rsqrt(var + EPS) * gamma + beta


def tfm_kernel(x_ref, w64_ref, w128_ref, v64_ref, v128_ref, o_ref):
    # x_ref:    (TB, S, C_PAD)   f32
    # w64_ref:  (448, 64)        [win | wq | wk | wv | wo | w2] stacked by rows
    # w128_ref: (256, 128)       [w1 | wout | wfc_pad]          stacked by rows
    # v64_ref:  (96, 64)         12 bias/affine vectors, one per 8-row group
    # v128_ref: (24, 128)        [bf1 | bout | bfc_pad],        one per 8-row group
    # o_ref:    (TB, OUT_PAD)
    TB, S, _ = x_ref.shape

    def vec64(i):                       # (1, D_MODEL) f32, sublane-aligned slice
        return v64_ref[8 * i:8 * i + 1, :]

    def vec128(i):                      # (1, 128) f32
        return v128_ref[8 * i:8 * i + 1, :]

    def mm(a, w):
        # bf16 MXU operands, f32 accumulation; element-wise math stays f32.
        return jnp.dot(a.astype(jnp.bfloat16), w.astype(jnp.bfloat16),
                       preferred_element_type=jnp.float32)

    # Flatten (TB, S, C_PAD) -> (TB*S, C_PAD) so every shared linear is one
    # large-M matmul instead of TB tiny ones.
    x = x_ref[...].reshape(TB * S, C_PAD)

    # --- input linear + ReLU --------------------------------------------------
    h = jnp.maximum(mm(x, w64_ref[0:64, :]) + vec64(0), 0.0)            # (TB*S, D)

    # --- single-head self-attention (batched over TB) ---------------------------
    q = mm(h, w64_ref[64:128, :]) + vec64(1)
    k = mm(h, w64_ref[128:192, :]) + vec64(2)
    v = mm(h, w64_ref[192:256, :]) + vec64(3)
    qb = q.reshape(TB, S, D_MODEL).astype(jnp.bfloat16)
    kb = k.reshape(TB, S, D_MODEL).astype(jnp.bfloat16)
    vb = v.reshape(TB, S, D_MODEL).astype(jnp.bfloat16)

    scale = jnp.float32(1.0) / jnp.sqrt(jnp.float32(D_MODEL))
    # Contraction over the last dim of both operands: no k.T materialization.
    scores = jnp.einsum("bsd,btd->bst", qb, kb,
                        preferred_element_type=jnp.float32) * scale     # (TB,S,S)
    scores = scores - jnp.max(scores, axis=-1, keepdims=True)
    p = jnp.exp(scores)
    p = p * pl.reciprocal(jnp.sum(p, axis=-1, keepdims=True), approx=True)
    attn = jnp.einsum("bst,btd->bsd", p.astype(jnp.bfloat16), vb,
                      preferred_element_type=jnp.float32)               # (TB,S,D)
    attn = attn.reshape(TB * S, D_MODEL)
    attn = mm(attn, w64_ref[256:320, :]) + vec64(4)                     # out-proj

    # TODO(synk): dropout layers are identity in eval mode and are omitted.

    # --- residual + norm1 -------------------------------------------------------
    src = _layernorm(h + attn, vec64(5), vec64(6))

    # --- feed-forward + residual + norm2 ----------------------------------------
    ff = jnp.maximum(mm(src, w128_ref[0:64, :]) + vec128(0), 0.0)       # (TB*S, D_FFN)
    ff = mm(ff, w64_ref[320:448, :]) + vec64(7)                         # (TB*S, D)
    src = _layernorm(src + ff, vec64(8), vec64(9))

    # --- TransformerEncoder final LayerNorm -------------------------------------
    src = _layernorm(src, vec64(10), vec64(11))                         # (TB*S, D)

    # --- max over sequence, ReLU, out-linear, classifier head -------------------
    pooled = jnp.maximum(jnp.max(src.reshape(TB, S, D_MODEL), axis=1), 0.0)  # (TB, D)
    feat = mm(pooled, w128_ref[64:128, :]) + vec128(1)                  # (TB, C_OUT)
    logits = mm(feat, w128_ref[128:256, :]) + vec128(2)                 # (TB, OUT_PAD)
    o_ref[...] = logits.astype(o_ref.dtype)                             # lane-dense store


def init_params(num_classes, key):
    """Deterministic synthetic weights (PyTorch Linear weight is (out, in); we
    store the transpose so the kernel computes activation @ W_t)."""
    ks = jax.random.split(key, 16)
    n = lambda k, shape, s=0.05: (s * jax.random.normal(k, shape)).astype(jnp.float32)
    ones = lambda d: jnp.ones((1, d), jnp.float32)
    zeros = lambda d: jnp.zeros((1, d), jnp.float32)
    return {
        "win_t": n(ks[0], (C_IN, D_MODEL)), "bin": n(ks[1], (1, D_MODEL)),
        "wq_t": n(ks[2], (D_MODEL, D_MODEL)), "bq": zeros(D_MODEL),
        "wk_t": n(ks[3], (D_MODEL, D_MODEL)), "bk": zeros(D_MODEL),
        "wv_t": n(ks[4], (D_MODEL, D_MODEL)), "bv": zeros(D_MODEL),
        "wo_t": n(ks[5], (D_MODEL, D_MODEL)), "bo": n(ks[6], (1, D_MODEL)),
        "g1": ones(D_MODEL), "be1": zeros(D_MODEL),
        "w1_t": n(ks[7], (D_MODEL, D_FFN)), "bf1": n(ks[8], (1, D_FFN)),
        "w2_t": n(ks[9], (D_FFN, D_MODEL)), "bf2": n(ks[10], (1, D_MODEL)),
        "g2": ones(D_MODEL), "be2": zeros(D_MODEL),
        "gf": ones(D_MODEL), "bef": zeros(D_MODEL),
        "wout_t": n(ks[11], (D_MODEL, C_OUT)), "bout": n(ks[12], (1, C_OUT)),
        "wfc_t": n(ks[13], (C_OUT, num_classes)), "bfc": n(ks[14], (1, num_classes)),
    }


def _pack_params(p, num_classes):
    """Pack the 24 small parameter tensors into 4 tile-aligned slabs."""
    # Weight slab A: all weights with D_MODEL(=64) output columns, row-stacked.
    win_pad = jnp.pad(p["win_t"], ((0, C_PAD - C_IN), (0, 0)))            # (64, 64)
    w64 = jnp.concatenate(
        [win_pad, p["wq_t"], p["wk_t"], p["wv_t"], p["wo_t"], p["w2_t"]], axis=0)  # (448, 64)
    # Weight slab B: all weights with 128 output columns, row-stacked.
    wfc_pad = jnp.pad(p["wfc_t"], ((0, 0), (0, OUT_PAD - num_classes)))   # (128, 128)
    w128 = jnp.concatenate([p["w1_t"], p["wout_t"], wfc_pad], axis=0)     # (256, 128)
    # Vector slab A: 64-wide biases / LayerNorm affines, one per 8-row group.
    v64_list = [p[k] for k in ("bin", "bq", "bk", "bv", "bo", "g1", "be1",
                               "bf2", "g2", "be2", "gf", "bef")]
    v64 = jnp.concatenate([jnp.pad(v, ((0, 7), (0, 0))) for v in v64_list], axis=0)  # (96, 64)
    # Vector slab B: 128-wide biases (ffn, out-linear, classifier head).
    bfc_pad = jnp.pad(p["bfc"], ((0, 0), (0, OUT_PAD - num_classes)))
    v128_list = [p["bf1"], p["bout"], bfc_pad]
    v128 = jnp.concatenate([jnp.pad(v, ((0, 7), (0, 0))) for v in v128_list], axis=0)  # (24, 128)
    return w64, w128, v64, v128


@functools.partial(jax.jit, static_argnames=("num_classes", "tb"))
def tfm_model(x, params, num_classes, tb=8):
    """x: (B, S, C_IN=63) float32  ->  logits (B, num_classes) float32."""
    B, S, C = x.shape
    assert C == C_IN
    # Zero-pad channels 63 -> 64 (win_t rows padded with zeros: exact result).
    x = jnp.pad(x, ((0, 0), (0, 0), (0, C_PAD - C_IN)))
    # Pad batch to a multiple of the per-step block TB.
    Bp = ((B + tb - 1) // tb) * tb
    if Bp != B:
        x = jnp.pad(x, ((0, Bp - B), (0, 0), (0, 0)))
    w64, w128, v64, v128 = _pack_params(params, num_classes)

    out = pl.pallas_call(
        tfm_kernel,
        out_shape=jax.ShapeDtypeStruct((Bp, OUT_PAD), jnp.float32),
        grid_spec=pltpu.PrefetchScalarGridSpec(
            num_scalar_prefetch=0,
            grid=(Bp // tb,),
            in_specs=[
                pl.BlockSpec((tb, S, C_PAD), lambda b: (b, 0, 0)),
                pl.BlockSpec(w64.shape, lambda b: (0, 0)),
                pl.BlockSpec(w128.shape, lambda b: (0, 0)),
                pl.BlockSpec(v64.shape, lambda b: (0, 0)),
                pl.BlockSpec(v128.shape, lambda b: (0, 0)),
            ],
            out_specs=pl.BlockSpec((tb, OUT_PAD), lambda b: (b, 0)),
        ),
        compiler_params=pltpu.CompilerParams(
            dimension_semantics=("parallel",),   # shards batch blocks across v7x's 2 TCs
        ),
    )(x, w64, w128, v64, v128)
    return out[:B, :num_classes]


def tfm_reference(x, p):
    """Pure-JAX f32 reference of the PyTorch forward pass (no padding, no bf16)."""
    def ln(z, g, b):
        mu = z.mean(-1, keepdims=True)
        var = ((z - mu) ** 2).mean(-1, keepdims=True)
        return (z - mu) * jax.lax.rsqrt(var + EPS) * g + b

    h = jnp.maximum(x @ p["win_t"] + p["bin"], 0.0)                  # (B, S, D)
    q = h @ p["wq_t"] + p["bq"]
    k = h @ p["wk_t"] + p["bk"]
    v = h @ p["wv_t"] + p["bv"]
    s = jnp.einsum("bsd,btd->bst", q, k) / jnp.sqrt(jnp.float32(D_MODEL))
    attn = jnp.einsum("bst,btd->bsd", jax.nn.softmax(s, axis=-1), v)
    attn = attn @ p["wo_t"] + p["bo"]
    src = ln(h + attn, p["g1"], p["be1"])
    ff = jnp.maximum(src @ p["w1_t"] + p["bf1"], 0.0) @ p["w2_t"] + p["bf2"]
    src = ln(src + ff, p["g2"], p["be2"])
    src = ln(src, p["gf"], p["bef"])
    pooled = jnp.maximum(jnp.max(src, axis=1), 0.0)                  # (B, D)
    feat = pooled @ p["wout_t"] + p["bout"]
    return feat @ p["wfc_t"] + p["bfc"]


if __name__ == "__main__":
    B, S, NUM_CLASSES = 16, 16, 4
    key = jax.random.PRNGKey(0)
    kx, kp = jax.random.split(key)
    x = jax.random.normal(kx, (B, S, C_IN), dtype=jnp.float32)   # (batch, time, eeg-channels)
    params = init_params(NUM_CLASSES, kp)

    out = jax.block_until_ready(tfm_model(x, params, NUM_CLASSES))
    ref = jax.block_until_ready(tfm_reference(x, params))

    assert out.shape == (B, NUM_CLASSES)
    assert bool(jnp.all(jnp.isfinite(out)))
    max_err = float(jnp.max(jnp.abs(out - ref)))
    assert bool(jnp.allclose(out, ref, atol=5e-2, rtol=5e-2)), max_err
    print("KERNEL_OK")
</pallas_src>

<mosaic_0001>
module attributes {stable_mosaic.version = 11 : i64} {
  func.func @tfm_kernel(%arg0: i32, %arg1: memref<8x16x64xf32, #tpu.memory_space<vmem>>, %arg2: memref<448x64xf32, #tpu.memory_space<vmem>>, %arg3: memref<256x128xf32, #tpu.memory_space<vmem>>, %arg4: memref<96x64xf32, #tpu.memory_space<vmem>>, %arg5: memref<24x128xf32, #tpu.memory_space<vmem>>, %arg6: memref<8x128xf32, #tpu.memory_space<vmem>>) attributes {dimension_semantics = [#tpu.dimension_semantics<parallel>], iteration_bounds = array<i64: 2>, scalar_prefetch = 0 : i64, scratch_operands = 0 : i64, tpu.core_type = #tpu.core_type<tc>, window_params = [{transform_indices = @transform_0, window_bounds = array<i64: 8, 16, 64>}, {pipeline_mode = #tpu.pipeline_mode<synchronous>, transform_indices = @transform_1, window_bounds = array<i64: 448, 64>}, {pipeline_mode = #tpu.pipeline_mode<synchronous>, transform_indices = @transform_2, window_bounds = array<i64: 256, 128>}, {pipeline_mode = #tpu.pipeline_mode<synchronous>, transform_indices = @transform_3, window_bounds = array<i64: 96, 64>}, {pipeline_mode = #tpu.pipeline_mode<synchronous>, transform_indices = @transform_4, window_bounds = array<i64: 24, 128>}, {transform_indices = @transform_5, window_bounds = array<i64: 8, 128>}]} {
    %c0 = arith.constant 0 : index
    %c0_0 = arith.constant 0 : index
    %c0_1 = arith.constant 0 : index
    %0 = vector.load %arg1[%c0, %c0_0, %c0_1] : memref<8x16x64xf32, #tpu.memory_space<vmem>>, vector<8x16x64xf32>
    %1 = vector.shape_cast %0 : vector<8x16x64xf32> to vector<128x64xf32>
    %c0_2 = arith.constant 0 : index
    %c0_3 = arith.constant 0 : index
    %2 = vector.load %arg2[%c0_2, %c0_3] : memref<448x64xf32, #tpu.memory_space<vmem>>, vector<64x64xf32>
    %3 = arith.truncf %1 : vector<128x64xf32> to vector<128x64xbf16>
    %4 = arith.truncf %2 : vector<64x64xf32> to vector<64x64xbf16>
    %cst = arith.constant dense<0.000000e+00> : vector<128x64xf32>
    %5 = tpu.matmul %3, %4, %cst {dimension_numbers = #tpu.dot_dimension_numbers<[1], [0], [0], [1], [0, 0, 1, 1], [], []>} : vector<128x64xbf16>, vector<64x64xbf16>, vector<128x64xf32> -> vector<128x64xf32>
    %c0_4 = arith.constant 0 : index
    %c0_5 = arith.constant 0 : index
    %6 = vector.load %arg4[%c0_4, %c0_5] : memref<96x64xf32, #tpu.memory_space<vmem>>, vector<1x64xf32>
    %7 = vector.broadcast %6 : vector<1x64xf32> to vector<128x64xf32>
    %8 = arith.addf %5, %7 : vector<128x64xf32>
    %cst_6 = arith.constant 0.000000e+00 : f32
    %9 = vector.broadcast %cst_6 : f32 to vector<128x64xf32>
    %10 = arith.maximumf %8, %9 : vector<128x64xf32>
    %c64 = arith.constant 64 : index
    %c0_7 = arith.constant 0 : index
    %11 = vector.load %arg2[%c64, %c0_7] : memref<448x64xf32, #tpu.memory_space<vmem>>, vector<64x64xf32>
    %12 = arith.truncf %10 : vector<128x64xf32> to vector<128x64xbf16>
    %13 = arith.truncf %11 : vector<64x64xf32> to vector<64x64xbf16>
    %cst_8 = arith.constant dense<0.000000e+00> : vector<128x64xf32>
    %14 = tpu.matmul %12, %13, %cst_8 {dimension_numbers = #tpu.dot_dimension_numbers<[1], [0], [0], [1], [0, 0, 1, 1], [], []>} : vector<128x64xbf16>, vector<64x64xbf16>, vector<128x64xf32> -> vector<128x64xf32>
    %c8 = arith.constant 8 : index
    %c0_9 = arith.constant 0 : index
    %15 = vector.load %arg4[%c8, %c0_9] : memref<96x64xf32, #tpu.memory_space<vmem>>, vector<1x64xf32>
    %16 = vector.broadcast %15 : vector<1x64xf32> to vector<128x64xf32>
    %17 = arith.addf %14, %16 : vector<128x64xf32>
    %c128 = arith.constant 128 : index
    %c0_10 = arith.constant 0 : index
    %18 = vector.load %arg2[%c128, %c0_10] : memref<448x64xf32, #tpu.memory_space<vmem>>, vector<64x64xf32>
    %19 = arith.truncf %10 : vector<128x64xf32> to vector<128x64xbf16>
    %20 = arith.truncf %18 : vector<64x64xf32> to vector<64x64xbf16>
    %cst_11 = arith.constant dense<0.000000e+00> : vector<128x64xf32>
    %21 = tpu.matmul %19, %20, %cst_11 {dimension_numbers = #tpu.dot_dimension_numbers<[1], [0], [0], [1], [0, 0, 1, 1], [], []>} : vector<128x64xbf16>, vector<64x64xbf16>, vector<128x64xf32> -> vector<128x64xf32>
    %c16 = arith.constant 16 : index
    %c0_12 = arith.constant 0 : index
    %22 = vector.load %arg4[%c16, %c0_12] : memref<96x64xf32, #tpu.memory_space<vmem>>, vector<1x64xf32>
    %23 = vector.broadcast %22 : vector<1x64xf32> to vector<128x64xf32>
    %24 = arith.addf %21, %23 : vector<128x64xf32>
    %c192 = arith.constant 192 : index
    %c0_13 = arith.constant 0 : index
    %25 = vector.load %arg2[%c192, %c0_13] : memref<448x64xf32, #tpu.memory_space<vmem>>, vector<64x64xf32>
    %26 = arith.truncf %10 : vector<128x64xf32> to vector<128x64xbf16>
    %27 = arith.truncf %25 : vector<64x64xf32> to vector<64x64xbf16>
    %cst_14 = arith.constant dense<0.000000e+00> : vector<128x64xf32>
    %28 = tpu.matmul %26, %27, %cst_14 {dimension_numbers = #tpu.dot_dimension_numbers<[1], [0], [0], [1], [0, 0, 1, 1], [], []>} : vector<128x64xbf16>, vector<64x64xbf16>, vector<128x64xf32> -> vector<128x64xf32>
    %c24 = arith.constant 24 : index
    %c0_15 = arith.constant 0 : index
    %29 = vector.load %arg4[%c24, %c0_15] : memref<96x64xf32, #tpu.memory_space<vmem>>, vector<1x64xf32>
    %30 = vector.broadcast %29 : vector<1x64xf32> to vector<128x64xf32>
    %31 = arith.addf %28, %30 : vector<128x64xf32>
    %32 = vector.shape_cast %17 : vector<128x64xf32> to vector<8x16x64xf32>
    %33 = arith.truncf %32 : vector<8x16x64xf32> to vector<8x16x64xbf16>
    %34 = vector.shape_cast %24 : vector<128x64xf32> to vector<8x16x64xf32>
    %35 = arith.truncf %34 : vector<8x16x64xf32> to vector<8x16x64xbf16>
    %36 = vector.shape_cast %31 : vector<128x64xf32> to vector<8x16x64xf32>
    %37 = arith.truncf %36 : vector<8x16x64xf32> to vector<8x16x64xbf16>
    %cst_16 = arith.constant 6.400000e+01 : f32
    %38 = math.sqrt %cst_16 : f32
    %cst_17 = arith.constant 1.000000e+00 : f32
    %39 = arith.divf %cst_17, %38 : f32
    "tpu.trace_start"() <{level = 10 : i32, message = "bsd,btd->bst"}> : () -> ()
    %cst_18 = arith.constant dense<0.000000e+00> : vector<8x16x16xf32>
    %40 = tpu.matmul %33, %35, %cst_18 {dimension_numbers = #tpu.dot_dimension_numbers<[2], [2], [1], [1], [0, 0, 0, 1, 1, 1], [0], [0]>} : vector<8x16x64xbf16>, vector<8x16x64xbf16>, vector<8x16x16xf32> -> vector<8x16x16xf32>
    "tpu.trace_stop"() : () -> ()
    %41 = vector.broadcast %39 : f32 to vector<8x16x16xf32>
    %42 = arith.mulf %40, %41 : vector<8x16x16xf32>
    %cst_19 = arith.constant dense<0xFF800000> : vector<8x16xf32>
    %43 = vector.multi_reduction <maximumf>, %42, %cst_19 [2] : vector<8x16x16xf32> to vector<8x16xf32>
    %44 = vector.shape_cast %43 : vector<8x16xf32> to vector<8x16x1xf32>
    %45 = vector.broadcast %44 : vector<8x16x1xf32> to vector<8x16x16xf32>
    %46 = arith.subf %42, %45 : vector<8x16x16xf32>
    %47 = math.exp %46 : vector<8x16x16xf32>
    %cst_20 = arith.constant dense<0.000000e+00> : vector<8x16xf32>
    %48 = vector.multi_reduction <add>, %47, %cst_20 [2] : vector<8x16x16xf32> to vector<8x16xf32>
    %49 = vector.shape_cast %48 : vector<8x16xf32> to vector<8x16x1xf32>
    %50 = tpu.reciprocal %49 {approx = true} : vector<8x16x1xf32> -> vector<8x16x1xf32>
    %51 = vector.broadcast %50 : vector<8x16x1xf32> to vector<8x16x16xf32>
    %52 = arith.mulf %47, %51 : vector<8x16x16xf32>
    %53 = arith.truncf %52 : vector<8x16x16xf32> to vector<8x16x16xbf16>
    "tpu.trace_start"() <{level = 10 : i32, message = "bst,btd->bsd"}> : () -> ()
    %cst_21 = arith.constant dense<0.000000e+00> : vector<8x16x64xf32>
    %54 = tpu.matmul %53, %37, %cst_21 {dimension_numbers = #tpu.dot_dimension_numbers<[2], [1], [1], [2], [0, 0, 0, 1, 1, 2], [0], [0]>} : vector<8x16x16xbf16>, vector<8x16x64xbf16>, vector<8x16x64xf32> -> vector<8x16x64xf32>
    "tpu.trace_stop"() : () -> ()
    %55 = vector.shape_cast %54 : vector<8x16x64xf32> to vector<128x64xf32>
    %c256 = arith.constant 256 : index
    %c0_22 = arith.constant 0 : index
    %56 = vector.load %arg2[%c256, %c0_22] : memref<448x64xf32, #tpu.memory_space<vmem>>, vector<64x64xf32>
    %57 = arith.truncf %55 : vector<128x64xf32> to vector<128x64xbf16>
    %58 = arith.truncf %56 : vector<64x64xf32> to vector<64x64xbf16>
    %cst_23 = arith.constant dense<0.000000e+00> : vector<128x64xf32>
    %59 = tpu.matmul %57, %58, %cst_23 {dimension_numbers = #tpu.dot_dimension_numbers<[1], [0], [0], [1], [0, 0, 1, 1], [], []>} : vector<128x64xbf16>, vector<64x64xbf16>, vector<128x64xf32> -> vector<128x64xf32>
    %c32 = arith.constant 32 : index
    %c0_24 = arith.constant 0 : index
    %60 = vector.load %arg4[%c32, %c0_24] : memref<96x64xf32, #tpu.memory_space<vmem>>, vector<1x64xf32>
    %61 = vector.broadcast %60 : vector<1x64xf32> to vector<128x64xf32>
    %62 = arith.addf %59, %61 : vector<128x64xf32>
    %63 = arith.addf %10, %62 : vector<128x64xf32>
    %c40 = arith.constant 40 : index
    %c0_25 = arith.constant 0 : index
    %64 = vector.load %arg4[%c40, %c0_25] : memref<96x64xf32, #tpu.memory_space<vmem>>, vector<1x64xf32>
    %c48 = arith.constant 48 : index
    %c0_26 = arith.constant 0 : index
    %65 = vector.load %arg4[%c48, %c0_26] : memref<96x64xf32, #tpu.memory_space<vmem>>, vector<1x64xf32>
    %cst_27 = arith.constant dense<0.000000e+00> : vector<128xf32>
    %66 = vector.multi_reduction <add>, %63, %cst_27 [1] : vector<128x64xf32> to vector<128xf32>
    %67 = vector.shape_cast %66 : vector<128xf32> to vector<128x1xf32>
    %cst_28 = arith.constant 6.400000e+01 : f32
    %68 = vector.broadcast %cst_28 : f32 to vector<128x1xf32>
    %69 = arith.divf %67, %68 : vector<128x1xf32>
    %70 = vector.broadcast %69 : vector<128x1xf32> to vector<128x64xf32>
    %71 = arith.subf %63, %70 : vector<128x64xf32>
    %72 = arith.mulf %71, %71 : vector<128x64xf32>
    %cst_29 = arith.constant dense<0.000000e+00> : vector<128xf32>
    %73 = vector.multi_reduction <add>, %72, %cst_29 [1] : vector<128x64xf32> to vector<128xf32>
    %74 = vector.shape_cast %73 : vector<128xf32> to vector<128x1xf32>
    %cst_30 = arith.constant 6.400000e+01 : f32
    %75 = vector.broadcast %cst_30 : f32 to vector<128x1xf32>
    %76 = arith.divf %74, %75 : vector<128x1xf32>
    %77 = vector.broadcast %69 : vector<128x1xf32> to vector<128x64xf32>
    %78 = arith.subf %63, %77 : vector<128x64xf32>
    %cst_31 = arith.constant 9.99999974E-6 : f32
    %79 = vector.broadcast %cst_31 : f32 to vector<128x1xf32>
    %80 = arith.addf %76, %79 : vector<128x1xf32>
    %81 = math.rsqrt %80 : vector<128x1xf32>
    %82 = vector.broadcast %81 : vector<128x1xf32> to vector<128x64xf32>
    %83 = arith.mulf %78, %82 : vector<128x64xf32>
    %84 = vector.broadcast %64 : vector<1x64xf32> to vector<128x64xf32>
    %85 = arith.mulf %83, %84 : vector<128x64xf32>
    %86 = vector.broadcast %65 : vector<1x64xf32> to vector<128x64xf32>
    %87 = arith.addf %85, %86 : vector<128x64xf32>
    %c0_32 = arith.constant 0 : index
    %c0_33 = arith.constant 0 : index
    %88 = vector.load %arg3[%c0_32, %c0_33] : memref<256x128xf32, #tpu.memory_space<vmem>>, vector<64x128xf32>
    %89 = arith.truncf %87 : vector<128x64xf32> to vector<128x64xbf16>
    %90 = arith.truncf %88 : vector<64x128xf32> to vector<64x128xbf16>
    %cst_34 = arith.constant dense<0.000000e+00> : vector<128x128xf32>
    %91 = tpu.matmul %89, %90, %cst_34 {dimension_numbers = #tpu.dot_dimension_numbers<[1], [0], [0], [1], [0, 0, 1, 1], [], []>} : vector<128x64xbf16>, vector<64x128xbf16>, vector<128x128xf32> -> vector<128x128xf32>
    %c0_35 = arith.constant 0 : index
    %c0_36 = arith.constant 0 : index
    %92 = vector.load %arg5[%c0_35, %c0_36] : memref<24x128xf32, #tpu.memory_space<vmem>>, vector<1x128xf32>
    %93 = vector.broadcast %92 : vector<1x128xf32> to vector<128x128xf32>
    %94 = arith.addf %91, %93 : vector<128x128xf32>
    %cst_37 = arith.constant 0.000000e+00 : f32
    %95 = vector.broadcast %cst_37 : f32 to vector<128x128xf32>
    %96 = arith.maximumf %94, %95 : vector<128x128xf32>
    %c320 = arith.constant 320 : index
    %c0_38 = arith.constant 0 : index
    %97 = vector.load %arg2[%c320, %c0_38] : memref<448x64xf32, #tpu.memory_space<vmem>>, vector<128x64xf32>
    %98 = arith.truncf %96 : vector<128x128xf32> to vector<128x128xbf16>
    %99 = arith.truncf %97 : vector<128x64xf32> to vector<128x64xbf16>
    %cst_39 = arith.constant dense<0.000000e+00> : vector<128x64xf32>
    %100 = tpu.matmul %98, %99, %cst_39 {dimension_numbers = #tpu.dot_dimension_numbers<[1], [0], [0], [1], [0, 0, 1, 1], [], []>} : vector<128x128xbf16>, vector<128x64xbf16>, vector<128x64xf32> -> vector<128x64xf32>
    %c56 = arith.constant 56 : index
    %c0_40 = arith.constant 0 : index
    %101 = vector.load %arg4[%c56, %c0_40] : memref<96x64xf32, #tpu.memory_space<vmem>>, vector<1x64xf32>
    %102 = vector.broadcast %101 : vector<1x64xf32> to vector<128x64xf32>
    %103 = arith.addf %100, %102 : vector<128x64xf32>
    %104 = arith.addf %87, %103 : vector<128x64xf32>
    %c64_41 = arith.constant 64 : index
    %c0_42 = arith.constant 0 : index
    %105 = vector.load %arg4[%c64_41, %c0_42] : memref<96x64xf32, #tpu.memory_space<vmem>>, vector<1x64xf32>
    %c72 = arith.constant 72 : index
    %c0_43 = arith.constant 0 : index
    %106 = vector.load %arg4[%c72, %c0_43] : memref<96x64xf32, #tpu.memory_space<vmem>>, vector<1x64xf32>
    %cst_44 = arith.constant dense<0.000000e+00> : vector<128xf32>
    %107 = vector.multi_reduction <add>, %104, %cst_44 [1] : vector<128x64xf32> to vector<128xf32>
    %108 = vector.shape_cast %107 : vector<128xf32> to vector<128x1xf32>
    %cst_45 = arith.constant 6.400000e+01 : f32
    %109 = vector.broadcast %cst_45 : f32 to vector<128x1xf32>
    %110 = arith.divf %108, %109 : vector<128x1xf32>
    %111 = vector.broadcast %110 : vector<128x1xf32> to vector<128x64xf32>
    %112 = arith.subf %104, %111 : vector<128x64xf32>
    %113 = arith.mulf %112, %112 : vector<128x64xf32>
    %cst_46 = arith.constant dense<0.000000e+00> : vector<128xf32>
    %114 = vector.multi_reduction <add>, %113, %cst_46 [1] : vector<128x64xf32> to vector<128xf32>
    %115 = vector.shape_cast %114 : vector<128xf32> to vector<128x1xf32>
    %cst_47 = arith.constant 6.400000e+01 : f32
    %116 = vector.broadcast %cst_47 : f32 to vector<128x1xf32>
    %117 = arith.divf %115, %116 : vector<128x1xf32>
    %118 = vector.broadcast %110 : vector<128x1xf32> to vector<128x64xf32>
    %119 = arith.subf %104, %118 : vector<128x64xf32>
    %cst_48 = arith.constant 9.99999974E-6 : f32
    %120 = vector.broadcast %cst_48 : f32 to vector<128x1xf32>
    %121 = arith.addf %117, %120 : vector<128x1xf32>
    %122 = math.rsqrt %121 : vector<128x1xf32>
    %123 = vector.broadcast %122 : vector<128x1xf32> to vector<128x64xf32>
    %124 = arith.mulf %119, %123 : vector<128x64xf32>
    %125 = vector.broadcast %105 : vector<1x64xf32> to vector<128x64xf32>
    %126 = arith.mulf %124, %125 : vector<128x64xf32>
    %127 = vector.broadcast %106 : vector<1x64xf32> to vector<128x64xf32>
    %128 = arith.addf %126, %127 : vector<128x64xf32>
    %c80 = arith.constant 80 : index
    %c0_49 = arith.constant 0 : index
    %129 = vector.load %arg4[%c80, %c0_49] : memref<96x64xf32, #tpu.memory_space<vmem>>, vector<1x64xf32>
    %c88 = arith.constant 88 : index
    %c0_50 = arith.constant 0 : index
    %130 = vector.load %arg4[%c88, %c0_50] : memref<96x64xf32, #tpu.memory_space<vmem>>, vector<1x64xf32>
    %cst_51 = arith.constant dense<0.000000e+00> : vector<128xf32>
    %131 = vector.multi_reduction <add>, %128, %cst_51 [1] : vector<128x64xf32> to vector<128xf32>
    %132 = vector.shape_cast %131 : vector<128xf32> to vector<128x1xf32>
    %cst_52 = arith.constant 6.400000e+01 : f32
    %133 = vector.broadcast %cst_52 : f32 to vector<128x1xf32>
    %134 = arith.divf %132, %133 : vector<128x1xf32>
    %135 = vector.broadcast %134 : vector<128x1xf32> to vector<128x64xf32>
    %136 = arith.subf %128, %135 : vector<128x64xf32>
    %137 = arith.mulf %136, %136 : vector<128x64xf32>
    %cst_53 = arith.constant dense<0.000000e+00> : vector<128xf32>
    %138 = vector.multi_reduction <add>, %137, %cst_53 [1] : vector<128x64xf32> to vector<128xf32>
    %139 = vector.shape_cast %138 : vector<128xf32> to vector<128x1xf32>
    %cst_54 = arith.constant 6.400000e+01 : f32
    %140 = vector.broadcast %cst_54 : f32 to vector<128x1xf32>
    %141 = arith.divf %139, %140 : vector<128x1xf32>
    %142 = vector.broadcast %134 : vector<128x1xf32> to vector<128x64xf32>
    %143 = arith.subf %128, %142 : vector<128x64xf32>
    %cst_55 = arith.constant 9.99999974E-6 : f32
    %144 = vector.broadcast %cst_55 : f32 to vector<128x1xf32>
    %145 = arith.addf %141, %144 : vector<128x1xf32>
    %146 = math.rsqrt %145 : vector<128x1xf32>
    %147 = vector.broadcast %146 : vector<128x1xf32> to vector<128x64xf32>
    %148 = arith.mulf %143, %147 : vector<128x64xf32>
    %149 = vector.broadcast %129 : vector<1x64xf32> to vector<128x64xf32>
    %150 = arith.mulf %148, %149 : vector<128x64xf32>
    %151 = vector.broadcast %130 : vector<1x64xf32> to vector<128x64xf32>
    %152 = arith.addf %150, %151 : vector<128x64xf32>
    %153 = vector.shape_cast %152 : vector<128x64xf32> to vector<8x16x64xf32>
    %cst_56 = arith.constant dense<0xFF800000> : vector<8x64xf32>
    %154 = vector.multi_reduction <maximumf>, %153, %cst_56 [1] : vector<8x16x64xf32> to vector<8x64xf32>
    %cst_57 = arith.constant 0.000000e+00 : f32
    %155 = vector.broadcast %cst_57 : f32 to vector<8x64xf32>
    %156 = arith.maximumf %154, %155 : vector<8x64xf32>
    %c64_58 = arith.constant 64 : index
    %c0_59 = arith.constant 0 : index
    %157 = vector.load %arg3[%c64_58, %c0_59] : memref<256x128xf32, #tpu.memory_space<vmem>>, vector<64x128xf32>
    %158 = arith.truncf %156 : vector<8x64xf32> to vector<8x64xbf16>
    %159 = arith.truncf %157 : vector<64x128xf32> to vector<64x128xbf16>
    %cst_60 = arith.constant dense<0.000000e+00> : vector<8x128xf32>
    %160 = tpu.matmul %158, %159, %cst_60 {dimension_numbers = #tpu.dot_dimension_numbers<[1], [0], [0], [1], [0, 0, 1, 1], [], []>} : vector<8x64xbf16>, vector<64x128xbf16>, vector<8x128xf32> -> vector<8x128xf32>
    %c8_61 = arith.constant 8 : index
    %c0_62 = arith.constant 0 : index
    %161 = vector.load %arg5[%c8_61, %c0_62] : memref<24x128xf32, #tpu.memory_space<vmem>>, vector<1x128xf32>
    %162 = vector.broadcast %161 : vector<1x128xf32> to vector<8x128xf32>
    %163 = arith.addf %160, %162 : vector<8x128xf32>
    %c128_63 = arith.constant 128 : index
    %c0_64 = arith.constant 0 : index
    %164 = vector.load %arg3[%c128_63, %c0_64] : memref<256x128xf32, #tpu.memory_space<vmem>>, vector<128x128xf32>
    %165 = arith.truncf %163 : vector<8x128xf32> to vector<8x128xbf16>
    %166 = arith.truncf %164 : vector<128x128xf32> to vector<128x128xbf16>
    %cst_65 = arith.constant dense<0.000000e+00> : vector<8x128xf32>
    %167 = tpu.matmul %165, %166, %cst_65 {dimension_numbers = #tpu.dot_dimension_numbers<[1], [0], [0], [1], [0, 0, 1, 1], [], []>} : vector<8x128xbf16>, vector<128x128xbf16>, vector<8x128xf32> -> vector<8x128xf32>
    %c16_66 = arith.constant 16 : index
    %c0_67 = arith.constant 0 : index
    %168 = vector.load %arg5[%c16_66, %c0_67] : memref<24x128xf32, #tpu.memory_space<vmem>>, vector<1x128xf32>
    %169 = vector.broadcast %168 : vector<1x128xf32> to vector<8x128xf32>
    %170 = arith.addf %167, %169 : vector<8x128xf32>
    %c0_68 = arith.constant 0 : index
    %c0_69 = arith.constant 0 : index
    %171 = vector.load %arg6[%c0_68, %c0_69] : memref<8x128xf32, #tpu.memory_space<vmem>>, vector<8x128xf32>
    tpu.vector_store %arg6[%c0_68, %c0_69], %170 {strides = array<i32>} : memref<8x128xf32, #tpu.memory_space<vmem>>, vector<8x128xf32>,
    return
  }
  func.func @transform_0(%arg0: i32) -> (i32, i32, i32) {
    %c0_i32 = arith.constant 0 : i32
    %c0_i32_0 = arith.constant 0 : i32
    %c0_i32_1 = arith.constant 0 : i32
    return %arg0, %c0_i32, %c0_i32_0 : i32, i32, i32
  }
  func.func @transform_1(%arg0: i32) -> (i32, i32) {
    %c0_i32 = arith.constant 0 : i32
    %c0_i32_0 = arith.constant 0 : i32
    %c0_i32_1 = arith.constant 0 : i32
    return %c0_i32, %c0_i32_0 : i32, i32
  }
  func.func @transform_2(%arg0: i32) -> (i32, i32) {
    %c0_i32 = arith.constant 0 : i32
    %c0_i32_0 = arith.constant 0 : i32
    %c0_i32_1 = arith.constant 0 : i32
    return %c0_i32, %c0_i32_0 : i32, i32
  }
  func.func @transform_3(%arg0: i32) -> (i32, i32) {
    %c0_i32 = arith.constant 0 : i32
    %c0_i32_0 = arith.constant 0 : i32
    %c0_i32_1 = arith.constant 0 : i32
    return %c0_i32, %c0_i32_0 : i32, i32
  }
  func.func @transform_4(%arg0: i32) -> (i32, i32) {
    %c0_i32 = arith.constant 0 : i32
    %c0_i32_0 = arith.constant 0 : i32
    %c0_i32_1 = arith.constant 0 : i32
    return %c0_i32, %c0_i32_0 : i32, i32
  }
  func.func @transform_5(%arg0: i32) -> (i32, i32) {
    %c0_i32 = arith.constant 0 : i32
    %c0_i32_0 = arith.constant 0 : i32
    return %arg0, %c0_i32 : i32, i32
  }
}

</mosaic_0001>

<llo_original>
// kernel: tfm_model.1
$region0: #{tfm_model.1}
  #allocation0 [shape = 'u32[]', space=smem, size = 0x4, offset = 0x4, fixed_abs, tag = 'smem constant byte address 0x4 - core index']
  #allocation1 [shape = 'u32[72,128]{1,0:T(1,128)}', space=vmem, size = 0x9000, scoped, tag = 'internal scratch']
  %s0 = inlined_call_operand.vmem [shape: f32[16,16,64], index: 0, kind: input, shape index: {}]
  %s1 = inlined_call_operand.vmem [shape: f32[448,64], index: 1, kind: input, shape index: {}]
  %s2 = inlined_call_operand.vmem [shape: f32[256,128], index: 2, kind: input, shape index: {}]
  %s3 = inlined_call_operand.vmem [shape: f32[96,64], index: 3, kind: input, shape index: {}]
  %s4 = inlined_call_operand.vmem [shape: f32[24,128], index: 4, kind: input, shape index: {}]
  %s5 = inlined_call_operand.vmem [shape: f32[16,128], index: 5, kind: output, shape index: {}]
  %s6 = sld [smem:[#allocation0]]
  $region53: #{tfm_model.1} parent=0
    _
  %s8 = ssub.s32 1, %s6
  %s9 = scalar_select 0, %s8, %s6
  loop: start=0, step=1, limit=4
  $region2: #{tfm_model.1} parent=0 // loop_pre_header
    _
  $region3: #{tfm_model.1} parent=0 // loop_header
    %s11 = sphi 0, %s15
    %p12 = scmp.ge.s32.totalorder %s11, 4
    %s21 = sphi 0, %s23
    %s24 = sphi 0, %s21
    %s25 = sphi 0, %s24
    %s41 = sphi 0, %s25
    %s45 = sphi 0, %s45
    %s47 = sphi 0, %s45
    %s48 = sphi 0, %s47
    %s62 = sphi 0, %s48
    %s66 = sphi 0, %s66
    %s68 = sphi 0, %s66
    %s69 = sphi 0, %s68
    %s83 = sphi 0, %s69
    %s87 = sphi 0, %s87
    %s89 = sphi 0, %s87
    %s90 = sphi 0, %s89
    %s104 = sphi 0, %s90
    %s108 = sphi 0, %s108
    %s110 = sphi 0, %s108
    %s111 = sphi 0, %s110
    %s125 = sphi 0, %s111
    %s131 = sphi 0, %s133
    %s134 = sphi 0, %s131
    %s135 = sphi 0, %s134
    %s151 = sphi 0, %s135
  $region4: #{tfm_model.1} parent=0 // loop_header_branch
    %14 = sbr.rel (%p12) target = $region8
  $region5: #{tfm_model.1} parent=0 // loop_body
    %s16 = ssub.s32 %s11, 1
    %s17 = ssub.s32 %s11, 2
    %s18 = sadd.s32 %s11, 1
    %s19 = ssub.s32 %s11, %s18
    %p20 = scmp.eq.s32.totalorder %s19, 0
    %s22 = sadd.s32 %s21, 1
    %s23 = scalar_select %p20, %s21, %s22
    %p26 = pneg %p20
    %p27 = scmp.eq.s32.totalorder %s11, 1
    %p28 = por %p26, %p27
    %p29 = scmp.ne.s32.totalorder %s21, %s24
    %p30 = scmp.eq.s32.totalorder %s11, 0
    %p31 = por %p29, %p30
    %p32 = scmp.ne.s32.totalorder %s21, %s24
    %p33 = scmp.eq.s32.totalorder %s16, 1
    %p34 = por %p32, %p33
    %p35 = scmp.ne.s32.totalorder %s24, %s25
    %p36 = scmp.eq.s32.totalorder %s16, 0
    %p37 = por %p35, %p36
    %p38 = scmp.ne.s32.totalorder %s24, %s25
    %p39 = scmp.eq.s32.totalorder %s17, 1
    %p40 = por %p38, %p39
    %p42 = scmp.ne.s32.totalorder %s25, %s41
    %p43 = scmp.eq.s32.totalorder %s17, 0
    %p44 = por %p42, %p43
    %s46 = sadd.s32 %s45, 1
    %p49 = scmp.eq.s32.totalorder %s11, 1
    %p50 = scmp.ne.s32.totalorder %s45, %s47
    %p51 = scmp.eq.s32.totalorder %s11, 0
    %p52 = por %p50, %p51
    %p53 = scmp.ne.s32.totalorder %s45, %s47
    %p54 = scmp.eq.s32.totalorder %s16, 1
    %p55 = por %p53, %p54
    %p56 = scmp.ne.s32.totalorder %s47, %s48
    %p57 = scmp.eq.s32.totalorder %s16, 0
    %p58 = por %p56, %p57
    %p59 = scmp.ne.s32.totalorder %s47, %s48
    %p60 = scmp.eq.s32.totalorder %s17, 1
    %p61 = por %p59, %p60
    %p63 = scmp.ne.s32.totalorder %s48, %s62
    %p64 = scmp.eq.s32.totalorder %s17, 0
    %p65 = por %p63, %p64
    %s67 = sadd.s32 %s66, 1
    %p70 = scmp.eq.s32.totalorder %s11, 1
    %p71 = scmp.ne.s32.totalorder %s66, %s68
    %p72 = scmp.eq.s32.totalorder %s11, 0
    %p73 = por %p71, %p72
    %p74 = scmp.ne.s32.totalorder %s66, %s68
    %p75 = scmp.eq.s32.totalorder %s16, 1
    %p76 = por %p74, %p75
    %p77 = scmp.ne.s32.totalorder %s68, %s69
    %p78 = scmp.eq.s32.totalorder %s16, 0
    %p79 = por %p77, %p78
    %p80 = scmp.ne.s32.totalorder %s68, %s69
    %p81 = scmp.eq.s32.totalorder %s17, 1
    %p82 = por %p80, %p81
    %p84 = scmp.ne.s32.totalorder %s69, %s83
    %p85 = scmp.eq.s32.totalorder %s17, 0
    %p86 = por %p84, %p85
    %s88 = sadd.s32 %s87, 1
    %p91 = scmp.eq.s32.totalorder %s11, 1
    %p92 = scmp.ne.s32.totalorder %s87, %s89
    %p93 = scmp.eq.s32.totalorder %s11, 0
    %p94 = por %p92, %p93
    %p95 = scmp.ne.s32.totalorder %s87, %s89
    %p96 = scmp.eq.s32.totalorder %s16, 1
    %p97 = por %p95, %p96
    %p98 = scmp.ne.s32.totalorder %s89, %s90
    %p99 = scmp.eq.s32.totalorder %s16, 0
    %p100 = por %p98, %p99
    %p101 = scmp.ne.s32.totalorder %s89, %s90
    %p102 = scmp.eq.s32.totalorder %s17, 1
    %p103 = por %p101, %p102
    %p105 = scmp.ne.s32.totalorder %s90, %s104
    %p106 = scmp.eq.s32.totalorder %s17, 0
    %p107 = por %p105, %p106
    %s109 = sadd.s32 %s108, 1
    %p112 = scmp.eq.s32.totalorder %s11, 1
    %p113 = scmp.ne.s32.totalorder %s108, %s110
    %p114 = scmp.eq.s32.totalorder %s11, 0
    %p115 = por %p113, %p114
    %p116 = scmp.ne.s32.totalorder %s108, %s110
    %p117 = scmp.eq.s32.totalorder %s16, 1
    %p118 = por %p116, %p117
    %p119 = scmp.ne.s32.totalorder %s110, %s111
    %p120 = scmp.eq.s32.totalorder %s16, 0
    %p121 = por %p119, %p120
    %p122 = scmp.ne.s32.totalorder %s110, %s111
    %p123 = scmp.eq.s32.totalorder %s17, 1
    %p124 = por %p122, %p123
    %p126 = scmp.ne.s32.totalorder %s111, %s125
    %p127 = scmp.eq.s32.totalorder %s17, 0
    %p128 = por %p126, %p127
    %s129 = ssub.s32 %s11, %s18
    %p130 = scmp.eq.s32.totalorder %s129, 0
    %s132 = sadd.s32 %s131, 1
    %s133 = scalar_select %p130, %s131, %s132
    %p136 = pneg %p130
    %p137 = scmp.eq.s32.totalorder %s11, 1
    %p138 = por %p136, %p137
    %p139 = scmp.ne.s32.totalorder %s131, %s134
    %p140 = scmp.eq.s32.totalorder %s11, 0
    %p141 = por %p139, %p140
    %p142 = scmp.ne.s32.totalorder %s131, %s134
    %p143 = scmp.eq.s32.totalorder %s16, 1
    %p144 = por %p142, %p143
    %p145 = scmp.ne.s32.totalorder %s134, %s135
    %p146 = scmp.eq.s32.totalorder %s16, 0
    %p147 = por %p145, %p146
    %p148 = scmp.ne.s32.totalorder %s134, %s135
    %p149 = scmp.eq.s32.totalorder %s17, 1
    %p150 = por %p148, %p149
    %p152 = scmp.ne.s32.totalorder %s135, %s151
    %p153 = scmp.eq.s32.totalorder %s17, 0
    %p154 = por %p152, %p153
    %p155 = scmp.le.s32.totalorder 1, %s11
    %p156 = scmp.lt.s32.totalorder %s11, 3
    %p157 = pnand %p155, %p156
    %p158 = pneg %p157
    // Predicated region
    $region9: #{tfm_model.1} parent=5 // pred_check
      _
    $region10: #{tfm_model.1} parent=5 // pred_check_branch
      %160 = sbr.rel (%p157) target = $region12
    $region11: #{tfm_model.1} parent=5 // pred_region
      %s161 = ssub.s32 %s11, 1
      // Predicated region
      $region13: #{tfm_model.1} parent=11 // pred_check
        %p162 = pneg %p58
      $region14: #{tfm_model.1} parent=11 // pred_check_branch
        %164 = sbr.rel (%p162) target = $region16
      $region15: #{tfm_model.1} parent=11 // pred_region
        _
      $region16: #{tfm_model.1} parent=11 // pred_fallthru
        _
      // Predicated region
      $region17: #{tfm_model.1} parent=11 // pred_check
        %p165 = pneg %p79
      $region18: #{tfm_model.1} parent=11 // pred_check_branch
        %167 = sbr.rel (%p165) target = $region20
      $region19: #{tfm_model.1} parent=11 // pred_region
        _
      $region20: #{tfm_model.1} parent=11 // pred_fallthru
        _
      // Predicated region
      $region21: #{tfm_model.1} parent=11 // pred_check
        %p168 = pneg %p100
      $region22: #{tfm_model.1} parent=11 // pred_check_branch
        %170 = sbr.rel (%p168) target = $region24
      $region23: #{tfm_model.1} parent=11 // pred_region
        _
      $region24: #{tfm_model.1} parent=11 // pred_fallthru
        _
      // Predicated region
      $region25: #{tfm_model.1} parent=11 // pred_check
        %p171 = pneg %p121
      $region26: #{tfm_model.1} parent=11 // pred_check_branch
        %173 = sbr.rel (%p171) target = $region28
      $region27: #{tfm_model.1} parent=11 // pred_region
        _
      $region28: #{tfm_model.1} parent=11 // pred_fallthru
        _
    $region12: #{tfm_model.1} parent=5 // pred_fallthru
      _
    %p174 = scmp.lt.s32.totalorder %s11, 2
    // Predicated region
    $region29: #{tfm_model.1} parent=5 // pred_check
      %p175 = pneg %p174
    $region30: #{tfm_model.1} parent=5 // pred_check_branch
      %177 = sbr.rel (%p175) target = $region32
    $region31: #{tfm_model.1} parent=5 // pred_region
      // Predicated region
      $region33: #{tfm_model.1} parent=31 // pred_check
        %p178 = pneg %p31
      $region34: #{tfm_model.1} parent=31 // pred_check_branch
        %180 = sbr.rel (%p178) target = $region36
      $region35: #{tfm_model.1} parent=31 // pred_region
        %s181 = smul.u32 8, %s11
        %p182 = scmp.lt.s32.totalorder %s181, 15
        %s183 = scalar_select %p182, %s181, 15
        %s184 = smul.addr %s183, 2
        %s185 = smul.addr %s184, 8
        %s186 = scalar_lea.vmem %s0, %s185
        %s187 = smul.u32 8, %s11
      $region36: #{tfm_model.1} parent=31 // pred_fallthru
        _
    $region32: #{tfm_model.1} parent=5 // pred_fallthru
      _
    %p188 = scmp.le.s32.totalorder 1, %s11
    %p189 = scmp.lt.s32.totalorder %s11, 3
    %p190 = pnand %p188, %p189
    %p191 = pneg %p190
    // Predicated region
    $region37: #{tfm_model.1} parent=5 // pred_check
      _
    $region38: #{tfm_model.1} parent=5 // pred_check_branch
      %193 = sbr.rel (%p190) target = $region40
    $region39: #{tfm_model.1} parent=5 // pred_region
      %s194 = ssub.s32 %s11, 1
      %s195 = smul.u32 8, %s16
      %p196 = scmp.lt.s32.totalorder %s195, 15
      %s197 = scalar_select %p196, %s195, 15
      %s198 = smul.addr %s197, 2
      %s199 = smul.addr %s198, 8
      %s200 = scalar_lea.vmem %s0, %s199
      %p201 = pneg %p37
      %p202 = pneg %p34
      %p203 = pneg %p58
      %p204 = pneg %p55
      %p205 = pneg %p79
      %p206 = pneg %p76
      %p207 = pneg %p100
      %p208 = pneg %p97
      %p209 = pneg %p121
      %p210 = pneg %p118
      %p211 = pneg %p147
      %p212 = pneg %p144
      %p213 = scmp.lt.s32.totalorder %s16, 1
      %s214 = scalar_select %p213, %s16, 1
      %s215 = smul.addr %s214, 8
      %s216 = scalar_lea.vmem %s5, %s215
      %s217 = smul.u32 8, %s16
      %p218 = scmp.lt.s32.totalorder %s217, 15
      %s219 = scalar_select %p218, %s217, 15
      %s220 = smul.addr %s219, 2
      %s221 = smul.addr %s220, 8
      %s222 = scalar_lea.vmem %s0, %s221
      %s223 = smul.u32 8, %s16
      %p224 = scmp.lt.s32.totalorder %s16, 1
      %s225 = scalar_select %p224, %s16, 1
      %s226 = smul.addr %s225, 8
      %s227 = scalar_lea.vmem %s5, %s226
      %v229 = vld [vmem:[%s222] sm:$0xff]
      %v230 = vld [vmem:[%s222 + $0x8] sm:$0xff]
      %v231 = vld [vmem:[%s222 + $0x10] sm:$0xff]
      %v232 = vld [vmem:[%s222 + $0x18] sm:$0xff]
      %v233 = vld [vmem:[%s222 + $0x20] sm:$0xff]
      %v234 = vld [vmem:[%s222 + $0x28] sm:$0xff]
      %v235 = vld [vmem:[%s222 + $0x30] sm:$0xff]
      %v236 = vld [vmem:[%s222 + $0x38] sm:$0xff]
      %v237 = vld [vmem:[%s222 + $0x40] sm:$0xff]
      %v238 = vld [vmem:[%s222 + $0x48] sm:$0xff]
      %v239 = vld [vmem:[%s222 + $0x50] sm:$0xff]
      %v240 = vld [vmem:[%s222 + $0x58] sm:$0xff]
      %v241 = vld [vmem:[%s222 + $0x60] sm:$0xff]
      %v242 = vld [vmem:[%s222 + $0x68] sm:$0xff]
      %v243 = vld [vmem:[%s222 + $0x70] sm:$0xff]
      %v244 = vld [vmem:[%s222 + $0x78] sm:$0xff]
      %v245 = vld [vmem:[%s1] sm:$0xff]
      %v246 = vld [vmem:[%s1 + $0x8] sm:$0xff]
      %v247 = vld [vmem:[%s1 + $0x10] sm:$0xff]
      %v248 = vld [vmem:[%s1 + $0x18] sm:$0xff]
      %v249 = vld [vmem:[%s1 + $0x20] sm:$0xff]
      %v250 = vld [vmem:[%s1 + $0x28] sm:$0xff]
      %v251 = vld [vmem:[%s1 + $0x30] sm:$0xff]
      %v252 = vld [vmem:[%s1 + $0x38] sm:$0xff]
      %v253 = vpack.c.bf16 %v230, %v229
      %v254 = vpack.c.bf16 %v232, %v231
      %v255 = vpack.c.bf16 %v234, %v233
      %v256 = vpack.c.bf16 %v236, %v235
      %v257 = vpack.c.bf16 %v238, %v237
      %v258 = vpack.c.bf16 %v240, %v239
      %v259 = vpack.c.bf16 %v242, %v241
      %v260 = vpack.c.bf16 %v244, %v243
      %v261 = vpack.c.bf16 %v246, %v245
      %v262 = vpack.c.bf16 %v248, %v247
      %v263 = vpack.c.bf16 %v250, %v249
      %v264 = vpack.c.bf16 %v252, %v251
      %v265 = vld [vmem:[%s3] sm:$0x1]
      %v266 = vperm.slane %v265, 0
      %vm267 = vcmask 523264
      %v269 = vsel %vm267, %v253, 0
      %v272 = vsel %vm267, %v254, 0
      %v275 = vsel %vm267, %v255, 0
      %v278 = vsel %vm267, %v256, 0
      %v281 = vsel %vm267, %v257, 0
      %v284 = vsel %vm267, %v258, 0
      %v287 = vsel %vm267, %v259, 0
      %v290 = vsel %vm267, %v260, 0
      %292 = vmatpush.bf16.msra.mxu0 0
      %293 = vmatpush.bf16.msra.mxu0 0
      %294 = vmatpush.bf16.msra.mxu0 0
      %295 = vmatpush.bf16.msra.mxu0 0
      %296 = vmatpush.bf16.msra.mxu0 %v264
      %297 = vmatpush.bf16.msra.mxu0 %v263
      %298 = vmatpush.bf16.msra.mxu0 %v262
      %299 = vmatpush.bf16.msra.mxu0 %v261
      %300 = vmatmul.bf16.gmra.mxu0 %v269
      %v301 = vpop.f32.mrf.mxu0
      %v302 = vadd.f32 %v266, %v301
      %v303 = vpop.f32.mrf.mxu0
      %v304 = vadd.f32 %v266, %v303
      %305 = vmatmul.bf16.gmra.mxu0 %v272
      %v306 = vpop.f32.mrf.mxu0
      %v307 = vadd.f32 %v266, %v306
      %v308 = vpop.f32.mrf.mxu0
      %v309 = vadd.f32 %v266, %v308
      %310 = vmatmul.bf16.gmra.mxu0 %v275
      %v311 = vpop.f32.mrf.mxu0
      %v312 = vadd.f32 %v266, %v311
      %v313 = vpop.f32.mrf.mxu0
      %v314 = vadd.f32 %v266, %v313
      %315 = vmatmul.bf16.gmra.mxu0 %v278
      %v316 = vpop.f32.mrf.mxu0
      %v317 = vadd.f32 %v266, %v316
      %v318 = vpop.f32.mrf.mxu0
      %v319 = vadd.f32 %v266, %v318
      %320 = vmatmul.bf16.gmra.mxu0 %v281
      %v321 = vpop.f32.mrf.mxu0
      %v322 = vadd.f32 %v266, %v321
      %v323 = vpop.f32.mrf.mxu0
      %v324 = vadd.f32 %v266, %v323
      %325 = vmatmul.bf16.gmra.mxu0 %v284
      %v326 = vpop.f32.mrf.mxu0
      %v327 = vadd.f32 %v266, %v326
      %v328 = vpop.f32.mrf.mxu0
      %v329 = vadd.f32 %v266, %v328
      %330 = vmatmul.bf16.gmra.mxu0 %v287
      %v331 = vpop.f32.mrf.mxu0
      %v332 = vadd.f32 %v266, %v331
      %v333 = vpop.f32.mrf.mxu0
      %v334 = vadd.f32 %v266, %v333
      %335 = vmatmul.bf16.gmra.mxu0 %v290
      %v336 = vpop.f32.mrf.mxu0
      %v337 = vadd.f32 %v266, %v336
      %v338 = vpop.f32.mrf.mxu0
      %v339 = vadd.f32 %v266, %v338
      %340 = vdwg.mxu0
      %v341 = vmax.f32 %v302, 0.0
      %v342 = vmax.f32 %v304, 0.0
      %v343 = vmax.f32 %v307, 0.0
      %v344 = vmax.f32 %v309, 0.0
      %v345 = vmax.f32 %v312, 0.0
      %v346 = vmax.f32 %v314, 0.0
      %v347 = vmax.f32 %v317, 0.0
      %v348 = vmax.f32 %v319, 0.0
      %v349 = vmax.f32 %v322, 0.0
      %v350 = vmax.f32 %v324, 0.0
      %v351 = vmax.f32 %v327, 0.0
      %v352 = vmax.f32 %v329, 0.0
      %v353 = vmax.f32 %v332, 0.0
      %v354 = vmax.f32 %v334, 0.0
      %v355 = vmax.f32 %v337, 0.0
      %v356 = vmax.f32 %v339, 0.0
      %v357 = vld [vmem:[%s1 + $0x40] sm:$0xff]
      %v358 = vld [vmem:[%s1 + $0x48] sm:$0xff]
      %v359 = vld [vmem:[%s1 + $0x50] sm:$0xff]
      %v360 = vld [vmem:[%s1 + $0x58] sm:$0xff]
      %v361 = vld [vmem:[%s1 + $0x60] sm:$0xff]
      %v362 = vld [vmem:[%s1 + $0x68] sm:$0xff]
      %v363 = vld [vmem:[%s1 + $0x70] sm:$0xff]
      %v364 = vld [vmem:[%s1 + $0x78] sm:$0xff]
      %v365 = vpack.c.bf16 %v342, %v341
      %v366 = vpack.c.bf16 %v344, %v343
      %v367 = vpack.c.bf16 %v346, %v345
      %v368 = vpack.c.bf16 %v348, %v347
      %v369 = vpack.c.bf16 %v350, %v349
      %v370 = vpack.c.bf16 %v352, %v351
      %v371 = vpack.c.bf16 %v354, %v353
      %v372 = vpack.c.bf16 %v356, %v355
      %v373 = vpack.c.bf16 %v358, %v357
      %v374 = vpack.c.bf16 %v360, %v359
      %v375 = vpack.c.bf16 %v362, %v361
      %v376 = vpack.c.bf16 %v364, %v363
      %v377 = vld [vmem:[%s3 + $0x8] sm:$0x1]
      %v378 = vperm.slane %v377, 0
      %v380 = vsel %vm267, %v365, 0
      %v383 = vsel %vm267, %v366, 0
      %v386 = vsel %vm267, %v367, 0
      %v389 = vsel %vm267, %v368, 0
      %v392 = vsel %vm267, %v369, 0
      %v395 = vsel %vm267, %v370, 0
      %v398 = vsel %vm267, %v371, 0
      %v401 = vsel %vm267, %v372, 0
      %403 = vmatpush.bf16.msra.mxu0 0
      %404 = vmatpush.bf16.msra.mxu0 0
      %405 = vmatpush.bf16.msra.mxu0 0
      %406 = vmatpush.bf16.msra.mxu0 0
      %407 = vmatpush.bf16.msra.mxu0 %v376
      %408 = vmatpush.bf16.msra.mxu0 %v375
      %409 = vmatpush.bf16.msra.mxu0 %v374
      %410 = vmatpush.bf16.msra.mxu0 %v373
      %411 = vmatmul.bf16.gmra.mxu0 %v380
      %v412 = vpop.f32.mrf.mxu0
      %v413 = vadd.f32 %v378, %v412
      %v414 = vpop.f32.mrf.mxu0
      %v415 = vadd.f32 %v378, %v414
      %416 = vmatmul.bf16.gmra.mxu0 %v383
      %v417 = vpop.f32.mrf.mxu0
      %v418 = vadd.f32 %v378, %v417
      %v419 = vpop.f32.mrf.mxu0
      %v420 = vadd.f32 %v378, %v419
      %421 = vmatmul.bf16.gmra.mxu0 %v386
      %v422 = vpop.f32.mrf.mxu0
      %v423 = vadd.f32 %v378, %v422
      %v424 = vpop.f32.mrf.mxu0
      %v425 = vadd.f32 %v378, %v424
      %426 = vmatmul.bf16.gmra.mxu0 %v389
      %v427 = vpop.f32.mrf.mxu0
      %v428 = vadd.f32 %v378, %v427
      %v429 = vpop.f32.mrf.mxu0
      %v430 = vadd.f32 %v378, %v429
      %431 = vmatmul.bf16.gmra.mxu0 %v392
      %v432 = vpop.f32.mrf.mxu0
      %v433 = vadd.f32 %v378, %v432
      %v434 = vpop.f32.mrf.mxu0
      %v435 = vadd.f32 %v378, %v434
      %436 = vmatmul.bf16.gmra.mxu0 %v395
      %v437 = vpop.f32.mrf.mxu0
      %v438 = vadd.f32 %v378, %v437
      %v439 = vpop.f32.mrf.mxu0
      %v440 = vadd.f32 %v378, %v439
      %441 = vmatmul.bf16.gmra.mxu0 %v398
      %v442 = vpop.f32.mrf.mxu0
      %v443 = vadd.f32 %v378, %v442
      %v444 = vpop.f32.mrf.mxu0
      %v445 = vadd.f32 %v378, %v444
      %446 = vmatmul.bf16.gmra.mxu0 %v401
      %v447 = vpop.f32.mrf.mxu0
      %v448 = vadd.f32 %v378, %v447
      %v449 = vpop.f32.mrf.mxu0
      %v450 = vadd.f32 %v378, %v449
      %451 = vdwg.mxu0
      %v452 = vld [vmem:[%s1 + $0x80] sm:$0xff]
      %v453 = vld [vmem:[%s1 + $0x88] sm:$0xff]
      %v454 = vld [vmem:[%s1 + $0x90] sm:$0xff]
      %v455 = vld [vmem:[%s1 + $0x98] sm:$0xff]
      %v456 = vld [vmem:[%s1 + $0xa0] sm:$0xff]
      %v457 = vld [vmem:[%s1 + $0xa8] sm:$0xff]
      %v458 = vld [vmem:[%s1 + $0xb0] sm:$0xff]
      %v459 = vld [vmem:[%s1 + $0xb8] sm:$0xff]
      %v460 = vpack.c.bf16 %v453, %v452
      %v461 = vpack.c.bf16 %v455, %v454
      %v462 = vpack.c.bf16 %v457, %v456
      %v463 = vpack.c.bf16 %v459, %v458
      %v464 = vld [vmem:[%s3 + $0x10] sm:$0x1]
      %v465 = vperm.slane %v464, 0
      %466 = vmatpush.bf16.msra.mxu0 0
      %467 = vmatpush.bf16.msra.mxu0 0
      %468 = vmatpush.bf16.msra.mxu0 0
      %469 = vmatpush.bf16.msra.mxu0 0
      %470 = vmatpush.bf16.msra.mxu0 %v463
      %471 = vmatpush.bf16.msra.mxu0 %v462
      %472 = vmatpush.bf16.msra.mxu0 %v461
      %473 = vmatpush.bf16.msra.mxu0 %v460
      %474 = vmatmul.bf16.gmra.mxu0 %v380
      %v475 = vpop.f32.mrf.mxu0
      %v476 = vadd.f32 %v465, %v475
      %v477 = vpop.f32.mrf.mxu0
      %v478 = vadd.f32 %v465, %v477
      %479 = vmatmul.bf16.gmra.mxu0 %v383
      %v480 = vpop.f32.mrf.mxu0
      %v481 = vadd.f32 %v465, %v480
      %v482 = vpop.f32.mrf.mxu0
      %v483 = vadd.f32 %v465, %v482
      %484 = vmatmul.bf16.gmra.mxu0 %v386
      %v485 = vpop.f32.mrf.mxu0
      %v486 = vadd.f32 %v465, %v485
      %v487 = vpop.f32.mrf.mxu0
      %v488 = vadd.f32 %v465, %v487
      %489 = vmatmul.bf16.gmra.mxu0 %v389
      %v490 = vpop.f32.mrf.mxu0
      %v491 = vadd.f32 %v465, %v490
      %v492 = vpop.f32.mrf.mxu0
      %v493 = vadd.f32 %v465, %v492
      %494 = vmatmul.bf16.gmra.mxu0 %v392
      %v495 = vpop.f32.mrf.mxu0
      %v496 = vadd.f32 %v465, %v495
      %v497 = vpop.f32.mrf.mxu0
      %v498 = vadd.f32 %v465, %v497
      %499 = vmatmul.bf16.gmra.mxu0 %v395
      %v500 = vpop.f32.mrf.mxu0
      %v501 = vadd.f32 %v465, %v500
      %v502 = vpop.f32.mrf.mxu0
      %v503 = vadd.f32 %v465, %v502
      %504 = vmatmul.bf16.gmra.mxu0 %v398
      %v505 = vpop.f32.mrf.mxu0
      %v506 = vadd.f32 %v465, %v505
      %v507 = vpop.f32.mrf.mxu0
      %v508 = vadd.f32 %v465, %v507
      %509 = vmatmul.bf16.gmra.mxu0 %v401
      %v510 = vpop.f32.mrf.mxu0
      %v511 = vadd.f32 %v465, %v510
      %v512 = vpop.f32.mrf.mxu0
      %v513 = vadd.f32 %v465, %v512
      %514 = vdwg.mxu0
      %v515 = vld [vmem:[%s1 + $0xc0] sm:$0xff]
      %v516 = vld [vmem:[%s1 + $0xc8] sm:$0xff]
      %v517 = vld [vmem:[%s1 + $0xd0] sm:$0xff]
      %v518 = vld [vmem:[%s1 + $0xd8] sm:$0xff]
      %v519 = vld [vmem:[%s1 + $0xe0] sm:$0xff]
      %v520 = vld [vmem:[%s1 + $0xe8] sm:$0xff]
      %v521 = vld [vmem:[%s1 + $0xf0] sm:$0xff]
      %v522 = vld [vmem:[%s1 + $0xf8] sm:$0xff]
      %v523 = vpack.c.bf16 %v516, %v515
      %v524 = vpack.c.bf16 %v518, %v517
      %v525 = vpack.c.bf16 %v520, %v519
      %v526 = vpack.c.bf16 %v522, %v521
      %v527 = vld [vmem:[%s3 + $0x18] sm:$0x1]
      %v528 = vperm.slane %v527, 0
      %529 = vmatpush.bf16.msra.mxu0 0
      %530 = vmatpush.bf16.msra.mxu0 0
      %531 = vmatpush.bf16.msra.mxu0 0
      %532 = vmatpush.bf16.msra.mxu0 0
      %533 = vmatpush.bf16.msra.mxu0 %v526
      %534 = vmatpush.bf16.msra.mxu0 %v525
      %535 = vmatpush.bf16.msra.mxu0 %v524
      %536 = vmatpush.bf16.msra.mxu0 %v523
      %537 = vmatmul.bf16.gmra.mxu0 %v380
      %v538 = vpop.f32.mrf.mxu0
      %v539 = vadd.f32 %v528, %v538
      %v540 = vpop.f32.mrf.mxu0
      %v541 = vadd.f32 %v528, %v540
      %542 = vmatmul.bf16.gmra.mxu0 %v383
      %v543 = vpop.f32.mrf.mxu0
      %v544 = vadd.f32 %v528, %v543
      %v545 = vpop.f32.mrf.mxu0
      %v546 = vadd.f32 %v528, %v545
      %547 = vmatmul.bf16.gmra.mxu0 %v386
      %v548 = vpop.f32.mrf.mxu0
      %v549 = vadd.f32 %v528, %v548
      %v550 = vpop.f32.mrf.mxu0
      %v551 = vadd.f32 %v528, %v550
      %552 = vmatmul.bf16.gmra.mxu0 %v389
      %v553 = vpop.f32.mrf.mxu0
      %v554 = vadd.f32 %v528, %v553
      %v555 = vpop.f32.mrf.mxu0
      %v556 = vadd.f32 %v528, %v555
      %557 = vmatmul.bf16.gmra.mxu0 %v392
      %v558 = vpop.f32.mrf.mxu0
      %v559 = vadd.f32 %v528, %v558
      %v560 = vpop.f32.mrf.mxu0
      %v561 = vadd.f32 %v528, %v560
      %562 = vmatmul.bf16.gmra.mxu0 %v395
      %v563 = vpop.f32.mrf.mxu0
      %v564 = vadd.f32 %v528, %v563
      %v565 = vpop.f32.mrf.mxu0
      %v566 = vadd.f32 %v528, %v565
      %567 = vmatmul.bf16.gmra.mxu0 %v398
      %v568 = vpop.f32.mrf.mxu0
      %v569 = vadd.f32 %v528, %v568
      %v570 = vpop.f32.mrf.mxu0
      %v571 = vadd.f32 %v528, %v570
      %572 = vmatmul.bf16.gmra.mxu0 %v401
      %v573 = vpop.f32.mrf.mxu0
      %v574 = vadd.f32 %v528, %v573
      %v575 = vpop.f32.mrf.mxu0
      %v576 = vadd.f32 %v528, %v575
      %577 = vdwg.mxu0
      %v578 = vpack.c.bf16 %v413, %v413
      %v579 = vpack.c.bf16 %v415, %v415
      %v580 = vpack.c.bf16 %v418, %v418
      %v581 = vpack.c.bf16 %v420, %v420
      %v582 = vpack.c.bf16 %v423, %v423
      %v583 = vpack.c.bf16 %v425, %v425
      %v584 = vpack.c.bf16 %v428, %v428
      %v585 = vpack.c.bf16 %v430, %v430
      %v586 = vpack.c.bf16 %v433, %v433
      %v587 = vpack.c.bf16 %v435, %v435
      %v588 = vpack.c.bf16 %v438, %v438
      %v589 = vpack.c.bf16 %v440, %v440
      %v590 = vpack.c.bf16 %v443, %v443
      %v591 = vpack.c.bf16 %v445, %v445
      %v592 = vpack.c.bf16 %v448, %v448
      %v593 = vpack.c.bf16 %v450, %v450
      %v594 = vpack.c.bf16 %v476, %v476
      %v595 = vpack.c.bf16 %v478, %v478
      %v596 = vpack.c.bf16 %v481, %v481
      %v597 = vpack.c.bf16 %v483, %v483
      %v598 = vpack.c.bf16 %v486, %v486
      %v599 = vpack.c.bf16 %v488, %v488
      %v600 = vpack.c.bf16 %v491, %v491
      %v601 = vpack.c.bf16 %v493, %v493
      %v602 = vpack.c.bf16 %v496, %v496
      %v603 = vpack.c.bf16 %v498, %v498
      %v604 = vpack.c.bf16 %v501, %v501
      %v605 = vpack.c.bf16 %v503, %v503
      %v606 = vpack.c.bf16 %v506, %v506
      %v607 = vpack.c.bf16 %v508, %v508
      %v608 = vpack.c.bf16 %v511, %v511
      %v609 = vpack.c.bf16 %v513, %v513
      %v610 = vpack.c.bf16 %v539, %v539
      %v611 = vpack.c.bf16 %v541, %v541
      %v612 = vpack.c.bf16 %v544, %v544
      %v613 = vpack.c.bf16 %v546, %v546
      %v614 = vpack.c.bf16 %v549, %v549
      %v615 = vpack.c.bf16 %v551, %v551
      %v616 = vpack.c.bf16 %v554, %v554
      %v617 = vpack.c.bf16 %v556, %v556
      %v618 = vpack.c.bf16 %v559, %v559
      %v619 = vpack.c.bf16 %v561, %v561
      %v620 = vpack.c.bf16 %v564, %v564
      %v621 = vpack.c.bf16 %v566, %v566
      %v622 = vpack.c.bf16 %v569, %v569
      %v623 = vpack.c.bf16 %v571, %v571
      %v624 = vpack.c.bf16 %v574, %v574
      %v625 = vpack.c.bf16 %v576, %v576
      %v628 = vunpack.c.l.b16 %v578
      %v629 = vunpack.c.l.b16 %v579
      %v630 = vpack.c.b16 %v629, %v628
      %v633 = vunpack.c.l.b16 %v594
      %v634 = vunpack.c.l.b16 %v595
      %v635 = vpack.c.b16 %v634, %v633
      %v637 = vsel %vm267, %v630, 0
      %v640 = vsel %vm267, %v635, 0
      %642 = vmatpush.bf16.xpose.msra.mxu0 0
      %643 = vmatpush.bf16.xpose.msra.mxu0 0
      %644 = vmatpush.bf16.xpose.msra.mxu0 0
      %645 = vmatpush.bf16.xpose.msra.mxu0 0
      %646 = vmatpush.bf16.xpose.msra.mxu0 0
      %647 = vmatpush.bf16.xpose.msra.mxu0 0
      %648 = vmatpush.bf16.xpose.msra.mxu0 0
      %649 = vmatpush.bf16.xpose.msra.mxu0 %v640
      %650 = vmatmul.bf16.gmra.mxu0 %v637
      %v651 = vpop.f32.mrf.mxu0
      %v652 = vadd.f32 0.0, %v651
      %v653 = vpop.f32.mrf.mxu0
      %v654 = vadd.f32 0.0, %v653
      %655 = vdwg.mxu0
      %v658 = vunpack.c.l.b16 %v580
      %v659 = vunpack.c.l.b16 %v581
      %v660 = vpack.c.b16 %v659, %v658
      %v663 = vunpack.c.l.b16 %v596
      %v664 = vunpack.c.l.b16 %v597
      %v665 = vpack.c.b16 %v664, %v663
      %v667 = vsel %vm267, %v660, 0
      %v670 = vsel %vm267, %v665, 0
      %672 = vmatpush.bf16.xpose.msra.mxu0 0
      %673 = vmatpush.bf16.xpose.msra.mxu0 0
      %674 = vmatpush.bf16.xpose.msra.mxu0 0
      %675 = vmatpush.bf16.xpose.msra.mxu0 0
      %676 = vmatpush.bf16.xpose.msra.mxu0 0
      %677 = vmatpush.bf16.xpose.msra.mxu0 0
      %678 = vmatpush.bf16.xpose.msra.mxu0 0
      %679 = vmatpush.bf16.xpose.msra.mxu0 %v670
      %680 = vmatmul.bf16.gmra.mxu0 %v667
      %v681 = vpop.f32.mrf.mxu0
      %v682 = vadd.f32 0.0, %v681
      %v683 = vpop.f32.mrf.mxu0
      %v684 = vadd.f32 0.0, %v683
      %685 = vdwg.mxu0
      %v688 = vunpack.c.l.b16 %v582
      %v689 = vunpack.c.l.b16 %v583
      %v690 = vpack.c.b16 %v689, %v688
      %v693 = vunpack.c.l.b16 %v598
      %v694 = vunpack.c.l.b16 %v599
      %v695 = vpack.c.b16 %v694, %v693
      %v697 = vsel %vm267, %v690, 0
      %v700 = vsel %vm267, %v695, 0
      %702 = vmatpush.bf16.xpose.msra.mxu0 0
      %703 = vmatpush.bf16.xpose.msra.mxu0 0
      %704 = vmatpush.bf16.xpose.msra.mxu0 0
      %705 = vmatpush.bf16.xpose.msra.mxu0 0
      %706 = vmatpush.bf16.xpose.msra.mxu0 0
      %707 = vmatpush.bf16.xpose.msra.mxu0 0
      %708 = vmatpush.bf16.xpose.msra.mxu0 0
      %709 = vmatpush.bf16.xpose.msra.mxu0 %v700
      %710 = vmatmul.bf16.gmra.mxu0 %v697
      %v711 = vpop.f32.mrf.mxu0
      %v712 = vadd.f32 0.0, %v711
      %v713 = vpop.f32.mrf.mxu0
      %v714 = vadd.f32 0.0, %v713
      %715 = vdwg.mxu0
      %v718 = vunpack.c.l.b16 %v584
      %v719 = vunpack.c.l.b16 %v585
      %v720 = vpack.c.b16 %v719, %v718
      %v723 = vunpack.c.l.b16 %v600
      %v724 = vunpack.c.l.b16 %v601
      %v725 = vpack.c.b16 %v724, %v723
      %v727 = vsel %vm267, %v720, 0
      %v730 = vsel %vm267, %v725, 0
      %732 = vmatpush.bf16.xpose.msra.mxu0 0
      %733 = vmatpush.bf16.xpose.msra.mxu0 0
      %734 = vmatpush.bf16.xpose.msra.mxu0 0
      %735 = vmatpush.bf16.xpose.msra.mxu0 0
      %736 = vmatpush.bf16.xpose.msra.mxu0 0
      %737 = vmatpush.bf16.xpose.msra.mxu0 0
      %738 = vmatpush.bf16.xpose.msra.mxu0 0
      %739 = vmatpush.bf16.xpose.msra.mxu0 %v730
      %740 = vmatmul.bf16.gmra.mxu0 %v727
      %v741 = vpop.f32.mrf.mxu0
      %v742 = vadd.f32 0.0, %v741
      %v743 = vpop.f32.mrf.mxu0
      %v744 = vadd.f32 0.0, %v743
      %745 = vdwg.mxu0
      %v748 = vunpack.c.l.b16 %v586
      %v749 = vunpack.c.l.b16 %v587
      %v750 = vpack.c.b16 %v749, %v748
      %v753 = vunpack.c.l.b16 %v602
      %v754 = vunpack.c.l.b16 %v603
      %v755 = vpack.c.b16 %v754, %v753
      %v757 = vsel %vm267, %v750, 0
      %v760 = vsel %vm267, %v755, 0
      %762 = vmatpush.bf16.xpose.msra.mxu0 0
      %763 = vmatpush.bf16.xpose.msra.mxu0 0
      %764 = vmatpush.bf16.xpose.msra.mxu0 0
      %765 = vmatpush.bf16.xpose.msra.mxu0 0
      %766 = vmatpush.bf16.xpose.msra.mxu0 0
      %767 = vmatpush.bf16.xpose.msra.mxu0 0
      %768 = vmatpush.bf16.xpose.msra.mxu0 0
      %769 = vmatpush.bf16.xpose.msra.mxu0 %v760
      %770 = vmatmul.bf16.gmra.mxu0 %v757
      %v771 = vpop.f32.mrf.mxu0
      %v772 = vadd.f32 0.0, %v771
      %v773 = vpop.f32.mrf.mxu0
      %v774 = vadd.f32 0.0, %v773
      %775 = vdwg.mxu0
      %v778 = vunpack.c.l.b16 %v588
      %v779 = vunpack.c.l.b16 %v589
      %v780 = vpack.c.b16 %v779, %v778
      %v783 = vunpack.c.l.b16 %v604
      %v784 = vunpack.c.l.b16 %v605
      %v785 = vpack.c.b16 %v784, %v783
      %v787 = vsel %vm267, %v780, 0
      %v790 = vsel %vm267, %v785, 0
      %792 = vmatpush.bf16.xpose.msra.mxu0 0
      %793 = vmatpush.bf16.xpose.msra.mxu0 0
      %794 = vmatpush.bf16.xpose.msra.mxu0 0
      %795 = vmatpush.bf16.xpose.msra.mxu0 0
      %796 = vmatpush.bf16.xpose.msra.mxu0 0
      %797 = vmatpush.bf16.xpose.msra.mxu0 0
      %798 = vmatpush.bf16.xpose.msra.mxu0 0
      %799 = vmatpush.bf16.xpose.msra.mxu0 %v790
      %800 = vmatmul.bf16.gmra.mxu0 %v787
      %v801 = vpop.f32.mrf.mxu0
      %v802 = vadd.f32 0.0, %v801
      %v803 = vpop.f32.mrf.mxu0
      %v804 = vadd.f32 0.0, %v803
      %805 = vdwg.mxu0
      %v808 = vunpack.c.l.b16 %v590
      %v809 = vunpack.c.l.b16 %v591
      %v810 = vpack.c.b16 %v809, %v808
      %v813 = vunpack.c.l.b16 %v606
      %v814 = vunpack.c.l.b16 %v607
      %v815 = vpack.c.b16 %v814, %v813
      %v817 = vsel %vm267, %v810, 0
      %v820 = vsel %vm267, %v815, 0
      %822 = vmatpush.bf16.xpose.msra.mxu0 0
      %823 = vmatpush.bf16.xpose.msra.mxu0 0
      %824 = vmatpush.bf16.xpose.msra.mxu0 0
      %825 = vmatpush.bf16.xpose.msra.mxu0 0
      %826 = vmatpush.bf16.xpose.msra.mxu0 0
      %827 = vmatpush.bf16.xpose.msra.mxu0 0
      %828 = vmatpush.bf16.xpose.msra.mxu0 0
      %829 = vmatpush.bf16.xpose.msra.mxu0 %v820
      %830 = vmatmul.bf16.gmra.mxu0 %v817
      %v831 = vpop.f32.mrf.mxu0
      %v832 = vadd.f32 0.0, %v831
      %v833 = vpop.f32.mrf.mxu0
      %v834 = vadd.f32 0.0, %v833
      %835 = vdwg.mxu0
      %v838 = vunpack.c.l.b16 %v592
      %v839 = vunpack.c.l.b16 %v593
      %v840 = vpack.c.b16 %v839, %v838
      %v843 = vunpack.c.l.b16 %v608
      %v844 = vunpack.c.l.b16 %v609
      %v845 = vpack.c.b16 %v844, %v843
      %v847 = vsel %vm267, %v840, 0
      %v850 = vsel %vm267, %v845, 0
      %852 = vmatpush.bf16.xpose.msra.mxu0 0
      %853 = vmatpush.bf16.xpose.msra.mxu0 0
      %854 = vmatpush.bf16.xpose.msra.mxu0 0
      %855 = vmatpush.bf16.xpose.msra.mxu0 0
      %856 = vmatpush.bf16.xpose.msra.mxu0 0
      %857 = vmatpush.bf16.xpose.msra.mxu0 0
      %858 = vmatpush.bf16.xpose.msra.mxu0 0
      %859 = vmatpush.bf16.xpose.msra.mxu0 %v850
      %860 = vmatmul.bf16.gmra.mxu0 %v847
      %v861 = vpop.f32.mrf.mxu0
      %v862 = vadd.f32 0.0, %v861
      %v863 = vpop.f32.mrf.mxu0
      %v864 = vadd.f32 0.0, %v863
      %865 = vdwg.mxu0
      %v866 = vmul.f32 %v652, 0.125
      %v867 = vmul.f32 %v654, 0.125
      %v868 = vmul.f32 %v682, 0.125
      %v869 = vmul.f32 %v684, 0.125
      %v870 = vmul.f32 %v712, 0.125
      %v871 = vmul.f32 %v714, 0.125
      %v872 = vmul.f32 %v742, 0.125
      %v873 = vmul.f32 %v744, 0.125
      %v874 = vmul.f32 %v772, 0.125
      %v875 = vmul.f32 %v774, 0.125
      %v876 = vmul.f32 %v802, 0.125
      %v877 = vmul.f32 %v804, 0.125
      %v878 = vmul.f32 %v832, 0.125
      %v879 = vmul.f32 %v834, 0.125
      %v880 = vmul.f32 %v862, 0.125
      %v881 = vmul.f32 %v864, 0.125
      %vm882 = vcmask 130048
      %v883 = vsel %vm882, %v866, -inf
      %884 = vmax.xlane.f32.xlu0 %v883
      %v885 = vpop.xlane.xlu0 %884
      %v886 = vsel %vm882, %v867, -inf
      %887 = vmax.xlane.f32.xlu0 %v886
      %v888 = vpop.xlane.xlu0 %887
      %v889 = vsel %vm882, %v868, -inf
      %890 = vmax.xlane.f32.xlu0 %v889
      %v891 = vpop.xlane.xlu0 %890
      %v892 = vsel %vm882, %v869, -inf
      %893 = vmax.xlane.f32.xlu0 %v892
      %v894 = vpop.xlane.xlu0 %893
      %v895 = vsel %vm882, %v870, -inf
      %896 = vmax.xlane.f32.xlu0 %v895
      %v897 = vpop.xlane.xlu0 %896
      %v898 = vsel %vm882, %v871, -inf
      %899 = vmax.xlane.f32.xlu0 %v898
      %v900 = vpop.xlane.xlu0 %899
      %v901 = vsel %vm882, %v872, -inf
      %902 = vmax.xlane.f32.xlu0 %v901
      %v903 = vpop.xlane.xlu0 %902
      %v904 = vsel %vm882, %v873, -inf
      %905 = vmax.xlane.f32.xlu0 %v904
      %v906 = vpop.xlane.xlu0 %905
      %v907 = vsel %vm882, %v874, -inf
      %908 = vmax.xlane.f32.xlu0 %v907
      %v909 = vpop.xlane.xlu0 %908
      %v910 = vsel %vm882, %v875, -inf
      %911 = vmax.xlane.f32.xlu0 %v910
      %v912 = vpop.xlane.xlu0 %911
      %v913 = vsel %vm882, %v876, -inf
      %914 = vmax.xlane.f32.xlu0 %v913
      %v915 = vpop.xlane.xlu0 %914
      %v916 = vsel %vm882, %v877, -inf
      %917 = vmax.xlane.f32.xlu0 %v916
      %v918 = vpop.xlane.xlu0 %917
      %v919 = vsel %vm882, %v878, -inf
      %920 = vmax.xlane.f32.xlu0 %v919
      %v921 = vpop.xlane.xlu0 %920
      %v922 = vsel %vm882, %v879, -inf
      %923 = vmax.xlane.f32.xlu0 %v922
      %v924 = vpop.xlane.xlu0 %923
      %v925 = vsel %vm882, %v880, -inf
      %926 = vmax.xlane.f32.xlu0 %v925
      %v927 = vpop.xlane.xlu0 %926
      %v928 = vsel %vm882, %v881, -inf
      %929 = vmax.xlane.f32.xlu0 %v928
      %v930 = vpop.xlane.xlu0 %929
      %v931 = vsub.f32 %v866, %v885
      %v932 = vsub.f32 %v867, %v888
      %v933 = vsub.f32 %v868, %v891
      %v934 = vsub.f32 %v869, %v894
      %v935 = vsub.f32 %v870, %v897
      %v936 = vsub.f32 %v871, %v900
      %v937 = vsub.f32 %v872, %v903
      %v938 = vsub.f32 %v873, %v906
      %v939 = vsub.f32 %v874, %v909
      %v940 = vsub.f32 %v875, %v912
      %v941 = vsub.f32 %v876, %v915
      %v942 = vsub.f32 %v877, %v918
      %v943 = vsub.f32 %v878, %v921
      %v944 = vsub.f32 %v879, %v924
      %v945 = vsub.f32 %v880, %v927
      %v946 = vsub.f32 %v881, %v930
      %v947 = vmul.f32 %v931, 1.442695
      %v948 = vpow.pop %v947
      %v949 = vmul.f32 %v932, 1.442695
      %v950 = vpow.pop %v949
      %v951 = vmul.f32 %v933, 1.442695
      %v952 = vpow.pop %v951
      %v953 = vmul.f32 %v934, 1.442695
      %v954 = vpow.pop %v953
      %v955 = vmul.f32 %v935, 1.442695
      %v956 = vpow.pop %v955
      %v957 = vmul.f32 %v936, 1.442695
      %v958 = vpow.pop %v957
      %v959 = vmul.f32 %v937, 1.442695
      %v960 = vpow.pop %v959
      %v961 = vmul.f32 %v938, 1.442695
      %v962 = vpow.pop %v961
      %v963 = vmul.f32 %v939, 1.442695
      %v964 = vpow.pop %v963
      %v965 = vmul.f32 %v940, 1.442695
      %v966 = vpow.pop %v965
      %v967 = vmul.f32 %v941, 1.442695
      %v968 = vpow.pop %v967
      %v969 = vmul.f32 %v942, 1.442695
      %v970 = vpow.pop %v969
      %v971 = vmul.f32 %v943, 1.442695
      %v972 = vpow.pop %v971
      %v973 = vmul.f32 %v944, 1.442695
      %v974 = vpow.pop %v973
      %v975 = vmul.f32 %v945, 1.442695
      %v976 = vpow.pop %v975
      %v977 = vmul.f32 %v946, 1.442695
      %v978 = vpow.pop %v977
      %v979 = vsel %vm882, %v948, 0.0
      %980 = vadd.xlane.f32.xlu0 %v979
      %v981 = vpop.xlane.xlu0 %980
      %v982 = vsel %vm882, %v950, 0.0
      %983 = vadd.xlane.f32.xlu0 %v982
      %v984 = vpop.xlane.xlu0 %983
      %v985 = vsel %vm882, %v952, 0.0
      %986 = vadd.xlane.f32.xlu0 %v985
      %v987 = vpop.xlane.xlu0 %986
      %v988 = vsel %vm882, %v954, 0.0
      %989 = vadd.xlane.f32.xlu0 %v988
      %v990 = vpop.xlane.xlu0 %989
      %v991 = vsel %vm882, %v956, 0.0
      %992 = vadd.xlane.f32.xlu0 %v991
      %v993 = vpop.xlane.xlu0 %992
      %v994 = vsel %vm882, %v958, 0.0
      %995 = vadd.xlane.f32.xlu0 %v994
      %v996 = vpop.xlane.xlu0 %995
      %v997 = vsel %vm882, %v960, 0.0
      %998 = vadd.xlane.f32.xlu0 %v997
      %v999 = vpop.xlane.xlu0 %998
      %v1000 = vsel %vm882, %v962, 0.0
      %1001 = vadd.xlane.f32.xlu0 %v1000
      %v1002 = vpop.xlane.xlu0 %1001
      %v1003 = vsel %vm882, %v964, 0.0
      %1004 = vadd.xlane.f32.xlu0 %v1003
      %v1005 = vpop.xlane.xlu0 %1004
      %v1006 = vsel %vm882, %v966, 0.0
      %1007 = vadd.xlane.f32.xlu0 %v1006
      %v1008 = vpop.xlane.xlu0 %1007
      %v1009 = vsel %vm882, %v968, 0.0
      %1010 = vadd.xlane.f32.xlu0 %v1009
      %v1011 = vpop.xlane.xlu0 %1010
      %v1012 = vsel %vm882, %v970, 0.0
      %1013 = vadd.xlane.f32.xlu0 %v1012
      %v1014 = vpop.xlane.xlu0 %1013
      %v1015 = vsel %vm882, %v972, 0.0
      %1016 = vadd.xlane.f32.xlu0 %v1015
      %v1017 = vpop.xlane.xlu0 %1016
      %v1018 = vsel %vm882, %v974, 0.0
      %1019 = vadd.xlane.f32.xlu0 %v1018
      %v1020 = vpop.xlane.xlu0 %1019
      %v1021 = vsel %vm882, %v976, 0.0
      %1022 = vadd.xlane.f32.xlu0 %v1021
      %v1023 = vpop.xlane.xlu0 %1022
      %v1024 = vsel %vm882, %v978, 0.0
      %1025 = vadd.xlane.f32.xlu0 %v1024
      %v1026 = vpop.xlane.xlu0 %1025
      %v1027 = vrcp.pop %v981
      %v1028 = vrcp.pop %v984
      %v1029 = vrcp.pop %v987
      %v1030 = vrcp.pop %v990
      %v1031 = vrcp.pop %v993
      %v1032 = vrcp.pop %v996
      %v1033 = vrcp.pop %v999
      %v1034 = vrcp.pop %v1002
      %v1035 = vrcp.pop %v1005
      %v1036 = vrcp.pop %v1008
      %v1037 = vrcp.pop %v1011
      %v1038 = vrcp.pop %v1014
      %v1039 = vrcp.pop %v1017
      %v1040 = vrcp.pop %v1020
      %v1041 = vrcp.pop %v1023
      %v1042 = vrcp.pop %v1026
      %v1043 = vmul.f32 %v948, %v1027
      %v1044 = vmul.f32 %v950, %v1028
      %v1045 = vmul.f32 %v952, %v1029
      %v1046 = vmul.f32 %v954, %v1030
      %v1047 = vmul.f32 %v956, %v1031
      %v1048 = vmul.f32 %v958, %v1032
      %v1049 = vmul.f32 %v960, %v1033
      %v1050 = vmul.f32 %v962, %v1034
      %v1051 = vmul.f32 %v964, %v1035
      %v1052 = vmul.f32 %v966, %v1036
      %v1053 = vmul.f32 %v968, %v1037
      %v1054 = vmul.f32 %v970, %v1038
      %v1055 = vmul.f32 %v972, %v1039
      %v1056 = vmul.f32 %v974, %v1040
      %v1057 = vmul.f32 %v976, %v1041
      %v1058 = vmul.f32 %v978, %v1042
      %v1059 = vpack.c.bf16 %v1043, %v1043
      %v1060 = vpack.c.bf16 %v1044, %v1044
      %v1061 = vpack.c.bf16 %v1045, %v1045
      %v1062 = vpack.c.bf16 %v1046, %v1046
      %v1063 = vpack.c.bf16 %v1047, %v1047
      %v1064 = vpack.c.bf16 %v1048, %v1048
      %v1065 = vpack.c.bf16 %v1049, %v1049
      %v1066 = vpack.c.bf16 %v1050, %v1050
      %v1067 = vpack.c.bf16 %v1051, %v1051
      %v1068 = vpack.c.bf16 %v1052, %v1052
      %v1069 = vpack.c.bf16 %v1053, %v1053
      %v1070 = vpack.c.bf16 %v1054, %v1054
      %v1071 = vpack.c.bf16 %v1055, %v1055
      %v1072 = vpack.c.bf16 %v1056, %v1056
      %v1073 = vpack.c.bf16 %v1057, %v1057
      %v1074 = vpack.c.bf16 %v1058, %v1058
      %v1077 = vunpack.c.l.b16 %v1059
      %v1078 = vunpack.c.l.b16 %v1060
      %v1079 = vpack.c.b16 %v1078, %v1077
      %v1082 = vunpack.c.l.b16 %v610
      %v1083 = vunpack.c.l.b16 %v611
      %v1084 = vpack.c.b16 %v1083, %v1082
      %v1087 = vsel %vm882, %v1079, 0
      %1089 = vmatpush.bf16.msra.mxu0 0
      %1090 = vmatpush.bf16.msra.mxu0 0
      %1091 = vmatpush.bf16.msra.mxu0 0
      %1092 = vmatpush.bf16.msra.mxu0 0
      %1093 = vmatpush.bf16.msra.mxu0 0
      %1094 = vmatpush.bf16.msra.mxu0 0
      %1095 = vmatpush.bf16.msra.mxu0 0
      %1096 = vmatpush.bf16.msra.mxu0 %v1084
      %1097 = vmatmul.bf16.gmra.mxu0 %v1087
      %v1098 = vpop.f32.mrf.mxu0
      %v1099 = vadd.f32 0.0, %v1098
      %v1100 = vpop.f32.mrf.mxu0
      %v1101 = vadd.f32 0.0, %v1100
      %1102 = vdwg.mxu0
      %v1105 = vunpack.c.l.b16 %v1061
      %v1106 = vunpack.c.l.b16 %v1062
      %v1107 = vpack.c.b16 %v1106, %v1105
      %v1110 = vunpack.c.l.b16 %v612
      %v1111 = vunpack.c.l.b16 %v613
      %v1112 = vpack.c.b16 %v1111, %v1110
      %v1115 = vsel %vm882, %v1107, 0
      %1117 = vmatpush.bf16.msra.mxu0 0
      %1118 = vmatpush.bf16.msra.mxu0 0
      %1119 = vmatpush.bf16.msra.mxu0 0
      %1120 = vmatpush.bf16.msra.mxu0 0
      %1121 = vmatpush.bf16.msra.mxu0 0
      %1122 = vmatpush.bf16.msra.mxu0 0
      %1123 = vmatpush.bf16.msra.mxu0 0
      %1124 = vmatpush.bf16.msra.mxu0 %v1112
      %1125 = vmatmul.bf16.gmra.mxu0 %v1115
      %v1126 = vpop.f32.mrf.mxu0
      %v1127 = vadd.f32 0.0, %v1126
      %v1128 = vpop.f32.mrf.mxu0
      %v1129 = vadd.f32 0.0, %v1128
      %1130 = vdwg.mxu0
      %v1133 = vunpack.c.l.b16 %v1063
      %v1134 = vunpack.c.l.b16 %v1064
      %v1135 = vpack.c.b16 %v1134, %v1133
      %v1138 = vunpack.c.l.b16 %v614
      %v1139 = vunpack.c.l.b16 %v615
      %v1140 = vpack.c.b16 %v1139, %v1138
      %v1143 = vsel %vm882, %v1135, 0
      %1145 = vmatpush.bf16.msra.mxu0 0
      %1146 = vmatpush.bf16.msra.mxu0 0
      %1147 = vmatpush.bf16.msra.mxu0 0
      %1148 = vmatpush.bf16.msra.mxu0 0
      %1149 = vmatpush.bf16.msra.mxu0 0
      %1150 = vmatpush.bf16.msra.mxu0 0
      %1151 = vmatpush.bf16.msra.mxu0 0
      %1152 = vmatpush.bf16.msra.mxu0 %v1140
      %1153 = vmatmul.bf16.gmra.mxu0 %v1143
      %v1154 = vpop.f32.mrf.mxu0
      %v1155 = vadd.f32 0.0, %v1154
      %v1156 = vpop.f32.mrf.mxu0
      %v1157 = vadd.f32 0.0, %v1156
      %1158 = vdwg.mxu0
      %v1161 = vunpack.c.l.b16 %v1065
      %v1162 = vunpack.c.l.b16 %v1066
      %v1163 = vpack.c.b16 %v1162, %v1161
      %v1166 = vunpack.c.l.b16 %v616
      %v1167 = vunpack.c.l.b16 %v617
      %v1168 = vpack.c.b16 %v1167, %v1166
      %v1171 = vsel %vm882, %v1163, 0
      %1173 = vmatpush.bf16.msra.mxu0 0
      %1174 = vmatpush.bf16.msra.mxu0 0
      %1175 = vmatpush.bf16.msra.mxu0 0
      %1176 = vmatpush.bf16.msra.mxu0 0
      %1177 = vmatpush.bf16.msra.mxu0 0
      %1178 = vmatpush.bf16.msra.mxu0 0
      %1179 = vmatpush.bf16.msra.mxu0 0
      %1180 = vmatpush.bf16.msra.mxu0 %v1168
      %1181 = vmatmul.bf16.gmra.mxu0 %v1171
      %v1182 = vpop.f32.mrf.mxu0
      %v1183 = vadd.f32 0.0, %v1182
      %v1184 = vpop.f32.mrf.mxu0
      %v1185 = vadd.f32 0.0, %v1184
      %1186 = vdwg.mxu0
      %v1189 = vunpack.c.l.b16 %v1067
      %v1190 = vunpack.c.l.b16 %v1068
      %v1191 = vpack.c.b16 %v1190, %v1189
      %v1194 = vunpack.c.l.b16 %v618
      %v1195 = vunpack.c.l.b16 %v619
      %v1196 = vpack.c.b16 %v1195, %v1194
      %v1199 = vsel %vm882, %v1191, 0
      %1201 = vmatpush.bf16.msra.mxu0 0
      %1202 = vmatpush.bf16.msra.mxu0 0
      %1203 = vmatpush.bf16.msra.mxu0 0
      %1204 = vmatpush.bf16.msra.mxu0 0
      %1205 = vmatpush.bf16.msra.mxu0 0
      %1206 = vmatpush.bf16.msra.mxu0 0
      %1207 = vmatpush.bf16.msra.mxu0 0
      %1208 = vmatpush.bf16.msra.mxu0 %v1196
      %1209 = vmatmul.bf16.gmra.mxu0 %v1199
      %v1210 = vpop.f32.mrf.mxu0
      %v1211 = vadd.f32 0.0, %v1210
      %v1212 = vpop.f32.mrf.mxu0
      %v1213 = vadd.f32 0.0, %v1212
      %1214 = vdwg.mxu0
      %v1217 = vunpack.c.l.b16 %v1069
      %v1218 = vunpack.c.l.b16 %v1070
      %v1219 = vpack.c.b16 %v1218, %v1217
      %v1222 = vunpack.c.l.b16 %v620
      %v1223 = vunpack.c.l.b16 %v621
      %v1224 = vpack.c.b16 %v1223, %v1222
      %v1227 = vsel %vm882, %v1219, 0
      %1229 = vmatpush.bf16.msra.mxu0 0
      %1230 = vmatpush.bf16.msra.mxu0 0
      %1231 = vmatpush.bf16.msra.mxu0 0
      %1232 = vmatpush.bf16.msra.mxu0 0
      %1233 = vmatpush.bf16.msra.mxu0 0
      %1234 = vmatpush.bf16.msra.mxu0 0
      %1235 = vmatpush.bf16.msra.mxu0 0
      %1236 = vmatpush.bf16.msra.mxu0 %v1224
      %1237 = vmatmul.bf16.gmra.mxu0 %v1227
      %v1238 = vpop.f32.mrf.mxu0
      %v1239 = vadd.f32 0.0, %v1238
      %v1240 = vpop.f32.mrf.mxu0
      %v1241 = vadd.f32 0.0, %v1240
      %1242 = vdwg.mxu0
      %v1245 = vunpack.c.l.b16 %v1071
      %v1246 = vunpack.c.l.b16 %v1072
      %v1247 = vpack.c.b16 %v1246, %v1245
      %v1250 = vunpack.c.l.b16 %v622
      %v1251 = vunpack.c.l.b16 %v623
      %v1252 = vpack.c.b16 %v1251, %v1250
      %v1255 = vsel %vm882, %v1247, 0
      %1257 = vmatpush.bf16.msra.mxu0 0
      %1258 = vmatpush.bf16.msra.mxu0 0
      %1259 = vmatpush.bf16.msra.mxu0 0
      %1260 = vmatpush.bf16.msra.mxu0 0
      %1261 = vmatpush.bf16.msra.mxu0 0
      %1262 = vmatpush.bf16.msra.mxu0 0
      %1263 = vmatpush.bf16.msra.mxu0 0
      %1264 = vmatpush.bf16.msra.mxu0 %v1252
      %1265 = vmatmul.bf16.gmra.mxu0 %v1255
      %v1266 = vpop.f32.mrf.mxu0
      %v1267 = vadd.f32 0.0, %v1266
      %v1268 = vpop.f32.mrf.mxu0
      %v1269 = vadd.f32 0.0, %v1268
      %1270 = vdwg.mxu0
      %v1273 = vunpack.c.l.b16 %v1073
      %v1274 = vunpack.c.l.b16 %v1074
      %v1275 = vpack.c.b16 %v1274, %v1273
      %v1278 = vunpack.c.l.b16 %v624
      %v1279 = vunpack.c.l.b16 %v625
      %v1280 = vpack.c.b16 %v1279, %v1278
      %v1283 = vsel %vm882, %v1275, 0
      %1285 = vmatpush.bf16.msra.mxu0 0
      %1286 = vmatpush.bf16.msra.mxu0 0
      %1287 = vmatpush.bf16.msra.mxu0 0
      %1288 = vmatpush.bf16.msra.mxu0 0
      %1289 = vmatpush.bf16.msra.mxu0 0
      %1290 = vmatpush.bf16.msra.mxu0 0
      %1291 = vmatpush.bf16.msra.mxu0 0
      %1292 = vmatpush.bf16.msra.mxu0 %v1280
      %1293 = vmatmul.bf16.gmra.mxu0 %v1283
      %v1294 = vpop.f32.mrf.mxu0
      %v1295 = vadd.f32 0.0, %v1294
      %v1296 = vpop.f32.mrf.mxu0
      %v1297 = vadd.f32 0.0, %v1296
      %1298 = vdwg.mxu0
      %v1299 = vld [vmem:[%s1 + $0x100] sm:$0xff]
      %v1300 = vld [vmem:[%s1 + $0x108] sm:$0xff]
      %v1301 = vld [vmem:[%s1 + $0x110] sm:$0xff]
      %v1302 = vld [vmem:[%s1 + $0x118] sm:$0xff]
      %v1303 = vld [vmem:[%s1 + $0x120] sm:$0xff]
      %v1304 = vld [vmem:[%s1 + $0x128] sm:$0xff]
      %v1305 = vld [vmem:[%s1 + $0x130] sm:$0xff]
      %v1306 = vld [vmem:[%s1 + $0x138] sm:$0xff]
      %v1307 = vpack.c.bf16 %v1101, %v1099
      %v1308 = vpack.c.bf16 %v1129, %v1127
      %v1309 = vpack.c.bf16 %v1157, %v1155
      %v1310 = vpack.c.bf16 %v1185, %v1183
      %v1311 = vpack.c.bf16 %v1213, %v1211
      %v1312 = vpack.c.bf16 %v1241, %v1239
      %v1313 = vpack.c.bf16 %v1269, %v1267
      %v1314 = vpack.c.bf16 %v1297, %v1295
      %v1315 = vpack.c.bf16 %v1300, %v1299
      %v1316 = vpack.c.bf16 %v1302, %v1301
      %v1317 = vpack.c.bf16 %v1304, %v1303
      %v1318 = vpack.c.bf16 %v1306, %v1305
      %v1319 = vld [vmem:[%s3 + $0x20] sm:$0x1]
      %v1320 = vperm.slane %v1319, 0
      %v1322 = vsel %vm267, %v1307, 0
      %v1325 = vsel %vm267, %v1308, 0
      %v1328 = vsel %vm267, %v1309, 0
      %v1331 = vsel %vm267, %v1310, 0
      %v1334 = vsel %vm267, %v1311, 0
      %v1337 = vsel %vm267, %v1312, 0
      %v1340 = vsel %vm267, %v1313, 0
      %v1343 = vsel %vm267, %v1314, 0
      %1345 = vmatpush.bf16.msra.mxu0 0
      %1346 = vmatpush.bf16.msra.mxu0 0
      %1347 = vmatpush.bf16.msra.mxu0 0
      %1348 = vmatpush.bf16.msra.mxu0 0
      %1349 = vmatpush.bf16.msra.mxu0 %v1318
      %1350 = vmatpush.bf16.msra.mxu0 %v1317
      %1351 = vmatpush.bf16.msra.mxu0 %v1316
      %1352 = vmatpush.bf16.msra.mxu0 %v1315
      %1353 = vmatmul.bf16.gmra.mxu0 %v1322
      %v1354 = vpop.f32.mrf.mxu0
      %v1355 = vadd.f32 %v1320, %v1354
      %v1356 = vpop.f32.mrf.mxu0
      %v1357 = vadd.f32 %v1320, %v1356
      %1358 = vmatmul.bf16.gmra.mxu0 %v1325
      %v1359 = vpop.f32.mrf.mxu0
      %v1360 = vadd.f32 %v1320, %v1359
      %v1361 = vpop.f32.mrf.mxu0
      %v1362 = vadd.f32 %v1320, %v1361
      %1363 = vmatmul.bf16.gmra.mxu0 %v1328
      %v1364 = vpop.f32.mrf.mxu0
      %v1365 = vadd.f32 %v1320, %v1364
      %v1366 = vpop.f32.mrf.mxu0
      %v1367 = vadd.f32 %v1320, %v1366
      %1368 = vmatmul.bf16.gmra.mxu0 %v1331
      %v1369 = vpop.f32.mrf.mxu0
      %v1370 = vadd.f32 %v1320, %v1369
      %v1371 = vpop.f32.mrf.mxu0
      %v1372 = vadd.f32 %v1320, %v1371
      %1373 = vmatmul.bf16.gmra.mxu0 %v1334
      %v1374 = vpop.f32.mrf.mxu0
      %v1375 = vadd.f32 %v1320, %v1374
      %v1376 = vpop.f32.mrf.mxu0
      %v1377 = vadd.f32 %v1320, %v1376
      %1378 = vmatmul.bf16.gmra.mxu0 %v1337
      %v1379 = vpop.f32.mrf.mxu0
      %v1380 = vadd.f32 %v1320, %v1379
      %v1381 = vpop.f32.mrf.mxu0
      %v1382 = vadd.f32 %v1320, %v1381
      %1383 = vmatmul.bf16.gmra.mxu0 %v1340
      %v1384 = vpop.f32.mrf.mxu0
      %v1385 = vadd.f32 %v1320, %v1384
      %v1386 = vpop.f32.mrf.mxu0
      %v1387 = vadd.f32 %v1320, %v1386
      %1388 = vmatmul.bf16.gmra.mxu0 %v1343
      %v1389 = vpop.f32.mrf.mxu0
      %v1390 = vadd.f32 %v1320, %v1389
      %v1391 = vpop.f32.mrf.mxu0
      %v1392 = vadd.f32 %v1320, %v1391
      %1393 = vdwg.mxu0
      %v1394 = vadd.f32 %v341, %v1355
      %v1395 = vadd.f32 %v342, %v1357
      %v1396 = vadd.f32 %v343, %v1360
      %v1397 = vadd.f32 %v344, %v1362
      %v1398 = vadd.f32 %v345, %v1365
      %v1399 = vadd.f32 %v346, %v1367
      %v1400 = vadd.f32 %v347, %v1370
      %v1401 = vadd.f32 %v348, %v1372
      %v1402 = vadd.f32 %v349, %v1375
      %v1403 = vadd.f32 %v350, %v1377
      %v1404 = vadd.f32 %v351, %v1380
      %v1405 = vadd.f32 %v352, %v1382
      %v1406 = vadd.f32 %v353, %v1385
      %v1407 = vadd.f32 %v354, %v1387
      %v1408 = vadd.f32 %v355, %v1390
      %v1409 = vadd.f32 %v356, %v1392
      %v1410 = vld [vmem:[%s3 + $0x28] sm:$0x1]
      %v1411 = vld [vmem:[%s3 + $0x30] sm:$0x1]
      %v1412 = vsel %vm267, %v1394, 0.0
      %1413 = vadd.xlane.f32.xlu0 %v1412
      %v1414 = vpop.xlane.xlu0 %1413
      %v1415 = vsel %vm267, %v1395, 0.0
      %1416 = vadd.xlane.f32.xlu0 %v1415
      %v1417 = vpop.xlane.xlu0 %1416
      %v1418 = vsel %vm267, %v1396, 0.0
      %1419 = vadd.xlane.f32.xlu0 %v1418
      %v1420 = vpop.xlane.xlu0 %1419
      %v1421 = vsel %vm267, %v1397, 0.0
      %1422 = vadd.xlane.f32.xlu0 %v1421
      %v1423 = vpop.xlane.xlu0 %1422
      %v1424 = vsel %vm267, %v1398, 0.0
      %1425 = vadd.xlane.f32.xlu0 %v1424
      %v1426 = vpop.xlane.xlu0 %1425
      %v1427 = vsel %vm267, %v1399, 0.0
      %1428 = vadd.xlane.f32.xlu0 %v1427
      %v1429 = vpop.xlane.xlu0 %1428
      %v1430 = vsel %vm267, %v1400, 0.0
      %1431 = vadd.xlane.f32.xlu0 %v1430
      %v1432 = vpop.xlane.xlu0 %1431
      %v1433 = vsel %vm267, %v1401, 0.0
      %1434 = vadd.xlane.f32.xlu0 %v1433
      %v1435 = vpop.xlane.xlu0 %1434
      %v1436 = vsel %vm267, %v1402, 0.0
      %1437 = vadd.xlane.f32.xlu0 %v1436
      %v1438 = vpop.xlane.xlu0 %1437
      %v1439 = vsel %vm267, %v1403, 0.0
      %1440 = vadd.xlane.f32.xlu0 %v1439
      %v1441 = vpop.xlane.xlu0 %1440
      %v1442 = vsel %vm267, %v1404, 0.0
      %1443 = vadd.xlane.f32.xlu0 %v1442
      %v1444 = vpop.xlane.xlu0 %1443
      %v1445 = vsel %vm267, %v1405, 0.0
      %1446 = vadd.xlane.f32.xlu0 %v1445
      %v1447 = vpop.xlane.xlu0 %1446
      %v1448 = vsel %vm267, %v1406, 0.0
      %1449 = vadd.xlane.f32.xlu0 %v1448
      %v1450 = vpop.xlane.xlu0 %1449
      %v1451 = vsel %vm267, %v1407, 0.0
      %1452 = vadd.xlane.f32.xlu0 %v1451
      %v1453 = vpop.xlane.xlu0 %1452
      %v1454 = vsel %vm267, %v1408, 0.0
      %1455 = vadd.xlane.f32.xlu0 %v1454
      %v1456 = vpop.xlane.xlu0 %1455
      %v1457 = vsel %vm267, %v1409, 0.0
      %1458 = vadd.xlane.f32.xlu0 %v1457
      %v1459 = vpop.xlane.xlu0 %1458
      %v1460 = vrcp.pop 64.0
      %v1461 = vmul.f32 64.0, %v1460
      %v1462 = vsub.f32 1.0, %v1461
      %v1463 = vmul.f32 %v1460, %v1462
      %v1464 = vadd.f32 %v1460, %v1463
      %vm1465 = vweird.f32 %v1460
      %v1466 = vsel %vm1465, %v1460, %v1464
      %v1467 = vmul.f32 %v1414, %v1466
      %v1468 = vmul.f32 %v1417, %v1466
      %v1469 = vmul.f32 %v1420, %v1466
      %v1470 = vmul.f32 %v1423, %v1466
      %v1471 = vmul.f32 %v1426, %v1466
      %v1472 = vmul.f32 %v1429, %v1466
      %v1473 = vmul.f32 %v1432, %v1466
      %v1474 = vmul.f32 %v1435, %v1466
      %v1475 = vmul.f32 %v1438, %v1466
      %v1476 = vmul.f32 %v1441, %v1466
      %v1477 = vmul.f32 %v1444, %v1466
      %v1478 = vmul.f32 %v1447, %v1466
      %v1479 = vmul.f32 %v1450, %v1466
      %v1480 = vmul.f32 %v1453, %v1466
      %v1481 = vmul.f32 %v1456, %v1466
      %v1482 = vmul.f32 %v1459, %v1466
      %v1483 = vsub.f32 %v1394, %v1467
      %v1484 = vsub.f32 %v1395, %v1468
      %v1485 = vsub.f32 %v1396, %v1469
      %v1486 = vsub.f32 %v1397, %v1470
      %v1487 = vsub.f32 %v1398, %v1471
      %v1488 = vsub.f32 %v1399, %v1472
      %v1489 = vsub.f32 %v1400, %v1473
      %v1490 = vsub.f32 %v1401, %v1474
      %v1491 = vsub.f32 %v1402, %v1475
      %v1492 = vsub.f32 %v1403, %v1476
      %v1493 = vsub.f32 %v1404, %v1477
      %v1494 = vsub.f32 %v1405, %v1478
      %v1495 = vsub.f32 %v1406, %v1479
      %v1496 = vsub.f32 %v1407, %v1480
      %v1497 = vsub.f32 %v1408, %v1481
      %v1498 = vsub.f32 %v1409, %v1482
      %v1499 = vmul.f32 %v1483, %v1483
      %v1500 = vmul.f32 %v1484, %v1484
      %v1501 = vmul.f32 %v1485, %v1485
      %v1502 = vmul.f32 %v1486, %v1486
      %v1503 = vmul.f32 %v1487, %v1487
      %v1504 = vmul.f32 %v1488, %v1488
      %v1505 = vmul.f32 %v1489, %v1489
      %v1506 = vmul.f32 %v1490, %v1490
      %v1507 = vmul.f32 %v1491, %v1491
      %v1508 = vmul.f32 %v1492, %v1492
      %v1509 = vmul.f32 %v1493, %v1493
      %v1510 = vmul.f32 %v1494, %v1494
      %v1511 = vmul.f32 %v1495, %v1495
      %v1512 = vmul.f32 %v1496, %v1496
      %v1513 = vmul.f32 %v1497, %v1497
      %v1514 = vmul.f32 %v1498, %v1498
      %v1515 = vsel %vm267, %v1499, 0.0
      %1516 = vadd.xlane.f32.xlu0 %v1515
      %v1517 = vpop.xlane.xlu0 %1516
      %v1518 = vsel %vm267, %v1500, 0.0
      %1519 = vadd.xlane.f32.xlu0 %v1518
      %v1520 = vpop.xlane.xlu0 %1519
      %v1521 = vsel %vm267, %v1501, 0.0
      %1522 = vadd.xlane.f32.xlu0 %v1521
      %v1523 = vpop.xlane.xlu0 %1522
      %v1524 = vsel %vm267, %v1502, 0.0
      %1525 = vadd.xlane.f32.xlu0 %v1524
      %v1526 = vpop.xlane.xlu0 %1525
      %v1527 = vsel %vm267, %v1503, 0.0
      %1528 = vadd.xlane.f32.xlu0 %v1527
      %v1529 = vpop.xlane.xlu0 %1528
      %v1530 = vsel %vm267, %v1504, 0.0
      %1531 = vadd.xlane.f32.xlu0 %v1530
      %v1532 = vpop.xlane.xlu0 %1531
      %v1533 = vsel %vm267, %v1505, 0.0
      %1534 = vadd.xlane.f32.xlu0 %v1533
      %v1535 = vpop.xlane.xlu0 %1534
      %v1536 = vsel %vm267, %v1506, 0.0
      %1537 = vadd.xlane.f32.xlu0 %v1536
      %v1538 = vpop.xlane.xlu0 %1537
      %v1539 = vsel %vm267, %v1507, 0.0
      %1540 = vadd.xlane.f32.xlu0 %v1539
      %v1541 = vpop.xlane.xlu0 %1540
      %v1542 = vsel %vm267, %v1508, 0.0
      %1543 = vadd.xlane.f32.xlu0 %v1542
      %v1544 = vpop.xlane.xlu0 %1543
      %v1545 = vsel %vm267, %v1509, 0.0
      %1546 = vadd.xlane.f32.xlu0 %v1545
      %v1547 = vpop.xlane.xlu0 %1546
      %v1548 = vsel %vm267, %v1510, 0.0
      %1549 = vadd.xlane.f32.xlu0 %v1548
      %v1550 = vpop.xlane.xlu0 %1549
      %v1551 = vsel %vm267, %v1511, 0.0
      %1552 = vadd.xlane.f32.xlu0 %v1551
      %v1553 = vpop.xlane.xlu0 %1552
      %v1554 = vsel %vm267, %v1512, 0.0
      %1555 = vadd.xlane.f32.xlu0 %v1554
      %v1556 = vpop.xlane.xlu0 %1555
      %v1557 = vsel %vm267, %v1513, 0.0
      %1558 = vadd.xlane.f32.xlu0 %v1557
      %v1559 = vpop.xlane.xlu0 %1558
      %v1560 = vsel %vm267, %v1514, 0.0
      %1561 = vadd.xlane.f32.xlu0 %v1560
      %v1562 = vpop.xlane.xlu0 %1561
      %v1563 = vmul.f32 %v1517, %v1466
      %v1564 = vmul.f32 %v1520, %v1466
      %v1565 = vmul.f32 %v1523, %v1466
      %v1566 = vmul.f32 %v1526, %v1466
      %v1567 = vmul.f32 %v1529, %v1466
      %v1568 = vmul.f32 %v1532, %v1466
      %v1569 = vmul.f32 %v1535, %v1466
      %v1570 = vmul.f32 %v1538, %v1466
      %v1571 = vmul.f32 %v1541, %v1466
      %v1572 = vmul.f32 %v1544, %v1466
      %v1573 = vmul.f32 %v1547, %v1466
      %v1574 = vmul.f32 %v1550, %v1466
      %v1575 = vmul.f32 %v1553, %v1466
      %v1576 = vmul.f32 %v1556, %v1466
      %v1577 = vmul.f32 %v1559, %v1466
      %v1578 = vmul.f32 %v1562, %v1466
      %v1579 = vadd.f32 %v1563, 1e-05
      %v1580 = vadd.f32 %v1564, 1e-05
      %v1581 = vadd.f32 %v1565, 1e-05
      %v1582 = vadd.f32 %v1566, 1e-05
      %v1583 = vadd.f32 %v1567, 1e-05
      %v1584 = vadd.f32 %v1568, 1e-05
      %v1585 = vadd.f32 %v1569, 1e-05
      %v1586 = vadd.f32 %v1570, 1e-05
      %v1587 = vadd.f32 %v1571, 1e-05
      %v1588 = vadd.f32 %v1572, 1e-05
      %v1589 = vadd.f32 %v1573, 1e-05
      %v1590 = vadd.f32 %v1574, 1e-05
      %v1591 = vadd.f32 %v1575, 1e-05
      %v1592 = vadd.f32 %v1576, 1e-05
      %v1593 = vadd.f32 %v1577, 1e-05
      %v1594 = vadd.f32 %v1578, 1e-05
      %v1595 = vrsqrt.pop %v1579
      %v1596 = vmul.f32 %v1595, %v1579
      %v1597 = vmul.f32 %v1596, %v1595
      %v1598 = vmul.f32 0.5, %v1597
      %v1599 = vsub.f32 1.5, %v1598
      %v1600 = vmul.f32 %v1595, %v1599
      %vm1601 = vweird.f32 %v1579
      %vm1602 = vweird.f32 %v1595
      %vm1603 = vmor %vm1601, %vm1602
      %v1604 = vsel %vm1603, %v1595, %v1600
      %v1605 = vrsqrt.pop %v1580
      %v1606 = vmul.f32 %v1605, %v1580
      %v1607 = vmul.f32 %v1606, %v1605
      %v1608 = vmul.f32 0.5, %v1607
      %v1609 = vsub.f32 1.5, %v1608
      %v1610 = vmul.f32 %v1605, %v1609
      %vm1611 = vweird.f32 %v1580
      %vm1612 = vweird.f32 %v1605
      %vm1613 = vmor %vm1611, %vm1612
      %v1614 = vsel %vm1613, %v1605, %v1610
      %v1615 = vrsqrt.pop %v1581
      %v1616 = vmul.f32 %v1615, %v1581
      %v1617 = vmul.f32 %v1616, %v1615
      %v1618 = vmul.f32 0.5, %v1617
      %v1619 = vsub.f32 1.5, %v1618
      %v1620 = vmul.f32 %v1615, %v1619
      %vm1621 = vweird.f32 %v1581
      %vm1622 = vweird.f32 %v1615
      %vm1623 = vmor %vm1621, %vm1622
      %v1624 = vsel %vm1623, %v1615, %v1620
      %v1625 = vrsqrt.pop %v1582
      %v1626 = vmul.f32 %v1625, %v1582
      %v1627 = vmul.f32 %v1626, %v1625
      %v1628 = vmul.f32 0.5, %v1627
      %v1629 = vsub.f32 1.5, %v1628
      %v1630 = vmul.f32 %v1625, %v1629
      %vm1631 = vweird.f32 %v1582
      %vm1632 = vweird.f32 %v1625
      %vm1633 = vmor %vm1631, %vm1632
      %v1634 = vsel %vm1633, %v1625, %v1630
      %v1635 = vrsqrt.pop %v1583
      %v1636 = vmul.f32 %v1635, %v1583
      %v1637 = vmul.f32 %v1636, %v1635
      %v1638 = vmul.f32 0.5, %v1637
      %v1639 = vsub.f32 1.5, %v1638
      %v1640 = vmul.f32 %v1635, %v1639
      %vm1641 = vweird.f32 %v1583
      %vm1642 = vweird.f32 %v1635
      %vm1643 = vmor %vm1641, %vm1642
      %v1644 = vsel %vm1643, %v1635, %v1640
      %v1645 = vrsqrt.pop %v1584
      %v1646 = vmul.f32 %v1645, %v1584
      %v1647 = vmul.f32 %v1646, %v1645
      %v1648 = vmul.f32 0.5, %v1647
      %v1649 = vsub.f32 1.5, %v1648
      %v1650 = vmul.f32 %v1645, %v1649
      %vm1651 = vweird.f32 %v1584
      %vm1652 = vweird.f32 %v1645
      %vm1653 = vmor %vm1651, %vm1652
      %v1654 = vsel %vm1653, %v1645, %v1650
      %v1655 = vrsqrt.pop %v1585
      %v1656 = vmul.f32 %v1655, %v1585
      %v1657 = vmul.f32 %v1656, %v1655
      %v1658 = vmul.f32 0.5, %v1657
      %v1659 = vsub.f32 1.5, %v1658
      %v1660 = vmul.f32 %v1655, %v1659
      %vm1661 = vweird.f32 %v1585
      %vm1662 = vweird.f32 %v1655
      %vm1663 = vmor %vm1661, %vm1662
      %v1664 = vsel %vm1663, %v1655, %v1660
      %v1665 = vrsqrt.pop %v1586
      %v1666 = vmul.f32 %v1665, %v1586
      %v1667 = vmul.f32 %v1666, %v1665
      %v1668 = vmul.f32 0.5, %v1667
      %v1669 = vsub.f32 1.5, %v1668
      %v1670 = vmul.f32 %v1665, %v1669
      %vm1671 = vweird.f32 %v1586
      %vm1672 = vweird.f32 %v1665
      %vm1673 = vmor %vm1671, %vm1672
      %v1674 = vsel %vm1673, %v1665, %v1670
      %v1675 = vrsqrt.pop %v1587
      %v1676 = vmul.f32 %v1675, %v1587
      %v1677 = vmul.f32 %v1676, %v1675
      %v1678 = vmul.f32 0.5, %v1677
      %v1679 = vsub.f32 1.5, %v1678
      %v1680 = vmul.f32 %v1675, %v1679
      %vm1681 = vweird.f32 %v1587
      %vm1682 = vweird.f32 %v1675
      %vm1683 = vmor %vm1681, %vm1682
      %v1684 = vsel %vm1683, %v1675, %v1680
      %v1685 = vrsqrt.pop %v1588
      %v1686 = vmul.f32 %v1685, %v1588
      %v1687 = vmul.f32 %v1686, %v1685
      %v1688 = vmul.f32 0.5, %v1687
      %v1689 = vsub.f32 1.5, %v1688
      %v1690 = vmul.f32 %v1685, %v1689
      %vm1691 = vweird.f32 %v1588
      %vm1692 = vweird.f32 %v1685
      %vm1693 = vmor %vm1691, %vm1692
      %v1694 = vsel %vm1693, %v1685, %v1690
      %v1695 = vrsqrt.pop %v1589
      %v1696 = vmul.f32 %v1695, %v1589
      %v1697 = vmul.f32 %v1696, %v1695
      %v1698 = vmul.f32 0.5, %v1697
      %v1699 = vsub.f32 1.5, %v1698
      %v1700 = vmul.f32 %v1695, %v1699
      %vm1701 = vweird.f32 %v1589
      %vm1702 = vweird.f32 %v1695
      %vm1703 = vmor %vm1701, %vm1702
      %v1704 = vsel %vm1703, %v1695, %v1700
      %v1705 = vrsqrt.pop %v1590
      %v1706 = vmul.f32 %v1705, %v1590
      %v1707 = vmul.f32 %v1706, %v1705
      %v1708 = vmul.f32 0.5, %v1707
      %v1709 = vsub.f32 1.5, %v1708
      %v1710 = vmul.f32 %v1705, %v1709
      %vm1711 = vweird.f32 %v1590
      %vm1712 = vweird.f32 %v1705
      %vm1713 = vmor %vm1711, %vm1712
      %v1714 = vsel %vm1713, %v1705, %v1710
      %v1715 = vrsqrt.pop %v1591
      %v1716 = vmul.f32 %v1715, %v1591
      %v1717 = vmul.f32 %v1716, %v1715
      %v1718 = vmul.f32 0.5, %v1717
      %v1719 = vsub.f32 1.5, %v1718
      %v1720 = vmul.f32 %v1715, %v1719
      %vm1721 = vweird.f32 %v1591
      %vm1722 = vweird.f32 %v1715
      %vm1723 = vmor %vm1721, %vm1722
      %v1724 = vsel %vm1723, %v1715, %v1720
      %v1725 = vrsqrt.pop %v1592
      %v1726 = vmul.f32 %v1725, %v1592
      %v1727 = vmul.f32 %v1726, %v1725
      %v1728 = vmul.f32 0.5, %v1727
      %v1729 = vsub.f32 1.5, %v1728
      %v1730 = vmul.f32 %v1725, %v1729
      %vm1731 = vweird.f32 %v1592
      %vm1732 = vweird.f32 %v1725
      %vm1733 = vmor %vm1731, %vm1732
      %v1734 = vsel %vm1733, %v1725, %v1730
      %v1735 = vrsqrt.pop %v1593
      %v1736 = vmul.f32 %v1735, %v1593
      %v1737 = vmul.f32 %v1736, %v1735
      %v1738 = vmul.f32 0.5, %v1737
      %v1739 = vsub.f32 1.5, %v1738
      %v1740 = vmul.f32 %v1735, %v1739
      %vm1741 = vweird.f32 %v1593
      %vm1742 = vweird.f32 %v1735
      %vm1743 = vmor %vm1741, %vm1742
      %v1744 = vsel %vm1743, %v1735, %v1740
      %v1745 = vrsqrt.pop %v1594
      %v1746 = vmul.f32 %v1745, %v1594
      %v1747 = vmul.f32 %v1746, %v1745
      %v1748 = vmul.f32 0.5, %v1747
      %v1749 = vsub.f32 1.5, %v1748
      %v1750 = vmul.f32 %v1745, %v1749
      %vm1751 = vweird.f32 %v1594
      %vm1752 = vweird.f32 %v1745
      %vm1753 = vmor %vm1751, %vm1752
      %v1754 = vsel %vm1753, %v1745, %v1750
      %v1755 = vmul.f32 %v1483, %v1604
      %v1756 = vmul.f32 %v1484, %v1614
      %v1757 = vmul.f32 %v1485, %v1624
      %v1758 = vmul.f32 %v1486, %v1634
      %v1759 = vmul.f32 %v1487, %v1644
      %v1760 = vmul.f32 %v1488, %v1654
      %v1761 = vmul.f32 %v1489, %v1664
      %v1762 = vmul.f32 %v1490, %v1674
      %v1763 = vmul.f32 %v1491, %v1684
      %v1764 = vmul.f32 %v1492, %v1694
      %v1765 = vmul.f32 %v1493, %v1704
      %v1766 = vmul.f32 %v1494, %v1714
      %v1767 = vmul.f32 %v1495, %v1724
      %v1768 = vmul.f32 %v1496, %v1734
      %v1769 = vmul.f32 %v1497, %v1744
      %v1770 = vmul.f32 %v1498, %v1754
      %v1771 = vperm.slane %v1410, 0
      %v1772 = vmul.f32 %v1755, %v1771
      %v1773 = vmul.f32 %v1756, %v1771
      %v1774 = vmul.f32 %v1757, %v1771
      %v1775 = vmul.f32 %v1758, %v1771
      %v1776 = vmul.f32 %v1759, %v1771
      %v1777 = vmul.f32 %v1760, %v1771
      %v1778 = vmul.f32 %v1761, %v1771
      %v1779 = vmul.f32 %v1762, %v1771
      %v1780 = vmul.f32 %v1763, %v1771
      %v1781 = vmul.f32 %v1764, %v1771
      %v1782 = vmul.f32 %v1765, %v1771
      %v1783 = vmul.f32 %v1766, %v1771
      %v1784 = vmul.f32 %v1767, %v1771
      %v1785 = vmul.f32 %v1768, %v1771
      %v1786 = vmul.f32 %v1769, %v1771
      %v1787 = vmul.f32 %v1770, %v1771
      %v1788 = vperm.slane %v1411, 0
      %v1789 = vadd.f32 %v1772, %v1788
      %v1790 = vadd.f32 %v1773, %v1788
      %v1791 = vadd.f32 %v1774, %v1788
      %v1792 = vadd.f32 %v1775, %v1788
      %v1793 = vadd.f32 %v1776, %v1788
      %v1794 = vadd.f32 %v1777, %v1788
      %v1795 = vadd.f32 %v1778, %v1788
      %v1796 = vadd.f32 %v1779, %v1788
      %v1797 = vadd.f32 %v1780, %v1788
      %v1798 = vadd.f32 %v1781, %v1788
      %v1799 = vadd.f32 %v1782, %v1788
      %v1800 = vadd.f32 %v1783, %v1788
      %v1801 = vadd.f32 %v1784, %v1788
      %v1802 = vadd.f32 %v1785, %v1788
      %v1803 = vadd.f32 %v1786, %v1788
      %v1804 = vadd.f32 %v1787, %v1788
      %v1805 = vld [vmem:[%s2] sm:$0xff]
      %v1806 = vld [vmem:[%s2 + $0x8] sm:$0xff]
      %v1807 = vld [vmem:[%s2 + $0x10] sm:$0xff]
      %v1808 = vld [vmem:[%s2 + $0x18] sm:$0xff]
      %v1809 = vld [vmem:[%s2 + $0x20] sm:$0xff]
      %v1810 = vld [vmem:[%s2 + $0x28] sm:$0xff]
      %v1811 = vld [vmem:[%s2 + $0x30] sm:$0xff]
      %v1812 = vld [vmem:[%s2 + $0x38] sm:$0xff]
      %v1813 = vpack.c.bf16 %v1790, %v1789
      %v1814 = vpack.c.bf16 %v1792, %v1791
      %v1815 = vpack.c.bf16 %v1794, %v1793
      %v1816 = vpack.c.bf16 %v1796, %v1795
      %v1817 = vpack.c.bf16 %v1798, %v1797
      %v1818 = vpack.c.bf16 %v1800, %v1799
      %v1819 = vpack.c.bf16 %v1802, %v1801
      %v1820 = vpack.c.bf16 %v1804, %v1803
      %v1821 = vpack.c.bf16 %v1806, %v1805
      %v1822 = vpack.c.bf16 %v1808, %v1807
      %v1823 = vpack.c.bf16 %v1810, %v1809
      %v1824 = vpack.c.bf16 %v1812, %v1811
      %v1825 = vld [vmem:[%s4] sm:$0x1]
      %v1826 = vperm.slane %v1825, 0
      %v1828 = vsel %vm267, %v1813, 0
      %v1831 = vsel %vm267, %v1814, 0
      %v1834 = vsel %vm267, %v1815, 0
      %v1837 = vsel %vm267, %v1816, 0
      %v1840 = vsel %vm267, %v1817, 0
      %v1843 = vsel %vm267, %v1818, 0
      %v1846 = vsel %vm267, %v1819, 0
      %v1849 = vsel %vm267, %v1820, 0
      %1851 = vmatpush.bf16.msra.mxu0 0
      %1852 = vmatpush.bf16.msra.mxu0 0
      %1853 = vmatpush.bf16.msra.mxu0 0
      %1854 = vmatpush.bf16.msra.mxu0 0
      %1855 = vmatpush.bf16.msra.mxu0 %v1824
      %1856 = vmatpush.bf16.msra.mxu0 %v1823
      %1857 = vmatpush.bf16.msra.mxu0 %v1822
      %1858 = vmatpush.bf16.msra.mxu0 %v1821
      %1859 = vmatmul.bf16.gmra.mxu0 %v1828
      %v1860 = vpop.f32.mrf.mxu0
      %v1861 = vadd.f32 %v1826, %v1860
      %v1862 = vpop.f32.mrf.mxu0
      %v1863 = vadd.f32 %v1826, %v1862
      %1864 = vmatmul.bf16.gmra.mxu0 %v1831
      %v1865 = vpop.f32.mrf.mxu0
      %v1866 = vadd.f32 %v1826, %v1865
      %v1867 = vpop.f32.mrf.mxu0
      %v1868 = vadd.f32 %v1826, %v1867
      %1869 = vmatmul.bf16.gmra.mxu0 %v1834
      %v1870 = vpop.f32.mrf.mxu0
      %v1871 = vadd.f32 %v1826, %v1870
      %v1872 = vpop.f32.mrf.mxu0
      %v1873 = vadd.f32 %v1826, %v1872
      %1874 = vmatmul.bf16.gmra.mxu0 %v1837
      %v1875 = vpop.f32.mrf.mxu0
      %v1876 = vadd.f32 %v1826, %v1875
      %v1877 = vpop.f32.mrf.mxu0
      %v1878 = vadd.f32 %v1826, %v1877
      %1879 = vmatmul.bf16.gmra.mxu0 %v1840
      %v1880 = vpop.f32.mrf.mxu0
      %v1881 = vadd.f32 %v1826, %v1880
      %v1882 = vpop.f32.mrf.mxu0
      %v1883 = vadd.f32 %v1826, %v1882
      %1884 = vmatmul.bf16.gmra.mxu0 %v1843
      %v1885 = vpop.f32.mrf.mxu0
      %v1886 = vadd.f32 %v1826, %v1885
      %v1887 = vpop.f32.mrf.mxu0
      %v1888 = vadd.f32 %v1826, %v1887
      %1889 = vmatmul.bf16.gmra.mxu0 %v1846
      %v1890 = vpop.f32.mrf.mxu0
      %v1891 = vadd.f32 %v1826, %v1890
      %v1892 = vpop.f32.mrf.mxu0
      %v1893 = vadd.f32 %v1826, %v1892
      %1894 = vmatmul.bf16.gmra.mxu0 %v1849
      %v1895 = vpop.f32.mrf.mxu0
      %v1896 = vadd.f32 %v1826, %v1895
      %v1897 = vpop.f32.mrf.mxu0
      %v1898 = vadd.f32 %v1826, %v1897
      %1899 = vdwg.mxu0
      %v1900 = vmax.f32 %v1861, 0.0
      %v1901 = vmax.f32 %v1863, 0.0
      %v1902 = vmax.f32 %v1866, 0.0
      %v1903 = vmax.f32 %v1868, 0.0
      %v1904 = vmax.f32 %v1871, 0.0
      %v1905 = vmax.f32 %v1873, 0.0
      %v1906 = vmax.f32 %v1876, 0.0
      %v1907 = vmax.f32 %v1878, 0.0
      %v1908 = vmax.f32 %v1881, 0.0
      %v1909 = vmax.f32 %v1883, 0.0
      %v1910 = vmax.f32 %v1886, 0.0
      %v1911 = vmax.f32 %v1888, 0.0
      %v1912 = vmax.f32 %v1891, 0.0
      %v1913 = vmax.f32 %v1893, 0.0
      %v1914 = vmax.f32 %v1896, 0.0
      %v1915 = vmax.f32 %v1898, 0.0
      %v1916 = vld [vmem:[%s1 + $0x140] sm:$0xff]
      %v1917 = vld [vmem:[%s1 + $0x148] sm:$0xff]
      %v1918 = vld [vmem:[%s1 + $0x150] sm:$0xff]
      %v1919 = vld [vmem:[%s1 + $0x158] sm:$0xff]
      %v1920 = vld [vmem:[%s1 + $0x160] sm:$0xff]
      %v1921 = vld [vmem:[%s1 + $0x168] sm:$0xff]
      %v1922 = vld [vmem:[%s1 + $0x170] sm:$0xff]
      %v1923 = vld [vmem:[%s1 + $0x178] sm:$0xff]
      %v1924 = vld [vmem:[%s1 + $0x180] sm:$0xff]
      %v1925 = vld [vmem:[%s1 + $0x188] sm:$0xff]
      %v1926 = vld [vmem:[%s1 + $0x190] sm:$0xff]
      %v1927 = vld [vmem:[%s1 + $0x198] sm:$0xff]
      %v1928 = vld [vmem:[%s1 + $0x1a0] sm:$0xff]
      %v1929 = vld [vmem:[%s1 + $0x1a8] sm:$0xff]
      %v1930 = vld [vmem:[%s1 + $0x1b0] sm:$0xff]
      %v1931 = vld [vmem:[%s1 + $0x1b8] sm:$0xff]
      %v1932 = vpack.c.bf16 %v1901, %v1900
      %v1933 = vpack.c.bf16 %v1903, %v1902
      %v1934 = vpack.c.bf16 %v1905, %v1904
      %v1935 = vpack.c.bf16 %v1907, %v1906
      %v1936 = vpack.c.bf16 %v1909, %v1908
      %v1937 = vpack.c.bf16 %v1911, %v1910
      %v1938 = vpack.c.bf16 %v1913, %v1912
      %v1939 = vpack.c.bf16 %v1915, %v1914
      %v1940 = vpack.c.bf16 %v1917, %v1916
      %v1941 = vpack.c.bf16 %v1919, %v1918
      %v1942 = vpack.c.bf16 %v1921, %v1920
      %v1943 = vpack.c.bf16 %v1923, %v1922
      %v1944 = vpack.c.bf16 %v1925, %v1924
      %v1945 = vpack.c.bf16 %v1927, %v1926
      %v1946 = vpack.c.bf16 %v1929, %v1928
      %v1947 = vpack.c.bf16 %v1931, %v1930
      %v1948 = vld [vmem:[%s3 + $0x38] sm:$0x1]
      %v1949 = vperm.slane %v1948, 0
      %1950 = vmatpush.bf16.msra.mxu0 %v1947
      %1951 = vmatpush.bf16.msra.mxu0 %v1946
      %1952 = vmatpush.bf16.msra.mxu0 %v1945
      %1953 = vmatpush.bf16.msra.mxu0 %v1944
      %1954 = vmatpush.bf16.msra.mxu0 %v1943
      %1955 = vmatpush.bf16.msra.mxu0 %v1942
      %1956 = vmatpush.bf16.msra.mxu0 %v1941
      %1957 = vmatpush.bf16.msra.mxu0 %v1940
      %1958 = vmatmul.bf16.gmra.mxu0 %v1932
      %v1959 = vpop.f32.mrf.mxu0
      %v1960 = vadd.f32 %v1949, %v1959
      %v1961 = vpop.f32.mrf.mxu0
      %v1962 = vadd.f32 %v1949, %v1961
      %1963 = vmatmul.bf16.gmra.mxu0 %v1933
      %v1964 = vpop.f32.mrf.mxu0
      %v1965 = vadd.f32 %v1949, %v1964
      %v1966 = vpop.f32.mrf.mxu0
      %v1967 = vadd.f32 %v1949, %v1966
      %1968 = vmatmul.bf16.gmra.mxu0 %v1934
      %v1969 = vpop.f32.mrf.mxu0
      %v1970 = vadd.f32 %v1949, %v1969
      %v1971 = vpop.f32.mrf.mxu0
      %v1972 = vadd.f32 %v1949, %v1971
      %1973 = vmatmul.bf16.gmra.mxu0 %v1935
      %v1974 = vpop.f32.mrf.mxu0
      %v1975 = vadd.f32 %v1949, %v1974
      %v1976 = vpop.f32.mrf.mxu0
      %v1977 = vadd.f32 %v1949, %v1976
      %1978 = vmatmul.bf16.gmra.mxu0 %v1936
      %v1979 = vpop.f32.mrf.mxu0
      %v1980 = vadd.f32 %v1949, %v1979
      %v1981 = vpop.f32.mrf.mxu0
      %v1982 = vadd.f32 %v1949, %v1981
      %1983 = vmatmul.bf16.gmra.mxu0 %v1937
      %v1984 = vpop.f32.mrf.mxu0
      %v1985 = vadd.f32 %v1949, %v1984
      %v1986 = vpop.f32.mrf.mxu0
      %v1987 = vadd.f32 %v1949, %v1986
      %1988 = vmatmul.bf16.gmra.mxu0 %v1938
      %v1989 = vpop.f32.mrf.mxu0
      %v1990 = vadd.f32 %v1949, %v1989
      %v1991 = vpop.f32.mrf.mxu0
      %v1992 = vadd.f32 %v1949, %v1991
      %1993 = vmatmul.bf16.gmra.mxu0 %v1939
      %v1994 = vpop.f32.mrf.mxu0
      %v1995 = vadd.f32 %v1949, %v1994
      %v1996 = vpop.f32.mrf.mxu0
      %v1997 = vadd.f32 %v1949, %v1996
      %1998 = vdwg.mxu0
      %v1999 = vadd.f32 %v1789, %v1960
      %v2000 = vadd.f32 %v1790, %v1962
      %v2001 = vadd.f32 %v1791, %v1965
      %v2002 = vadd.f32 %v1792, %v1967
      %v2003 = vadd.f32 %v1793, %v1970
      %v2004 = vadd.f32 %v1794, %v1972
      %v2005 = vadd.f32 %v1795, %v1975
      %v2006 = vadd.f32 %v1796, %v1977
      %v2007 = vadd.f32 %v1797, %v1980
      %v2008 = vadd.f32 %v1798, %v1982
      %v2009 = vadd.f32 %v1799, %v1985
      %v2010 = vadd.f32 %v1800, %v1987
      %v2011 = vadd.f32 %v1801, %v1990
      %v2012 = vadd.f32 %v1802, %v1992
      %v2013 = vadd.f32 %v1803, %v1995
      %v2014 = vadd.f32 %v1804, %v1997
      %v2015 = vld [vmem:[%s3 + $0x40] sm:$0x1]
      %v2016 = vld [vmem:[%s3 + $0x48] sm:$0x1]
      %v2017 = vsel %vm267, %v1999, 0.0
      %2018 = vadd.xlane.f32.xlu0 %v2017
      %v2019 = vpop.xlane.xlu0 %2018
      %v2020 = vsel %vm267, %v2000, 0.0
      %2021 = vadd.xlane.f32.xlu0 %v2020
      %v2022 = vpop.xlane.xlu0 %2021
      %v2023 = vsel %vm267, %v2001, 0.0
      %2024 = vadd.xlane.f32.xlu0 %v2023
      %v2025 = vpop.xlane.xlu0 %2024
      %v2026 = vsel %vm267, %v2002, 0.0
      %2027 = vadd.xlane.f32.xlu0 %v2026
      %v2028 = vpop.xlane.xlu0 %2027
      %v2029 = vsel %vm267, %v2003, 0.0
      %2030 = vadd.xlane.f32.xlu0 %v2029
      %v2031 = vpop.xlane.xlu0 %2030
      %v2032 = vsel %vm267, %v2004, 0.0
      %2033 = vadd.xlane.f32.xlu0 %v2032
      %v2034 = vpop.xlane.xlu0 %2033
      %v2035 = vsel %vm267, %v2005, 0.0
      %2036 = vadd.xlane.f32.xlu0 %v2035
      %v2037 = vpop.xlane.xlu0 %2036
      %v2038 = vsel %vm267, %v2006, 0.0
      %2039 = vadd.xlane.f32.xlu0 %v2038
      %v2040 = vpop.xlane.xlu0 %2039
      %v2041 = vsel %vm267, %v2007, 0.0
      %2042 = vadd.xlane.f32.xlu0 %v2041
      %v2043 = vpop.xlane.xlu0 %2042
      %v2044 = vsel %vm267, %v2008, 0.0
      %2045 = vadd.xlane.f32.xlu0 %v2044
      %v2046 = vpop.xlane.xlu0 %2045
      %v2047 = vsel %vm267, %v2009, 0.0
      %2048 = vadd.xlane.f32.xlu0 %v2047
      %v2049 = vpop.xlane.xlu0 %2048
      %v2050 = vsel %vm267, %v2010, 0.0
      %2051 = vadd.xlane.f32.xlu0 %v2050
      %v2052 = vpop.xlane.xlu0 %2051
      %v2053 = vsel %vm267, %v2011, 0.0
      %2054 = vadd.xlane.f32.xlu0 %v2053
      %v2055 = vpop.xlane.xlu0 %2054
      %v2056 = vsel %vm267, %v2012, 0.0
      %2057 = vadd.xlane.f32.xlu0 %v2056
      %v2058 = vpop.xlane.xlu0 %2057
      %v2059 = vsel %vm267, %v2013, 0.0
      %2060 = vadd.xlane.f32.xlu0 %v2059
      %v2061 = vpop.xlane.xlu0 %2060
      %v2062 = vsel %vm267, %v2014, 0.0
      %2063 = vadd.xlane.f32.xlu0 %v2062
      %v2064 = vpop.xlane.xlu0 %2063
      %v2065 = vmul.f32 %v2019, %v1466
      %v2066 = vmul.f32 %v2022, %v1466
      %v2067 = vmul.f32 %v2025, %v1466
      %v2068 = vmul.f32 %v2028, %v1466
      %v2069 = vmul.f32 %v2031, %v1466
      %v2070 = vmul.f32 %v2034, %v1466
      %v2071 = vmul.f32 %v2037, %v1466
      %v2072 = vmul.f32 %v2040, %v1466
      %v2073 = vmul.f32 %v2043, %v1466
      %v2074 = vmul.f32 %v2046, %v1466
      %v2075 = vmul.f32 %v2049, %v1466
      %v2076 = vmul.f32 %v2052, %v1466
      %v2077 = vmul.f32 %v2055, %v1466
      %v2078 = vmul.f32 %v2058, %v1466
      %v2079 = vmul.f32 %v2061, %v1466
      %v2080 = vmul.f32 %v2064, %v1466
      %v2081 = vsub.f32 %v1999, %v2065
      %v2082 = vsub.f32 %v2000, %v2066
      %v2083 = vsub.f32 %v2001, %v2067
      %v2084 = vsub.f32 %v2002, %v2068
      %v2085 = vsub.f32 %v2003, %v2069
      %v2086 = vsub.f32 %v2004, %v2070
      %v2087 = vsub.f32 %v2005, %v2071
      %v2088 = vsub.f32 %v2006, %v2072
      %v2089 = vsub.f32 %v2007, %v2073
      %v2090 = vsub.f32 %v2008, %v2074
      %v2091 = vsub.f32 %v2009, %v2075
      %v2092 = vsub.f32 %v2010, %v2076
      %v2093 = vsub.f32 %v2011, %v2077
      %v2094 = vsub.f32 %v2012, %v2078
      %v2095 = vsub.f32 %v2013, %v2079
      %v2096 = vsub.f32 %v2014, %v2080
      %v2097 = vmul.f32 %v2081, %v2081
      %v2098 = vmul.f32 %v2082, %v2082
      %v2099 = vmul.f32 %v2083, %v2083
      %v2100 = vmul.f32 %v2084, %v2084
      %v2101 = vmul.f32 %v2085, %v2085
      %v2102 = vmul.f32 %v2086, %v2086
      %v2103 = vmul.f32 %v2087, %v2087
      %v2104 = vmul.f32 %v2088, %v2088
      %v2105 = vmul.f32 %v2089, %v2089
      %v2106 = vmul.f32 %v2090, %v2090
      %v2107 = vmul.f32 %v2091, %v2091
      %v2108 = vmul.f32 %v2092, %v2092
      %v2109 = vmul.f32 %v2093, %v2093
      %v2110 = vmul.f32 %v2094, %v2094
      %v2111 = vmul.f32 %v2095, %v2095
      %v2112 = vmul.f32 %v2096, %v2096
      %v2113 = vsel %vm267, %v2097, 0.0
      %2114 = vadd.xlane.f32.xlu0 %v2113
      %v2115 = vpop.xlane.xlu0 %2114
      %v2116 = vsel %vm267, %v2098, 0.0
      %2117 = vadd.xlane.f32.xlu0 %v2116
      %v2118 = vpop.xlane.xlu0 %2117
      %v2119 = vsel %vm267, %v2099, 0.0
      %2120 = vadd.xlane.f32.xlu0 %v2119
      %v2121 = vpop.xlane.xlu0 %2120
      %v2122 = vsel %vm267, %v2100, 0.0
      %2123 = vadd.xlane.f32.xlu0 %v2122
      %v2124 = vpop.xlane.xlu0 %2123
      %v2125 = vsel %vm267, %v2101, 0.0
      %2126 = vadd.xlane.f32.xlu0 %v2125
      %v2127 = vpop.xlane.xlu0 %2126
      %v2128 = vsel %vm267, %v2102, 0.0
      %2129 = vadd.xlane.f32.xlu0 %v2128
      %v2130 = vpop.xlane.xlu0 %2129
      %v2131 = vsel %vm267, %v2103, 0.0
      %2132 = vadd.xlane.f32.xlu0 %v2131
      %v2133 = vpop.xlane.xlu0 %2132
      %v2134 = vsel %vm267, %v2104, 0.0
      %2135 = vadd.xlane.f32.xlu0 %v2134
      %v2136 = vpop.xlane.xlu0 %2135
      %v2137 = vsel %vm267, %v2105, 0.0
      %2138 = vadd.xlane.f32.xlu0 %v2137
      %v2139 = vpop.xlane.xlu0 %2138
      %v2140 = vsel %vm267, %v2106, 0.0
      %2141 = vadd.xlane.f32.xlu0 %v2140
      %v2142 = vpop.xlane.xlu0 %2141
      %v2143 = vsel %vm267, %v2107, 0.0
      %2144 = vadd.xlane.f32.xlu0 %v2143
      %v2145 = vpop.xlane.xlu0 %2144
      %v2146 = vsel %vm267, %v2108, 0.0
      %2147 = vadd.xlane.f32.xlu0 %v2146
      %v2148 = vpop.xlane.xlu0 %2147
      %v2149 = vsel %vm267, %v2109, 0.0
      %2150 = vadd.xlane.f32.xlu0 %v2149
      %v2151 = vpop.xlane.xlu0 %2150
      %v2152 = vsel %vm267, %v2110, 0.0
      %2153 = vadd.xlane.f32.xlu0 %v2152
      %v2154 = vpop.xlane.xlu0 %2153
      %v2155 = vsel %vm267, %v2111, 0.0
      %2156 = vadd.xlane.f32.xlu0 %v2155
      %v2157 = vpop.xlane.xlu0 %2156
      %v2158 = vsel %vm267, %v2112, 0.0
      %2159 = vadd.xlane.f32.xlu0 %v2158
      %v2160 = vpop.xlane.xlu0 %2159
      %v2161 = vmul.f32 %v2115, %v1466
      %v2162 = vmul.f32 %v2118, %v1466
      %v2163 = vmul.f32 %v2121, %v1466
      %v2164 = vmul.f32 %v2124, %v1466
      %v2165 = vmul.f32 %v2127, %v1466
      %v2166 = vmul.f32 %v2130, %v1466
      %v2167 = vmul.f32 %v2133, %v1466
      %v2168 = vmul.f32 %v2136, %v1466
      %v2169 = vmul.f32 %v2139, %v1466
      %v2170 = vmul.f32 %v2142, %v1466
      %v2171 = vmul.f32 %v2145, %v1466
      %v2172 = vmul.f32 %v2148, %v1466
      %v2173 = vmul.f32 %v2151, %v1466
      %v2174 = vmul.f32 %v2154, %v1466
      %v2175 = vmul.f32 %v2157, %v1466
      %v2176 = vmul.f32 %v2160, %v1466
      %v2177 = vadd.f32 %v2161, 1e-05
      %v2178 = vadd.f32 %v2162, 1e-05
      %v2179 = vadd.f32 %v2163, 1e-05
      %v2180 = vadd.f32 %v2164, 1e-05
      %v2181 = vadd.f32 %v2165, 1e-05
      %v2182 = vadd.f32 %v2166, 1e-05
      %v2183 = vadd.f32 %v2167, 1e-05
      %v2184 = vadd.f32 %v2168, 1e-05
      %v2185 = vadd.f32 %v2169, 1e-05
      %v2186 = vadd.f32 %v2170, 1e-05
      %v2187 = vadd.f32 %v2171, 1e-05
      %v2188 = vadd.f32 %v2172, 1e-05
      %v2189 = vadd.f32 %v2173, 1e-05
      %v2190 = vadd.f32 %v2174, 1e-05
      %v2191 = vadd.f32 %v2175, 1e-05
      %v2192 = vadd.f32 %v2176, 1e-05
      %v2193 = vrsqrt.pop %v2177
      %v2194 = vmul.f32 %v2193, %v2177
      %v2195 = vmul.f32 %v2194, %v2193
      %v2196 = vmul.f32 0.5, %v2195
      %v2197 = vsub.f32 1.5, %v2196
      %v2198 = vmul.f32 %v2193, %v2197
      %vm2199 = vweird.f32 %v2177
      %vm2200 = vweird.f32 %v2193
      %vm2201 = vmor %vm2199, %vm2200
      %v2202 = vsel %vm2201, %v2193, %v2198
      %v2203 = vrsqrt.pop %v2178
      %v2204 = vmul.f32 %v2203, %v2178
      %v2205 = vmul.f32 %v2204, %v2203
      %v2206 = vmul.f32 0.5, %v2205
      %v2207 = vsub.f32 1.5, %v2206
      %v2208 = vmul.f32 %v2203, %v2207
      %vm2209 = vweird.f32 %v2178
      %vm2210 = vweird.f32 %v2203
      %vm2211 = vmor %vm2209, %vm2210
      %v2212 = vsel %vm2211, %v2203, %v2208
      %v2213 = vrsqrt.pop %v2179
      %v2214 = vmul.f32 %v2213, %v2179
      %v2215 = vmul.f32 %v2214, %v2213
      %v2216 = vmul.f32 0.5, %v2215
      %v2217 = vsub.f32 1.5, %v2216
      %v2218 = vmul.f32 %v2213, %v2217
      %vm2219 = vweird.f32 %v2179
      %vm2220 = vweird.f32 %v2213
      %vm2221 = vmor %vm2219, %vm2220
      %v2222 = vsel %vm2221, %v2213, %v2218
      %v2223 = vrsqrt.pop %v2180
      %v2224 = vmul.f32 %v2223, %v2180
      %v2225 = vmul.f32 %v2224, %v2223
      %v2226 = vmul.f32 0.5, %v2225
      %v2227 = vsub.f32 1.5, %v2226
      %v2228 = vmul.f32 %v2223, %v2227
      %vm2229 = vweird.f32 %v2180
      %vm2230 = vweird.f32 %v2223
      %vm2231 = vmor %vm2229, %vm2230
      %v2232 = vsel %vm2231, %v2223, %v2228
      %v2233 = vrsqrt.pop %v2181
      %v2234 = vmul.f32 %v2233, %v2181
      %v2235 = vmul.f32 %v2234, %v2233
      %v2236 = vmul.f32 0.5, %v2235
      %v2237 = vsub.f32 1.5, %v2236
      %v2238 = vmul.f32 %v2233, %v2237
      %vm2239 = vweird.f32 %v2181
      %vm2240 = vweird.f32 %v2233
      %vm2241 = vmor %vm2239, %vm2240
      %v2242 = vsel %vm2241, %v2233, %v2238
      %v2243 = vrsqrt.pop %v2182
      %v2244 = vmul.f32 %v2243, %v2182
      %v2245 = vmul.f32 %v2244, %v2243
      %v2246 = vmul.f32 0.5, %v2245
      %v2247 = vsub.f32 1.5, %v2246
      %v2248 = vmul.f32 %v2243, %v2247
      %vm2249 = vweird.f32 %v2182
      %vm2250 = vweird.f32 %v2243
      %vm2251 = vmor %vm2249, %vm2250
      %v2252 = vsel %vm2251, %v2243, %v2248
      %v2253 = vrsqrt.pop %v2183
      %v2254 = vmul.f32 %v2253, %v2183
      %v2255 = vmul.f32 %v2254, %v2253
      %v2256 = vmul.f32 0.5, %v2255
      %v2257 = vsub.f32 1.5, %v2256
      %v2258 = vmul.f32 %v2253, %v2257
      %vm2259 = vweird.f32 %v2183
      %vm2260 = vweird.f32 %v2253
      %vm2261 = vmor %vm2259, %vm2260
      %v2262 = vsel %vm2261, %v2253, %v2258
      %v2263 = vrsqrt.pop %v2184
      %v2264 = vmul.f32 %v2263, %v2184
      %v2265 = vmul.f32 %v2264, %v2263
      %v2266 = vmul.f32 0.5, %v2265
      %v2267 = vsub.f32 1.5, %v2266
      %v2268 = vmul.f32 %v2263, %v2267
      %vm2269 = vweird.f32 %v2184
      %vm2270 = vweird.f32 %v2263
      %vm2271 = vmor %vm2269, %vm2270
      %v2272 = vsel %vm2271, %v2263, %v2268
      %v2273 = vrsqrt.pop %v2185
      %v2274 = vmul.f32 %v2273, %v2185
      %v2275 = vmul.f32 %v2274, %v2273
      %v2276 = vmul.f32 0.5, %v2275
      %v2277 = vsub.f32 1.5, %v2276
      %v2278 = vmul.f32 %v2273, %v2277
      %vm2279 = vweird.f32 %v2185
      %vm2280 = vweird.f32 %v2273
      %vm2281 = vmor %vm2279, %vm2280
      %v2282 = vsel %vm2281, %v2273, %v2278
      %v2283 = vrsqrt.pop %v2186
      %v2284 = vmul.f32 %v2283, %v2186
      %v2285 = vmul.f32 %v2284, %v2283
      %v2286 = vmul.f32 0.5, %v2285
      %v2287 = vsub.f32 1.5, %v2286
      %v2288 = vmul.f32 %v2283, %v2287
      %vm2289 = vweird.f32 %v2186
      %vm2290 = vweird.f32 %v2283
      %vm2291 = vmor %vm2289, %vm2290
      %v2292 = vsel %vm2291, %v2283, %v2288
      %v2293 = vrsqrt.pop %v2187
      %v2294 = vmul.f32 %v2293, %v2187
      %v2295 = vmul.f32 %v2294, %v2293
      %v2296 = vmul.f32 0.5, %v2295
      %v2297 = vsub.f32 1.5, %v2296
      %v2298 = vmul.f32 %v2293, %v2297
      %vm2299 = vweird.f32 %v2187
      %vm2300 = vweird.f32 %v2293
      %vm2301 = vmor %vm2299, %vm2300
      %v2302 = vsel %vm2301, %v2293, %v2298
      %v2303 = vrsqrt.pop %v2188
      %v2304 = vmul.f32 %v2303, %v2188
      %v2305 = vmul.f32 %v2304, %v2303
      %v2306 = vmul.f32 0.5, %v2305
      %v2307 = vsub.f32 1.5, %v2306
      %v2308 = vmul.f32 %v2303, %v2307
      %vm2309 = vweird.f32 %v2188
      %vm2310 = vweird.f32 %v2303
      %vm2311 = vmor %vm2309, %vm2310
      %v2312 = vsel %vm2311, %v2303, %v2308
      %v2313 = vrsqrt.pop %v2189
      %v2314 = vmul.f32 %v2313, %v2189
      %v2315 = vmul.f32 %v2314, %v2313
      %v2316 = vmul.f32 0.5, %v2315
      %v2317 = vsub.f32 1.5, %v2316
      %v2318 = vmul.f32 %v2313, %v2317
      %vm2319 = vweird.f32 %v2189
      %vm2320 = vweird.f32 %v2313
      %vm2321 = vmor %vm2319, %vm2320
      %v2322 = vsel %vm2321, %v2313, %v2318
      %v2323 = vrsqrt.pop %v2190
      %v2324 = vmul.f32 %v2323, %v2190
      %v2325 = vmul.f32 %v2324, %v2323
      %v2326 = vmul.f32 0.5, %v2325
      %v2327 = vsub.f32 1.5, %v2326
      %v2328 = vmul.f32 %v2323, %v2327
      %vm2329 = vweird.f32 %v2190
      %vm2330 = vweird.f32 %v2323
      %vm2331 = vmor %vm2329, %vm2330
      %v2332 = vsel %vm2331, %v2323, %v2328
      %v2333 = vrsqrt.pop %v2191
      %v2334 = vmul.f32 %v2333, %v2191
      %v2335 = vmul.f32 %v2334, %v2333
      %v2336 = vmul.f32 0.5, %v2335
      %v2337 = vsub.f32 1.5, %v2336
      %v2338 = vmul.f32 %v2333, %v2337
      %vm2339 = vweird.f32 %v2191
      %vm2340 = vweird.f32 %v2333
      %vm2341 = vmor %vm2339, %vm2340
      %v2342 = vsel %vm2341, %v2333, %v2338
      %v2343 = vrsqrt.pop %v2192
      %v2344 = vmul.f32 %v2343, %v2192
      %v2345 = vmul.f32 %v2344, %v2343
      %v2346 = vmul.f32 0.5, %v2345
      %v2347 = vsub.f32 1.5, %v2346
      %v2348 = vmul.f32 %v2343, %v2347
      %vm2349 = vweird.f32 %v2192
      %vm2350 = vweird.f32 %v2343
      %vm2351 = vmor %vm2349, %vm2350
      %v2352 = vsel %vm2351, %v2343, %v2348
      %v2353 = vmul.f32 %v2081, %v2202
      %v2354 = vmul.f32 %v2082, %v2212
      %v2355 = vmul.f32 %v2083, %v2222
      %v2356 = vmul.f32 %v2084, %v2232
      %v2357 = vmul.f32 %v2085, %v2242
      %v2358 = vmul.f32 %v2086, %v2252
      %v2359 = vmul.f32 %v2087, %v2262
      %v2360 = vmul.f32 %v2088, %v2272
      %v2361 = vmul.f32 %v2089, %v2282
      %v2362 = vmul.f32 %v2090, %v2292
      %v2363 = vmul.f32 %v2091, %v2302
      %v2364 = vmul.f32 %v2092, %v2312
      %v2365 = vmul.f32 %v2093, %v2322
      %v2366 = vmul.f32 %v2094, %v2332
      %v2367 = vmul.f32 %v2095, %v2342
      %v2368 = vmul.f32 %v2096, %v2352
      %v2369 = vperm.slane %v2015, 0
      %v2370 = vmul.f32 %v2353, %v2369
      %v2371 = vmul.f32 %v2354, %v2369
      %v2372 = vmul.f32 %v2355, %v2369
      %v2373 = vmul.f32 %v2356, %v2369
      %v2374 = vmul.f32 %v2357, %v2369
      %v2375 = vmul.f32 %v2358, %v2369
      %v2376 = vmul.f32 %v2359, %v2369
      %v2377 = vmul.f32 %v2360, %v2369
      %v2378 = vmul.f32 %v2361, %v2369
      %v2379 = vmul.f32 %v2362, %v2369
      %v2380 = vmul.f32 %v2363, %v2369
      %v2381 = vmul.f32 %v2364, %v2369
      %v2382 = vmul.f32 %v2365, %v2369
      %v2383 = vmul.f32 %v2366, %v2369
      %v2384 = vmul.f32 %v2367, %v2369
      %v2385 = vmul.f32 %v2368, %v2369
      %v2386 = vperm.slane %v2016, 0
      %v2387 = vadd.f32 %v2370, %v2386
      %v2388 = vadd.f32 %v2371, %v2386
      %v2389 = vadd.f32 %v2372, %v2386
      %v2390 = vadd.f32 %v2373, %v2386
      %v2391 = vadd.f32 %v2374, %v2386
      %v2392 = vadd.f32 %v2375, %v2386
      %v2393 = vadd.f32 %v2376, %v2386
      %v2394 = vadd.f32 %v2377, %v2386
      %v2395 = vadd.f32 %v2378, %v2386
      %v2396 = vadd.f32 %v2379, %v2386
      %v2397 = vadd.f32 %v2380, %v2386
      %v2398 = vadd.f32 %v2381, %v2386
      %v2399 = vadd.f32 %v2382, %v2386
      %v2400 = vadd.f32 %v2383, %v2386
      %v2401 = vadd.f32 %v2384, %v2386
      %v2402 = vadd.f32 %v2385, %v2386
      %v2403 = vld [vmem:[%s3 + $0x50] sm:$0x1]
      %v2404 = vld [vmem:[%s3 + $0x58] sm:$0x1]
      %v2405 = vsel %vm267, %v2387, 0.0
      %2406 = vadd.xlane.f32.xlu0 %v2405
      %v2407 = vpop.xlane.xlu0 %2406
      %v2408 = vsel %vm267, %v2388, 0.0
      %2409 = vadd.xlane.f32.xlu0 %v2408
      %v2410 = vpop.xlane.xlu0 %2409
      %v2411 = vsel %vm267, %v2389, 0.0
      %2412 = vadd.xlane.f32.xlu0 %v2411
      %v2413 = vpop.xlane.xlu0 %2412
      %v2414 = vsel %vm267, %v2390, 0.0
      %2415 = vadd.xlane.f32.xlu0 %v2414
      %v2416 = vpop.xlane.xlu0 %2415
      %v2417 = vsel %vm267, %v2391, 0.0
      %2418 = vadd.xlane.f32.xlu0 %v2417
      %v2419 = vpop.xlane.xlu0 %2418
      %v2420 = vsel %vm267, %v2392, 0.0
      %2421 = vadd.xlane.f32.xlu0 %v2420
      %v2422 = vpop.xlane.xlu0 %2421
      %v2423 = vsel %vm267, %v2393, 0.0
      %2424 = vadd.xlane.f32.xlu0 %v2423
      %v2425 = vpop.xlane.xlu0 %2424
      %v2426 = vsel %vm267, %v2394, 0.0
      %2427 = vadd.xlane.f32.xlu0 %v2426
      %v2428 = vpop.xlane.xlu0 %2427
      %v2429 = vsel %vm267, %v2395, 0.0
      %2430 = vadd.xlane.f32.xlu0 %v2429
      %v2431 = vpop.xlane.xlu0 %2430
      %v2432 = vsel %vm267, %v2396, 0.0
      %2433 = vadd.xlane.f32.xlu0 %v2432
      %v2434 = vpop.xlane.xlu0 %2433
      %v2435 = vsel %vm267, %v2397, 0.0
      %2436 = vadd.xlane.f32.xlu0 %v2435
      %v2437 = vpop.xlane.xlu0 %2436
      %v2438 = vsel %vm267, %v2398, 0.0
      %2439 = vadd.xlane.f32.xlu0 %v2438
      %v2440 = vpop.xlane.xlu0 %2439
      %v2441 = vsel %vm267, %v2399, 0.0
      %2442 = vadd.xlane.f32.xlu0 %v2441
      %v2443 = vpop.xlane.xlu0 %2442
      %v2444 = vsel %vm267, %v2400, 0.0
      %2445 = vadd.xlane.f32.xlu0 %v2444
      %v2446 = vpop.xlane.xlu0 %2445
      %v2447 = vsel %vm267, %v2401, 0.0
      %2448 = vadd.xlane.f32.xlu0 %v2447
      %v2449 = vpop.xlane.xlu0 %2448
      %v2450 = vsel %vm267, %v2402, 0.0
      %2451 = vadd.xlane.f32.xlu0 %v2450
      %v2452 = vpop.xlane.xlu0 %2451
      %v2453 = vmul.f32 %v2407, %v1466
      %v2454 = vmul.f32 %v2410, %v1466
      %v2455 = vmul.f32 %v2413, %v1466
      %v2456 = vmul.f32 %v2416, %v1466
      %v2457 = vmul.f32 %v2419, %v1466
      %v2458 = vmul.f32 %v2422, %v1466
      %v2459 = vmul.f32 %v2425, %v1466
      %v2460 = vmul.f32 %v2428, %v1466
      %v2461 = vmul.f32 %v2431, %v1466
      %v2462 = vmul.f32 %v2434, %v1466
      %v2463 = vmul.f32 %v2437, %v1466
      %v2464 = vmul.f32 %v2440, %v1466
      %v2465 = vmul.f32 %v2443, %v1466
      %v2466 = vmul.f32 %v2446, %v1466
      %v2467 = vmul.f32 %v2449, %v1466
      %v2468 = vmul.f32 %v2452, %v1466
      %v2469 = vsub.f32 %v2387, %v2453
      %v2470 = vsub.f32 %v2388, %v2454
      %v2471 = vsub.f32 %v2389, %v2455
      %v2472 = vsub.f32 %v2390, %v2456
      %v2473 = vsub.f32 %v2391, %v2457
      %v2474 = vsub.f32 %v2392, %v2458
      %v2475 = vsub.f32 %v2393, %v2459
      %v2476 = vsub.f32 %v2394, %v2460
      %v2477 = vsub.f32 %v2395, %v2461
      %v2478 = vsub.f32 %v2396, %v2462
      %v2479 = vsub.f32 %v2397, %v2463
      %v2480 = vsub.f32 %v2398, %v2464
      %v2481 = vsub.f32 %v2399, %v2465
      %v2482 = vsub.f32 %v2400, %v2466
      %v2483 = vsub.f32 %v2401, %v2467
      %v2484 = vsub.f32 %v2402, %v2468
      %v2485 = vmul.f32 %v2469, %v2469
      %v2486 = vmul.f32 %v2470, %v2470
      %v2487 = vmul.f32 %v2471, %v2471
      %v2488 = vmul.f32 %v2472, %v2472
      %v2489 = vmul.f32 %v2473, %v2473
      %v2490 = vmul.f32 %v2474, %v2474
      %v2491 = vmul.f32 %v2475, %v2475
      %v2492 = vmul.f32 %v2476, %v2476
      %v2493 = vmul.f32 %v2477, %v2477
      %v2494 = vmul.f32 %v2478, %v2478
      %v2495 = vmul.f32 %v2479, %v2479
      %v2496 = vmul.f32 %v2480, %v2480
      %v2497 = vmul.f32 %v2481, %v2481
      %v2498 = vmul.f32 %v2482, %v2482
      %v2499 = vmul.f32 %v2483, %v2483
      %v2500 = vmul.f32 %v2484, %v2484
      %v2501 = vsel %vm267, %v2485, 0.0
      %2502 = vadd.xlane.f32.xlu0 %v2501
      %v2503 = vpop.xlane.xlu0 %2502
      %v2504 = vsel %vm267, %v2486, 0.0
      %2505 = vadd.xlane.f32.xlu0 %v2504
      %v2506 = vpop.xlane.xlu0 %2505
      %v2507 = vsel %vm267, %v2487, 0.0
      %2508 = vadd.xlane.f32.xlu0 %v2507
      %v2509 = vpop.xlane.xlu0 %2508
      %v2510 = vsel %vm267, %v2488, 0.0
      %2511 = vadd.xlane.f32.xlu0 %v2510
      %v2512 = vpop.xlane.xlu0 %2511
      %v2513 = vsel %vm267, %v2489, 0.0
      %2514 = vadd.xlane.f32.xlu0 %v2513
      %v2515 = vpop.xlane.xlu0 %2514
      %v2516 = vsel %vm267, %v2490, 0.0
      %2517 = vadd.xlane.f32.xlu0 %v2516
      %v2518 = vpop.xlane.xlu0 %2517
      %v2519 = vsel %vm267, %v2491, 0.0
      %2520 = vadd.xlane.f32.xlu0 %v2519
      %v2521 = vpop.xlane.xlu0 %2520
      %v2522 = vsel %vm267, %v2492, 0.0
      %2523 = vadd.xlane.f32.xlu0 %v2522
      %v2524 = vpop.xlane.xlu0 %2523
      %v2525 = vsel %vm267, %v2493, 0.0
      %2526 = vadd.xlane.f32.xlu0 %v2525
      %v2527 = vpop.xlane.xlu0 %2526
      %v2528 = vsel %vm267, %v2494, 0.0
      %2529 = vadd.xlane.f32.xlu0 %v2528
      %v2530 = vpop.xlane.xlu0 %2529
      %v2531 = vsel %vm267, %v2495, 0.0
      %2532 = vadd.xlane.f32.xlu0 %v2531
      %v2533 = vpop.xlane.xlu0 %2532
      %v2534 = vsel %vm267, %v2496, 0.0
      %2535 = vadd.xlane.f32.xlu0 %v2534
      %v2536 = vpop.xlane.xlu0 %2535
      %v2537 = vsel %vm267, %v2497, 0.0
      %2538 = vadd.xlane.f32.xlu0 %v2537
      %v2539 = vpop.xlane.xlu0 %2538
      %v2540 = vsel %vm267, %v2498, 0.0
      %2541 = vadd.xlane.f32.xlu0 %v2540
      %v2542 = vpop.xlane.xlu0 %2541
      %v2543 = vsel %vm267, %v2499, 0.0
      %2544 = vadd.xlane.f32.xlu0 %v2543
      %v2545 = vpop.xlane.xlu0 %2544
      %v2546 = vsel %vm267, %v2500, 0.0
      %2547 = vadd.xlane.f32.xlu0 %v2546
      %v2548 = vpop.xlane.xlu0 %2547
      %v2549 = vmul.f32 %v2503, %v1466
      %v2550 = vmul.f32 %v2506, %v1466
      %v2551 = vmul.f32 %v2509, %v1466
      %v2552 = vmul.f32 %v2512, %v1466
      %v2553 = vmul.f32 %v2515, %v1466
      %v2554 = vmul.f32 %v2518, %v1466
      %v2555 = vmul.f32 %v2521, %v1466
      %v2556 = vmul.f32 %v2524, %v1466
      %v2557 = vmul.f32 %v2527, %v1466
      %v2558 = vmul.f32 %v2530, %v1466
      %v2559 = vmul.f32 %v2533, %v1466
      %v2560 = vmul.f32 %v2536, %v1466
      %v2561 = vmul.f32 %v2539, %v1466
      %v2562 = vmul.f32 %v2542, %v1466
      %v2563 = vmul.f32 %v2545, %v1466
      %v2564 = vmul.f32 %v2548, %v1466
      %v2565 = vadd.f32 %v2549, 1e-05
      %v2566 = vadd.f32 %v2550, 1e-05
      %v2567 = vadd.f32 %v2551, 1e-05
      %v2568 = vadd.f32 %v2552, 1e-05
      %v2569 = vadd.f32 %v2553, 1e-05
      %v2570 = vadd.f32 %v2554, 1e-05
      %v2571 = vadd.f32 %v2555, 1e-05
      %v2572 = vadd.f32 %v2556, 1e-05
      %v2573 = vadd.f32 %v2557, 1e-05
      %v2574 = vadd.f32 %v2558, 1e-05
      %v2575 = vadd.f32 %v2559, 1e-05
      %v2576 = vadd.f32 %v2560, 1e-05
      %v2577 = vadd.f32 %v2561, 1e-05
      %v2578 = vadd.f32 %v2562, 1e-05
      %v2579 = vadd.f32 %v2563, 1e-05
      %v2580 = vadd.f32 %v2564, 1e-05
      %v2581 = vrsqrt.pop %v2565
      %v2582 = vmul.f32 %v2581, %v2565
      %v2583 = vmul.f32 %v2582, %v2581
      %v2584 = vmul.f32 0.5, %v2583
      %v2585 = vsub.f32 1.5, %v2584
      %v2586 = vmul.f32 %v2581, %v2585
      %vm2587 = vweird.f32 %v2565
      %vm2588 = vweird.f32 %v2581
      %vm2589 = vmor %vm2587, %vm2588
      %v2590 = vsel %vm2589, %v2581, %v2586
      %v2591 = vrsqrt.pop %v2566
      %v2592 = vmul.f32 %v2591, %v2566
      %v2593 = vmul.f32 %v2592, %v2591
      %v2594 = vmul.f32 0.5, %v2593
      %v2595 = vsub.f32 1.5, %v2594
      %v2596 = vmul.f32 %v2591, %v2595
      %vm2597 = vweird.f32 %v2566
      %vm2598 = vweird.f32 %v2591
      %vm2599 = vmor %vm2597, %vm2598
      %v2600 = vsel %vm2599, %v2591, %v2596
      %v2601 = vrsqrt.pop %v2567
      %v2602 = vmul.f32 %v2601, %v2567
      %v2603 = vmul.f32 %v2602, %v2601
      %v2604 = vmul.f32 0.5, %v2603
      %v2605 = vsub.f32 1.5, %v2604
      %v2606 = vmul.f32 %v2601, %v2605
      %vm2607 = vweird.f32 %v2567
      %vm2608 = vweird.f32 %v2601
      %vm2609 = vmor %vm2607, %vm2608
      %v2610 = vsel %vm2609, %v2601, %v2606
      %v2611 = vrsqrt.pop %v2568
      %v2612 = vmul.f32 %v2611, %v2568
      %v2613 = vmul.f32 %v2612, %v2611
      %v2614 = vmul.f32 0.5, %v2613
      %v2615 = vsub.f32 1.5, %v2614
      %v2616 = vmul.f32 %v2611, %v2615
      %vm2617 = vweird.f32 %v2568
      %vm2618 = vweird.f32 %v2611
      %vm2619 = vmor %vm2617, %vm2618
      %v2620 = vsel %vm2619, %v2611, %v2616
      %v2621 = vrsqrt.pop %v2569
      %v2622 = vmul.f32 %v2621, %v2569
      %v2623 = vmul.f32 %v2622, %v2621
      %v2624 = vmul.f32 0.5, %v2623
      %v2625 = vsub.f32 1.5, %v2624
      %v2626 = vmul.f32 %v2621, %v2625
      %vm2627 = vweird.f32 %v2569
      %vm2628 = vweird.f32 %v2621
      %vm2629 = vmor %vm2627, %vm2628
      %v2630 = vsel %vm2629, %v2621, %v2626
      %v2631 = vrsqrt.pop %v2570
      %v2632 = vmul.f32 %v2631, %v2570
      %v2633 = vmul.f32 %v2632, %v2631
      %v2634 = vmul.f32 0.5, %v2633
      %v2635 = vsub.f32 1.5, %v2634
      %v2636 = vmul.f32 %v2631, %v2635
      %vm2637 = vweird.f32 %v2570
      %vm2638 = vweird.f32 %v2631
      %vm2639 = vmor %vm2637, %vm2638
      %v2640 = vsel %vm2639, %v2631, %v2636
      %v2641 = vrsqrt.pop %v2571
      %v2642 = vmul.f32 %v2641, %v2571
      %v2643 = vmul.f32 %v2642, %v2641
      %v2644 = vmul.f32 0.5, %v2643
      %v2645 = vsub.f32 1.5, %v2644
      %v2646 = vmul.f32 %v2641, %v2645
      %vm2647 = vweird.f32 %v2571
      %vm2648 = vweird.f32 %v2641
      %vm2649 = vmor %vm2647, %vm2648
      %v2650 = vsel %vm2649, %v2641, %v2646
      %v2651 = vrsqrt.pop %v2572
      %v2652 = vmul.f32 %v2651, %v2572
      %v2653 = vmul.f32 %v2652, %v2651
      %v2654 = vmul.f32 0.5, %v2653
      %v2655 = vsub.f32 1.5, %v2654
      %v2656 = vmul.f32 %v2651, %v2655
      %vm2657 = vweird.f32 %v2572
      %vm2658 = vweird.f32 %v2651
      %vm2659 = vmor %vm2657, %vm2658
      %v2660 = vsel %vm2659, %v2651, %v2656
      %v2661 = vrsqrt.pop %v2573
      %v2662 = vmul.f32 %v2661, %v2573
      %v2663 = vmul.f32 %v2662, %v2661
      %v2664 = vmul.f32 0.5, %v2663
      %v2665 = vsub.f32 1.5, %v2664
      %v2666 = vmul.f32 %v2661, %v2665
      %vm2667 = vweird.f32 %v2573
      %vm2668 = vweird.f32 %v2661
      %vm2669 = vmor %vm2667, %vm2668
      %v2670 = vsel %vm2669, %v2661, %v2666
      %v2671 = vrsqrt.pop %v2574
      %v2672 = vmul.f32 %v2671, %v2574
      %v2673 = vmul.f32 %v2672, %v2671
      %v2674 = vmul.f32 0.5, %v2673
      %v2675 = vsub.f32 1.5, %v2674
      %v2676 = vmul.f32 %v2671, %v2675
      %vm2677 = vweird.f32 %v2574
      %vm2678 = vweird.f32 %v2671
      %vm2679 = vmor %vm2677, %vm2678
      %v2680 = vsel %vm2679, %v2671, %v2676
      %v2681 = vrsqrt.pop %v2575
      %v2682 = vmul.f32 %v2681, %v2575
      %v2683 = vmul.f32 %v2682, %v2681
      %v2684 = vmul.f32 0.5, %v2683
      %v2685 = vsub.f32 1.5, %v2684
      %v2686 = vmul.f32 %v2681, %v2685
      %vm2687 = vweird.f32 %v2575
      %vm2688 = vweird.f32 %v2681
      %vm2689 = vmor %vm2687, %vm2688
      %v2690 = vsel %vm2689, %v2681, %v2686
      %v2691 = vrsqrt.pop %v2576
      %v2692 = vmul.f32 %v2691, %v2576
      %v2693 = vmul.f32 %v2692, %v2691
      %v2694 = vmul.f32 0.5, %v2693
      %v2695 = vsub.f32 1.5, %v2694
      %v2696 = vmul.f32 %v2691, %v2695
      %vm2697 = vweird.f32 %v2576
      %vm2698 = vweird.f32 %v2691
      %vm2699 = vmor %vm2697, %vm2698
      %v2700 = vsel %vm2699, %v2691, %v2696
      %v2701 = vrsqrt.pop %v2577
      %v2702 = vmul.f32 %v2701, %v2577
      %v2703 = vmul.f32 %v2702, %v2701
      %v2704 = vmul.f32 0.5, %v2703
      %v2705 = vsub.f32 1.5, %v2704
      %v2706 = vmul.f32 %v2701, %v2705
      %vm2707 = vweird.f32 %v2577
      %vm2708 = vweird.f32 %v2701
      %vm2709 = vmor %vm2707, %vm2708
      %v2710 = vsel %vm2709, %v2701, %v2706
      %v2711 = vrsqrt.pop %v2578
      %v2712 = vmul.f32 %v2711, %v2578
      %v2713 = vmul.f32 %v2712, %v2711
      %v2714 = vmul.f32 0.5, %v2713
      %v2715 = vsub.f32 1.5, %v2714
      %v2716 = vmul.f32 %v2711, %v2715
      %vm2717 = vweird.f32 %v2578
      %vm2718 = vweird.f32 %v2711
      %vm2719 = vmor %vm2717, %vm2718
      %v2720 = vsel %vm2719, %v2711, %v2716
      %v2721 = vrsqrt.pop %v2579
      %v2722 = vmul.f32 %v2721, %v2579
      %v2723 = vmul.f32 %v2722, %v2721
      %v2724 = vmul.f32 0.5, %v2723
      %v2725 = vsub.f32 1.5, %v2724
      %v2726 = vmul.f32 %v2721, %v2725
      %vm2727 = vweird.f32 %v2579
      %vm2728 = vweird.f32 %v2721
      %vm2729 = vmor %vm2727, %vm2728
      %v2730 = vsel %vm2729, %v2721, %v2726
      %v2731 = vrsqrt.pop %v2580
      %v2732 = vmul.f32 %v2731, %v2580
      %v2733 = vmul.f32 %v2732, %v2731
      %v2734 = vmul.f32 0.5, %v2733
      %v2735 = vsub.f32 1.5, %v2734
      %v2736 = vmul.f32 %v2731, %v2735
      %vm2737 = vweird.f32 %v2580
      %vm2738 = vweird.f32 %v2731
      %vm2739 = vmor %vm2737, %vm2738
      %v2740 = vsel %vm2739, %v2731, %v2736
      %v2741 = vmul.f32 %v2469, %v2590
      %v2742 = vmul.f32 %v2470, %v2600
      %v2743 = vmul.f32 %v2471, %v2610
      %v2744 = vmul.f32 %v2472, %v2620
      %v2745 = vmul.f32 %v2473, %v2630
      %v2746 = vmul.f32 %v2474, %v2640
      %v2747 = vmul.f32 %v2475, %v2650
      %v2748 = vmul.f32 %v2476, %v2660
      %v2749 = vmul.f32 %v2477, %v2670
      %v2750 = vmul.f32 %v2478, %v2680
      %v2751 = vmul.f32 %v2479, %v2690
      %v2752 = vmul.f32 %v2480, %v2700
      %v2753 = vmul.f32 %v2481, %v2710
      %v2754 = vmul.f32 %v2482, %v2720
      %v2755 = vmul.f32 %v2483, %v2730
      %v2756 = vmul.f32 %v2484, %v2740
      %v2757 = vperm.slane %v2403, 0
      %v2758 = vmul.f32 %v2741, %v2757
      %v2759 = vmul.f32 %v2742, %v2757
      %v2760 = vmul.f32 %v2743, %v2757
      %v2761 = vmul.f32 %v2744, %v2757
      %v2762 = vmul.f32 %v2745, %v2757
      %v2763 = vmul.f32 %v2746, %v2757
      %v2764 = vmul.f32 %v2747, %v2757
      %v2765 = vmul.f32 %v2748, %v2757
      %v2766 = vmul.f32 %v2749, %v2757
      %v2767 = vmul.f32 %v2750, %v2757
      %v2768 = vmul.f32 %v2751, %v2757
      %v2769 = vmul.f32 %v2752, %v2757
      %v2770 = vmul.f32 %v2753, %v2757
      %v2771 = vmul.f32 %v2754, %v2757
      %v2772 = vmul.f32 %v2755, %v2757
      %v2773 = vmul.f32 %v2756, %v2757
      %v2774 = vperm.slane %v2404, 0
      %v2775 = vadd.f32 %v2758, %v2774
      %v2776 = vadd.f32 %v2759, %v2774
      %v2777 = vadd.f32 %v2760, %v2774
      %v2778 = vadd.f32 %v2761, %v2774
      %v2779 = vadd.f32 %v2762, %v2774
      %v2780 = vadd.f32 %v2763, %v2774
      %v2781 = vadd.f32 %v2764, %v2774
      %v2782 = vadd.f32 %v2765, %v2774
      %v2783 = vadd.f32 %v2766, %v2774
      %v2784 = vadd.f32 %v2767, %v2774
      %v2785 = vadd.f32 %v2768, %v2774
      %v2786 = vadd.f32 %v2769, %v2774
      %v2787 = vadd.f32 %v2770, %v2774
      %v2788 = vadd.f32 %v2771, %v2774
      %v2789 = vadd.f32 %v2772, %v2774
      %v2790 = vadd.f32 %v2773, %v2774
      %v2791 = vsel %vm267, %v2775, -inf
      %v2792 = vsel %vm267, %v2776, -inf
      %v2793 = vmax.f32 %v2791, %v2792
      %v2794 = vrot.slane %v2793, 4
      %v2795 = vmax.f32 %v2793, %v2794
      %v2796 = vrot.slane %v2795, 2
      %v2797 = vmax.f32 %v2795, %v2796
      %v2798 = vrot.slane %v2797, 1
      %v2799 = vmax.f32 %v2797, %v2798
      %v2800 = vsel %vm267, %v2777, -inf
      %v2801 = vsel %vm267, %v2778, -inf
      %v2802 = vmax.f32 %v2800, %v2801
      %v2803 = vrot.slane %v2802, 4
      %v2804 = vmax.f32 %v2802, %v2803
      %v2805 = vrot.slane %v2804, 2
      %v2806 = vmax.f32 %v2804, %v2805
      %v2807 = vrot.slane %v2806, 1
      %v2808 = vmax.f32 %v2806, %v2807
      %v2809 = vsel %vm267, %v2779, -inf
      %v2810 = vsel %vm267, %v2780, -inf
      %v2811 = vmax.f32 %v2809, %v2810
      %v2812 = vrot.slane %v2811, 4
      %v2813 = vmax.f32 %v2811, %v2812
      %v2814 = vrot.slane %v2813, 2
      %v2815 = vmax.f32 %v2813, %v2814
      %v2816 = vrot.slane %v2815, 1
      %v2817 = vmax.f32 %v2815, %v2816
      %v2818 = vsel %vm267, %v2781, -inf
      %v2819 = vsel %vm267, %v2782, -inf
      %v2820 = vmax.f32 %v2818, %v2819
      %v2821 = vrot.slane %v2820, 4
      %v2822 = vmax.f32 %v2820, %v2821
      %v2823 = vrot.slane %v2822, 2
      %v2824 = vmax.f32 %v2822, %v2823
      %v2825 = vrot.slane %v2824, 1
      %v2826 = vmax.f32 %v2824, %v2825
      %v2827 = vsel %vm267, %v2783, -inf
      %v2828 = vsel %vm267, %v2784, -inf
      %v2829 = vmax.f32 %v2827, %v2828
      %v2830 = vrot.slane %v2829, 4
      %v2831 = vmax.f32 %v2829, %v2830
      %v2832 = vrot.slane %v2831, 2
      %v2833 = vmax.f32 %v2831, %v2832
      %v2834 = vrot.slane %v2833, 1
      %v2835 = vmax.f32 %v2833, %v2834
      %v2836 = vsel %vm267, %v2785, -inf
      %v2837 = vsel %vm267, %v2786, -inf
      %v2838 = vmax.f32 %v2836, %v2837
      %v2839 = vrot.slane %v2838, 4
      %v2840 = vmax.f32 %v2838, %v2839
      %v2841 = vrot.slane %v2840, 2
      %v2842 = vmax.f32 %v2840, %v2841
      %v2843 = vrot.slane %v2842, 1
      %v2844 = vmax.f32 %v2842, %v2843
      %v2845 = vsel %vm267, %v2787, -inf
      %v2846 = vsel %vm267, %v2788, -inf
      %v2847 = vmax.f32 %v2845, %v2846
      %v2848 = vrot.slane %v2847, 4
      %v2849 = vmax.f32 %v2847, %v2848
      %v2850 = vrot.slane %v2849, 2
      %v2851 = vmax.f32 %v2849, %v2850
      %v2852 = vrot.slane %v2851, 1
      %v2853 = vmax.f32 %v2851, %v2852
      %v2854 = vsel %vm267, %v2789, -inf
      %v2855 = vsel %vm267, %v2790, -inf
      %v2856 = vmax.f32 %v2854, %v2855
      %v2857 = vrot.slane %v2856, 4
      %v2858 = vmax.f32 %v2856, %v2857
      %v2859 = vrot.slane %v2858, 2
      %v2860 = vmax.f32 %v2858, %v2859
      %v2861 = vrot.slane %v2860, 1
      %v2862 = vmax.f32 %v2860, %v2861
      %v2863 = vmax.f32 %v2799, 0.0
      %v2864 = vmax.f32 %v2808, 0.0
      %v2865 = vmax.f32 %v2817, 0.0
      %v2866 = vmax.f32 %v2826, 0.0
      %v2867 = vmax.f32 %v2835, 0.0
      %v2868 = vmax.f32 %v2844, 0.0
      %v2869 = vmax.f32 %v2853, 0.0
      %v2870 = vmax.f32 %v2862, 0.0
      %v2871 = vld [vmem:[%s2 + $0x40] sm:$0xff]
      %v2872 = vld [vmem:[%s2 + $0x48] sm:$0xff]
      %v2873 = vld [vmem:[%s2 + $0x50] sm:$0xff]
      %v2874 = vld [vmem:[%s2 + $0x58] sm:$0xff]
      %v2875 = vld [vmem:[%s2 + $0x60] sm:$0xff]
      %v2876 = vld [vmem:[%s2 + $0x68] sm:$0xff]
      %v2877 = vld [vmem:[%s2 + $0x70] sm:$0xff]
      %v2878 = vld [vmem:[%s2 + $0x78] sm:$0xff]
      %v2879 = vpack.c.bf16 %v2863, %v2863
      %v2880 = vpack.c.bf16 %v2864, %v2864
      %v2881 = vpack.c.bf16 %v2865, %v2865
      %v2882 = vpack.c.bf16 %v2866, %v2866
      %v2883 = vpack.c.bf16 %v2867, %v2867
      %v2884 = vpack.c.bf16 %v2868, %v2868
      %v2885 = vpack.c.bf16 %v2869, %v2869
      %v2886 = vpack.c.bf16 %v2870, %v2870
      %v2887 = vpack.c.bf16 %v2872, %v2871
      %v2888 = vpack.c.bf16 %v2874, %v2873
      %v2889 = vpack.c.bf16 %v2876, %v2875
      %v2890 = vpack.c.bf16 %v2878, %v2877
      %v2891 = vld [vmem:[%s4 + $0x8] sm:$0x1]
      %v2892 = vperm.slane %v2891, 0
      %v2901 = vunpack.c.l.b16 %v2879
      %v2902 = vunpack.c.l.b16 %v2880
      %v2903 = vunpack.c.l.b16 %v2881
      %v2904 = vunpack.c.l.b16 %v2882
      %v2905 = vunpack.c.l.b16 %v2883
      %v2906 = vunpack.c.l.b16 %v2884
      %v2907 = vunpack.c.l.b16 %v2885
      %v2908 = vunpack.c.l.b16 %v2886
      %vm2909 = vcmask 1041409
      %v2910 = vsel %vm2909, %v2902, %v2901
      %vm2911 = vcmask 1042434
      %v2912 = vsel %vm2911, %v2903, %v2910
      %vm2913 = vcmask 1043459
      %v2914 = vsel %vm2913, %v2904, %v2912
      %vm2915 = vcmask 1044484
      %v2916 = vsel %vm2915, %v2905, %v2914
      %vm2917 = vcmask 1045509
      %v2918 = vsel %vm2917, %v2906, %v2916
      %vm2919 = vcmask 1046534
      %v2920 = vsel %vm2919, %v2907, %v2918
      %vm2921 = vcmask 1047559
      %v2922 = vsel %vm2921, %v2908, %v2920
      %v2923 = vpack.c.b16 %v2922, %v2922
      %v2925 = vsel %vm267, %v2923, 0
      %2927 = vmatpush.bf16.msra.mxu0 0
      %2928 = vmatpush.bf16.msra.mxu0 0
      %2929 = vmatpush.bf16.msra.mxu0 0
      %2930 = vmatpush.bf16.msra.mxu0 0
      %2931 = vmatpush.bf16.msra.mxu0 %v2890
      %2932 = vmatpush.bf16.msra.mxu0 %v2889
      %2933 = vmatpush.bf16.msra.mxu0 %v2888
      %2934 = vmatpush.bf16.msra.mxu0 %v2887
      %2935 = vmatmul.bf16.gmra.mxu0 %v2925
      %v2936 = vpop.f32.mrf.mxu0
      %v2937 = vadd.f32 %v2892, %v2936
      %v2938 = vpop.f32.mrf.mxu0
      %2939 = vdwg.mxu0
      %v2940 = vld [vmem:[%s2 + $0x80] sm:$0xff]
      %v2941 = vld [vmem:[%s2 + $0x88] sm:$0xff]
      %v2942 = vld [vmem:[%s2 + $0x90] sm:$0xff]
      %v2943 = vld [vmem:[%s2 + $0x98] sm:$0xff]
      %v2944 = vld [vmem:[%s2 + $0xa0] sm:$0xff]
      %v2945 = vld [vmem:[%s2 + $0xa8] sm:$0xff]
      %v2946 = vld [vmem:[%s2 + $0xb0] sm:$0xff]
      %v2947 = vld [vmem:[%s2 + $0xb8] sm:$0xff]
      %v2948 = vld [vmem:[%s2 + $0xc0] sm:$0xff]
      %v2949 = vld [vmem:[%s2 + $0xc8] sm:$0xff]
      %v2950 = vld [vmem:[%s2 + $0xd0] sm:$0xff]
      %v2951 = vld [vmem:[%s2 + $0xd8] sm:$0xff]
      %v2952 = vld [vmem:[%s2 + $0xe0] sm:$0xff]
      %v2953 = vld [vmem:[%s2 + $0xe8] sm:$0xff]
      %v2954 = vld [vmem:[%s2 + $0xf0] sm:$0xff]
      %v2955 = vld [vmem:[%s2 + $0xf8] sm:$0xff]
      %v2956 = vpack.c.bf16 %v2937, %v2937
      %v2957 = vpack.c.bf16 %v2941, %v2940
      %v2958 = vpack.c.bf16 %v2943, %v2942
      %v2959 = vpack.c.bf16 %v2945, %v2944
      %v2960 = vpack.c.bf16 %v2947, %v2946
      %v2961 = vpack.c.bf16 %v2949, %v2948
      %v2962 = vpack.c.bf16 %v2951, %v2950
      %v2963 = vpack.c.bf16 %v2953, %v2952
      %v2964 = vpack.c.bf16 %v2955, %v2954
      %v2965 = vld [vmem:[%s4 + $0x10] sm:$0x1]
      %v2966 = vperm.slane %v2965, 0
      %2967 = vmatpush.bf16.msra.mxu0 %v2964
      %2968 = vmatpush.bf16.msra.mxu0 %v2963
      %2969 = vmatpush.bf16.msra.mxu0 %v2962
      %2970 = vmatpush.bf16.msra.mxu0 %v2961
      %2971 = vmatpush.bf16.msra.mxu0 %v2960
      %2972 = vmatpush.bf16.msra.mxu0 %v2959
      %2973 = vmatpush.bf16.msra.mxu0 %v2958
      %2974 = vmatpush.bf16.msra.mxu0 %v2957
      %2975 = vmatmul.bf16.gmra.mxu0 %v2956
      %v2976 = vpop.f32.mrf.mxu0
      %v2977 = vadd.f32 %v2966, %v2976
      %v2978 = vpop.f32.mrf.mxu0
      %2979 = vdwg.mxu0
      %2980 = vst [vmem:[%s227] sm:$0xff] %v2977
      %p2981 = scmp.lt.s32.totalorder %s16, 1
      %s2982 = scalar_select %p2981, %s16, 1
      %s2983 = smul.addr %s2982, 8
      %s2984 = scalar_lea.vmem %s5, %s2983
      // Predicated region
      $region41: #{tfm_model.1} parent=39 // pred_check
        %p2985 = pneg %p144
      $region42: #{tfm_model.1} parent=39 // pred_check_branch
        %2987 = sbr.rel (%p2985) target = $region44
      $region43: #{tfm_model.1} parent=39 // pred_region
        _
      $region44: #{tfm_model.1} parent=39 // pred_fallthru
        _
    $region40: #{tfm_model.1} parent=5 // pred_fallthru
      _
    %p2988 = scmp.le.s32.totalorder 2, %s11
    // Predicated region
    $region45: #{tfm_model.1} parent=5 // pred_check
      %p2989 = pneg %p2988
    $region46: #{tfm_model.1} parent=5 // pred_check_branch
      %2991 = sbr.rel (%p2989) target = $region48
    $region47: #{tfm_model.1} parent=5 // pred_region
      %s2992 = ssub.s32 %s11, 2
      // Predicated region
      $region49: #{tfm_model.1} parent=47 // pred_check
        %p2993 = pneg %p150
      $region50: #{tfm_model.1} parent=47 // pred_check_branch
        %2995 = sbr.rel (%p2993) target = $region52
      $region51: #{tfm_model.1} parent=47 // pred_region
        %p2996 = scmp.lt.s32.totalorder %s17, 1
        %s2997 = scalar_select %p2996, %s17, 1
        %s2998 = smul.addr %s2997, 8
        %s2999 = scalar_lea.vmem %s5, %s2998
      $region52: #{tfm_model.1} parent=47 // pred_fallthru
        _
    $region48: #{tfm_model.1} parent=5 // pred_fallthru
      _
  $region6: #{tfm_model.1} parent=0 // loop_footer
    %s15 = sadd.s32 1, %s11
  $region7: #{tfm_model.1} parent=0 // loop_footer_branch
    %10 = sbr.rel target = $region3
  $region8: #{tfm_model.1} parent=0 // loop_exit
    _

</llo_original>
